<compile_context>
chip_gen: v7x
topology: tpu7x:2x2x1
jax: 0.10.0
libtpu: 0.0.40
codegen_flags: <defaults>
</compile_context>

<pallas_src>
import math
import functools

import jax
import jax.numpy as jnp
from jax import lax
from jax.experimental import pallas as pl
from jax.experimental.pallas import tpu as pltpu


def _softmax_last(x, *, approx):
    m = jnp.max(x, axis=-1, keepdims=True)
    e = jnp.exp(x - m)
    s = jnp.sum(e, axis=-1, keepdims=True)
    return e * pl.reciprocal(s, approx=approx)


def _pinv_newton_schulz(kernel_2, n_iter):
    """Iterative pseudo-inverse ('original' init option). Strictly f32."""
    L = kernel_2.shape[-1]
    rows = lax.broadcasted_iota(jnp.int32, (L, L), 0)
    cols = lax.broadcasted_iota(jnp.int32, (L, L), 1)
    I = (rows == cols).astype(jnp.float32)

    Kmat = kernel_2
    denom = jnp.max(jnp.sum(Kmat, axis=0, keepdims=True))   # max over column sums
    Vmat0 = Kmat.T / denom

    def body(_, Vmat):
        KV = jnp.dot(Kmat, Vmat, preferred_element_type=jnp.float32)
        inner = 7.0 * I - KV
        inner = 15.0 * I - jnp.dot(KV, inner, preferred_element_type=jnp.float32)
        inner = 13.0 * I - jnp.dot(KV, inner, preferred_element_type=jnp.float32)
        return jnp.dot(0.25 * Vmat, inner, preferred_element_type=jnp.float32)

    return lax.fori_loop(0, n_iter, body, Vmat0, unroll=True)


def _nystrom_kernel(q_ref, k_ref, v_ref, mask_ref, *rest,
                    head_dim, landmarks, segs, n_iter, heads_per_block, use_pool):
    if use_pool:
        pool_ref, o_ref = rest
    else:
        (o_ref,) = rest
        pool_ref = None

    L = landmarks
    mask_row = mask_ref[0].astype(jnp.float32)        # (1, S), 1 = keep, lane-dense
    neg_bias = 1e9 * (1.0 - mask_row)                 # (1, S)

    if use_pool:
        pool_bf = pool_ref[...]                       # (L, S) bf16 averaging matrix

    # Static unrolled loop over the Hc heads of this block: independent per-head chains
    # let the scheduler hide the serial L x L Newton-Schulz latency.
    for h in range(heads_per_block):
        # Q/K arrive already masked by key_padding_mask and scaled by 1/sqrt(sqrt(D)).
        q_bf = q_ref[0, h]                            # (S, D) bf16
        k_bf = k_ref[0, h]                            # (S, D) bf16
        v_bf = v_ref[0, h]                            # (S, D) bf16

        # Landmark (segment) means, accumulated in f32.
        if use_pool:
            q_land = jnp.dot(pool_bf, q_bf, preferred_element_type=jnp.float32)
            k_land = jnp.dot(pool_bf, k_bf, preferred_element_type=jnp.float32)
        else:
            inv_segs = 1.0 / float(segs)
            q_land = jnp.sum(q_bf.astype(jnp.float32).reshape(L, segs, head_dim),
                             axis=1) * inv_segs       # (L, D) f32
            k_land = jnp.sum(k_bf.astype(jnp.float32).reshape(L, segs, head_dim),
                             axis=1) * inv_segs       # (L, D) f32

        q_land_bf = q_land.astype(jnp.bfloat16)
        k_land_bf = k_land.astype(jnp.bfloat16)

        # kernel_1 = softmax(Q @ K_land^T)                   -> (S, L)
        s1 = lax.dot_general(q_bf, k_land_bf, (((1,), (1,)), ((), ())),
                             preferred_element_type=jnp.float32)
        kernel_1 = _softmax_last(s1, approx=True)

        # kernel_2 = softmax(Q_land @ K_land^T)              -> (L, L), f32 (feeds pinv)
        s2 = lax.dot_general(q_land, k_land, (((1,), (1,)), ((), ())),
                             preferred_element_type=jnp.float32)
        kernel_2 = _softmax_last(s2, approx=False)

        # kernel_3 = softmax(Q_land @ K^T - 1e9*(1 - mask))  -> (L, S)
        s3 = lax.dot_general(q_land_bf, k_bf, (((1,), (1,)), ((), ())),
                             preferred_element_type=jnp.float32)
        kernel_3 = _softmax_last(s3 - neg_bias, approx=True)

        Vinv = _pinv_newton_schulz(kernel_2, n_iter)  # (L, L) f32

        # Reassociated final product: x = kernel_1 @ (Vinv @ (kernel_3 @ V)).
        b = jnp.dot(kernel_3.astype(jnp.bfloat16), v_bf,
                    preferred_element_type=jnp.float32)              # (L, D)
        vb = jnp.dot(Vinv, b, preferred_element_type=jnp.float32)    # (L, D), tiny
        x = jnp.dot(kernel_1.astype(jnp.bfloat16), vb.astype(jnp.bfloat16),
                    preferred_element_type=jnp.float32)              # (S, D)
        o_ref[0, h] = x.astype(o_ref.dtype)


def nystrom_attention(Q, K, V, key_padding_mask, *, num_landmarks,
                      heads_per_block=None, out_dtype=jnp.bfloat16, n_iter=6):
    """Pallas implementation of NystromAttention.forward (dropout prob = 0)."""
    B, H, S, D = Q.shape
    L = num_landmarks
    # TODO(synk): ragged landmark segmentation (src_len % landmarks != 0) not implemented.
    assert S % L == 0, "this kernel only implements the src_len % landmarks == 0 branch"
    segs = S // L

    if heads_per_block is None:
        heads_per_block = 2 if H % 2 == 0 else 1
    Hc = heads_per_block
    assert H % Hc == 0

    scale = 1.0 / math.sqrt(math.sqrt(D))
    mask_f = key_padding_mask.astype(jnp.float32)          # (B, S)
    mask_col = mask_f[:, None, :, None]                    # (B, 1, S, 1)

    # Query/key masking + scaling is folded into the f32->bf16 down-cast: XLA fuses it
    # into the single elementwise pass we need anyway for bf16 HBM I/O, so there is no
    # extra HBM traffic and the kernel no longer needs a (S, 1) column-mask block.
    Qm = (Q.astype(jnp.float32) * mask_col * scale).astype(jnp.bfloat16)
    Km = (K.astype(jnp.float32) * mask_col * scale).astype(jnp.bfloat16)
    Vb = V.astype(jnp.bfloat16)
    mask_row = mask_f[:, None, :]                          # (B, 1, S), lane-dense

    use_pool = (segs % 8 != 0)   # reshape-mean needs sublane-tile-aligned segments

    inputs = [Qm, Km, Vb, mask_row]
    in_specs = [
        pl.BlockSpec((1, Hc, S, D), lambda b, hb: (b, hb, 0, 0)),   # Q (masked, scaled)
        pl.BlockSpec((1, Hc, S, D), lambda b, hb: (b, hb, 0, 0)),   # K (masked, scaled)
        pl.BlockSpec((1, Hc, S, D), lambda b, hb: (b, hb, 0, 0)),   # V
        pl.BlockSpec((1, 1, S), lambda b, hb: (b, 0, 0)),           # mask (row form)
    ]
    if use_pool:
        seg_id = jnp.arange(S) // segs
        pool = ((seg_id[None, :] == jnp.arange(L)[:, None]).astype(jnp.float32)
                / float(segs)).astype(jnp.bfloat16)
        inputs.append(pool)
        in_specs.append(pl.BlockSpec((L, S), lambda b, hb: (0, 0)))

    kernel = functools.partial(
        _nystrom_kernel, head_dim=D, landmarks=L, segs=segs, n_iter=n_iter,
        heads_per_block=Hc, use_pool=use_pool)

    out = pl.pallas_call(
        kernel,
        out_shape=jax.ShapeDtypeStruct((B, H, S, D), out_dtype),
        grid_spec=pltpu.PrefetchScalarGridSpec(
            num_scalar_prefetch=0,
            grid=(B, H // Hc),
            in_specs=in_specs,
            out_specs=pl.BlockSpec((1, Hc, S, D), lambda b, hb: (b, hb, 0, 0)),
        ),
        compiler_params=pltpu.CompilerParams(
            dimension_semantics=("parallel", "parallel"),
            vmem_limit_bytes=48 * 1024 * 1024,
        ),
    )(*inputs)
    return out


def nystrom_reference(Qm, Km, V, mask, num_landmarks, n_iter=6):
    """Pure-JAX reference mirroring the PyTorch forward (divisible-landmark branch).

    Takes Q/K already masked by key_padding_mask and scaled by 1/sqrt(sqrt(D)), so the
    exact same (optionally bf16-quantized) operands can be fed to kernel and reference.
    """
    B, H, S, D = Qm.shape
    L = num_landmarks
    segs = S // L
    mask = mask.astype(jnp.float32)
    Q_land = Qm.reshape(B, H, L, segs, D).mean(axis=-2)
    K_land = Km.reshape(B, H, L, segs, D).mean(axis=-2)
    k1 = jax.nn.softmax(Qm @ jnp.swapaxes(K_land, -1, -2), axis=-1)
    k2 = jax.nn.softmax(Q_land @ jnp.swapaxes(K_land, -1, -2), axis=-1)
    k3 = jax.nn.softmax(Q_land @ jnp.swapaxes(Km, -1, -2)
                        - 1e9 * (1.0 - mask[:, None, None, :]), axis=-1)
    I = jnp.eye(L, dtype=jnp.float32)
    Kmat = k2
    Vmat = (1.0 / jnp.max(jnp.sum(Kmat, axis=-2), axis=-1))[:, :, None, None] \
           * jnp.swapaxes(Kmat, -1, -2)
    for _ in range(n_iter):
        KV = Kmat @ Vmat
        Vmat = 0.25 * Vmat @ (13.0 * I - KV @ (15.0 * I - KV @ (7.0 * I - KV)))
    return (k1 @ Vmat) @ (k3 @ V)


if __name__ == "__main__":
    # Small deterministic example consistent with the module's forward signature.
    B, H, S, D = 2, 2, 64, 32
    num_landmarks = 8

    key = jax.random.PRNGKey(0)
    kq, kk, kv = jax.random.split(key, 3)
    Q = jax.random.normal(kq, (B, H, S, D), dtype=jnp.float32)
    K = jax.random.normal(kk, (B, H, S, D), dtype=jnp.float32)
    V = jax.random.normal(kv, (B, H, S, D), dtype=jnp.float32)

    # key_padding_mask: batch 0 fully valid, batch 1 has last 8 positions padded.
    mask = jnp.ones((B, S), dtype=jnp.float32)
    mask = mask.at[1, -8:].set(0.0)

    out = nystrom_attention(Q, K, V, mask, num_landmarks=num_landmarks)
    out = jax.block_until_ready(out)

    # Reference on the same bf16-quantized operands (kernel runs mixed bf16/f32), so the
    # comparison isolates the kernel math from the requested bf16 input quantization.
    scale = 1.0 / math.sqrt(math.sqrt(D))
    Qm = (Q * mask[:, None, :, None] * scale).astype(jnp.bfloat16).astype(jnp.float32)
    Km = (K * mask[:, None, :, None] * scale).astype(jnp.bfloat16).astype(jnp.float32)
    Vq = V.astype(jnp.bfloat16).astype(jnp.float32)
    ref = nystrom_reference(Qm, Km, Vq, mask, num_landmarks)
    ref = jax.block_until_ready(ref)

    out_f32 = out.astype(jnp.float32)
    if not jnp.allclose(out_f32, ref, rtol=5e-2, atol=5e-2):
        max_err = float(jnp.max(jnp.abs(out_f32 - ref)))
        raise AssertionError(f"Pallas output mismatch vs reference, max |err| = {max_err}")

    print("KERNEL_OK")
</pallas_src>

<mosaic_0001>
module attributes {stable_mosaic.version = 11 : i64} {
  func.func @_nystrom_kernel(%arg0: i32, %arg1: i32, %arg2: memref<1x2x64x32xbf16, #tpu.memory_space<vmem>>, %arg3: memref<1x2x64x32xbf16, #tpu.memory_space<vmem>>, %arg4: memref<1x2x64x32xbf16, #tpu.memory_space<vmem>>, %arg5: memref<1x1x64xf32, #tpu.memory_space<vmem>>, %arg6: memref<1x2x64x32xbf16, #tpu.memory_space<vmem>>) attributes {dimension_semantics = [#tpu.dimension_semantics<parallel>, #tpu.dimension_semantics<parallel>], iteration_bounds = array<i64: 2, 1>, scalar_prefetch = 0 : i64, scratch_operands = 0 : i64, tpu.core_type = #tpu.core_type<tc>, window_params = [{transform_indices = @transform_0, window_bounds = array<i64: 1, 2, 64, 32>}, {transform_indices = @transform_1, window_bounds = array<i64: 1, 2, 64, 32>}, {transform_indices = @transform_2, window_bounds = array<i64: 1, 2, 64, 32>}, {transform_indices = @transform_3, window_bounds = array<i64: 1, 1, 64>}, {transform_indices = @transform_4, window_bounds = array<i64: 1, 2, 64, 32>}]} {
    %c0 = arith.constant 0 : index
    %c0_0 = arith.constant 0 : index
    %c0_1 = arith.constant 0 : index
    %0 = vector.load %arg5[%c0, %c0_0, %c0_1] : memref<1x1x64xf32, #tpu.memory_space<vmem>>, vector<1x1x64xf32>
    %1 = vector.shape_cast %0 : vector<1x1x64xf32> to vector<1x64xf32>
    %cst = arith.constant 1.000000e+00 : f32
    %2 = vector.broadcast %cst : f32 to vector<1x64xf32>
    %3 = arith.subf %2, %1 : vector<1x64xf32>
    %cst_2 = arith.constant 1.000000e+09 : f32
    %4 = vector.broadcast %cst_2 : f32 to vector<1x64xf32>
    %5 = arith.mulf %4, %3 : vector<1x64xf32>
    %c0_3 = arith.constant 0 : index
    %c0_4 = arith.constant 0 : index
    %c0_5 = arith.constant 0 : index
    %c0_6 = arith.constant 0 : index
    %6 = vector.load %arg2[%c0_3, %c0_4, %c0_5, %c0_6] : memref<1x2x64x32xbf16, #tpu.memory_space<vmem>>, vector<1x1x64x32xbf16>
    %7 = vector.shape_cast %6 : vector<1x1x64x32xbf16> to vector<64x32xbf16>
    %c0_7 = arith.constant 0 : index
    %c0_8 = arith.constant 0 : index
    %c0_9 = arith.constant 0 : index
    %c0_10 = arith.constant 0 : index
    %8 = vector.load %arg3[%c0_7, %c0_8, %c0_9, %c0_10] : memref<1x2x64x32xbf16, #tpu.memory_space<vmem>>, vector<1x1x64x32xbf16>
    %9 = vector.shape_cast %8 : vector<1x1x64x32xbf16> to vector<64x32xbf16>
    %c0_11 = arith.constant 0 : index
    %c0_12 = arith.constant 0 : index
    %c0_13 = arith.constant 0 : index
    %c0_14 = arith.constant 0 : index
    %10 = vector.load %arg4[%c0_11, %c0_12, %c0_13, %c0_14] : memref<1x2x64x32xbf16, #tpu.memory_space<vmem>>, vector<1x1x64x32xbf16>
    %11 = vector.shape_cast %10 : vector<1x1x64x32xbf16> to vector<64x32xbf16>
    %12 = arith.extf %7 : vector<64x32xbf16> to vector<64x32xf32>
    %13 = vector.shape_cast %12 : vector<64x32xf32> to vector<8x8x32xf32>
    %cst_15 = arith.constant dense<0.000000e+00> : vector<8x32xf32>
    %14 = vector.multi_reduction <add>, %13, %cst_15 [1] : vector<8x8x32xf32> to vector<8x32xf32>
    %cst_16 = arith.constant 1.250000e-01 : f32
    %15 = vector.broadcast %cst_16 : f32 to vector<8x32xf32>
    %16 = arith.mulf %14, %15 : vector<8x32xf32>
    %17 = arith.extf %9 : vector<64x32xbf16> to vector<64x32xf32>
    %18 = vector.shape_cast %17 : vector<64x32xf32> to vector<8x8x32xf32>
    %cst_17 = arith.constant dense<0.000000e+00> : vector<8x32xf32>
    %19 = vector.multi_reduction <add>, %18, %cst_17 [1] : vector<8x8x32xf32> to vector<8x32xf32>
    %cst_18 = arith.constant 1.250000e-01 : f32
    %20 = vector.broadcast %cst_18 : f32 to vector<8x32xf32>
    %21 = arith.mulf %19, %20 : vector<8x32xf32>
    %22 = arith.truncf %16 : vector<8x32xf32> to vector<8x32xbf16>
    %23 = arith.truncf %21 : vector<8x32xf32> to vector<8x32xbf16>
    %cst_19 = arith.constant dense<0.000000e+00> : vector<64x8xf32>
    %24 = tpu.matmul %7, %23, %cst_19 {dimension_numbers = #tpu.dot_dimension_numbers<[1], [1], [0], [0], [0, 0, 1, 0], [], []>} : vector<64x32xbf16>, vector<8x32xbf16>, vector<64x8xf32> -> vector<64x8xf32>
    %cst_20 = arith.constant dense<0xFF800000> : vector<64xf32>
    %25 = vector.multi_reduction <maximumf>, %24, %cst_20 [1] : vector<64x8xf32> to vector<64xf32>
    %26 = vector.shape_cast %25 : vector<64xf32> to vector<64x1xf32>
    %27 = vector.broadcast %26 : vector<64x1xf32> to vector<64x8xf32>
    %28 = arith.subf %24, %27 : vector<64x8xf32>
    %29 = math.exp %28 : vector<64x8xf32>
    %cst_21 = arith.constant dense<0.000000e+00> : vector<64xf32>
    %30 = vector.multi_reduction <add>, %29, %cst_21 [1] : vector<64x8xf32> to vector<64xf32>
    %31 = vector.shape_cast %30 : vector<64xf32> to vector<64x1xf32>
    %32 = tpu.reciprocal %31 {approx = true} : vector<64x1xf32> -> vector<64x1xf32>
    %33 = vector.broadcast %32 : vector<64x1xf32> to vector<64x8xf32>
    %34 = arith.mulf %29, %33 : vector<64x8xf32>
    %cst_22 = arith.constant dense<0.000000e+00> : vector<8x8xf32>
    %35 = tpu.matmul %16, %21, %cst_22 {dimension_numbers = #tpu.dot_dimension_numbers<[1], [1], [0], [0], [0, 0, 1, 0], [], []>} : vector<8x32xf32>, vector<8x32xf32>, vector<8x8xf32> -> vector<8x8xf32>
    %cst_23 = arith.constant dense<0xFF800000> : vector<8xf32>
    %36 = vector.multi_reduction <maximumf>, %35, %cst_23 [1] : vector<8x8xf32> to vector<8xf32>
    %37 = vector.shape_cast %36 : vector<8xf32> to vector<8x1xf32>
    %38 = vector.broadcast %37 : vector<8x1xf32> to vector<8x8xf32>
    %39 = arith.subf %35, %38 : vector<8x8xf32>
    %40 = math.exp %39 : vector<8x8xf32>
    %cst_24 = arith.constant dense<0.000000e+00> : vector<8xf32>
    %41 = vector.multi_reduction <add>, %40, %cst_24 [1] : vector<8x8xf32> to vector<8xf32>
    %42 = vector.shape_cast %41 : vector<8xf32> to vector<8x1xf32>
    %43 = tpu.reciprocal %42 : vector<8x1xf32> -> vector<8x1xf32>
    %44 = vector.broadcast %43 : vector<8x1xf32> to vector<8x8xf32>
    %45 = arith.mulf %40, %44 : vector<8x8xf32>
    %cst_25 = arith.constant dense<0.000000e+00> : vector<8x64xf32>
    %46 = tpu.matmul %22, %9, %cst_25 {dimension_numbers = #tpu.dot_dimension_numbers<[1], [1], [0], [0], [0, 0, 1, 0], [], []>} : vector<8x32xbf16>, vector<64x32xbf16>, vector<8x64xf32> -> vector<8x64xf32>
    %47 = vector.broadcast %5 : vector<1x64xf32> to vector<8x64xf32>
    %48 = arith.subf %46, %47 : vector<8x64xf32>
    %cst_26 = arith.constant dense<0xFF800000> : vector<8xf32>
    %49 = vector.multi_reduction <maximumf>, %48, %cst_26 [1] : vector<8x64xf32> to vector<8xf32>
    %50 = vector.shape_cast %49 : vector<8xf32> to vector<8x1xf32>
    %51 = vector.broadcast %50 : vector<8x1xf32> to vector<8x64xf32>
    %52 = arith.subf %48, %51 : vector<8x64xf32>
    %53 = math.exp %52 : vector<8x64xf32>
    %cst_27 = arith.constant dense<0.000000e+00> : vector<8xf32>
    %54 = vector.multi_reduction <add>, %53, %cst_27 [1] : vector<8x64xf32> to vector<8xf32>
    %55 = vector.shape_cast %54 : vector<8xf32> to vector<8x1xf32>
    %56 = tpu.reciprocal %55 {approx = true} : vector<8x1xf32> -> vector<8x1xf32>
    %57 = vector.broadcast %56 : vector<8x1xf32> to vector<8x64xf32>
    %58 = arith.mulf %53, %57 : vector<8x64xf32>
    %59 = tpu.iota {dimensions = array<i32: 0>} : vector<8x8xi32>
    %60 = tpu.iota {dimensions = array<i32: 1>} : vector<8x8xi32>
    %61 = arith.cmpi eq, %59, %60 : vector<8x8xi32>
    %62 = arith.extui %61 : vector<8x8xi1> to vector<8x8xi32>
    %63 = arith.sitofp %62 : vector<8x8xi32> to vector<8x8xf32>
    %cst_28 = arith.constant dense<0.000000e+00> : vector<8xf32>
    %64 = vector.multi_reduction <add>, %45, %cst_28 [0] : vector<8x8xf32> to vector<8xf32>
    %65 = vector.shape_cast %64 : vector<8xf32> to vector<1x8xf32>
    %66 = vector.shape_cast %65 : vector<1x8xf32> to vector<1x1x8xf32>
    %cst_29 = arith.constant dense<0xFF800000> : vector<1xf32>
    %67 = vector.multi_reduction <maximumf>, %66, %cst_29 [1, 2] : vector<1x1x8xf32> to vector<1xf32>
    %68 = vector.shape_cast %67 : vector<1xf32> to vector<1x1x1xf32>
    %69 = vector.extract %68[0, 0, 0] : f32 from vector<1x1x1xf32>
    %70 = tpu.transpose %45, [1, 0] : vector<8x8xf32> -> vector<8x8xf32>
    %71 = vector.broadcast %69 : f32 to vector<8x8xf32>
    %72 = arith.divf %70, %71 : vector<8x8xf32>
    %c0_i32 = arith.constant 0 : i32
    %cst_30 = arith.constant dense<0.000000e+00> : vector<8x8xf32>
    %73 = tpu.matmul %45, %72, %cst_30 {dimension_numbers = #tpu.dot_dimension_numbers<[1], [0], [0], [1], [0, 0, 1, 1], [], []>} : vector<8x8xf32>, vector<8x8xf32>, vector<8x8xf32> -> vector<8x8xf32>
    %cst_31 = arith.constant 7.000000e+00 : f32
    %74 = vector.broadcast %cst_31 : f32 to vector<8x8xf32>
    %75 = arith.mulf %74, %63 : vector<8x8xf32>
    %76 = arith.subf %75, %73 : vector<8x8xf32>
    %cst_32 = arith.constant 1.500000e+01 : f32
    %77 = vector.broadcast %cst_32 : f32 to vector<8x8xf32>
    %78 = arith.mulf %77, %63 : vector<8x8xf32>
    %cst_33 = arith.constant dense<0.000000e+00> : vector<8x8xf32>
    %79 = tpu.matmul %73, %76, %cst_33 {dimension_numbers = #tpu.dot_dimension_numbers<[1], [0], [0], [1], [0, 0, 1, 1], [], []>} : vector<8x8xf32>, vector<8x8xf32>, vector<8x8xf32> -> vector<8x8xf32>
    %80 = arith.subf %78, %79 : vector<8x8xf32>
    %cst_34 = arith.constant 1.300000e+01 : f32
    %81 = vector.broadcast %cst_34 : f32 to vector<8x8xf32>
    %82 = arith.mulf %81, %63 : vector<8x8xf32>
    %cst_35 = arith.constant dense<0.000000e+00> : vector<8x8xf32>
    %83 = tpu.matmul %73, %80, %cst_35 {dimension_numbers = #tpu.dot_dimension_numbers<[1], [0], [0], [1], [0, 0, 1, 1], [], []>} : vector<8x8xf32>, vector<8x8xf32>, vector<8x8xf32> -> vector<8x8xf32>
    %84 = arith.subf %82, %83 : vector<8x8xf32>
    %cst_36 = arith.constant 2.500000e-01 : f32
    %85 = vector.broadcast %cst_36 : f32 to vector<8x8xf32>
    %86 = arith.mulf %85, %72 : vector<8x8xf32>
    %cst_37 = arith.constant dense<0.000000e+00> : vector<8x8xf32>
    %87 = tpu.matmul %86, %84, %cst_37 {dimension_numbers = #tpu.dot_dimension_numbers<[1], [0], [0], [1], [0, 0, 1, 1], [], []>} : vector<8x8xf32>, vector<8x8xf32>, vector<8x8xf32> -> vector<8x8xf32>
    %c1_i32 = arith.constant 1 : i32
    %cst_38 = arith.constant dense<0.000000e+00> : vector<8x8xf32>
    %88 = tpu.matmul %45, %87, %cst_38 {dimension_numbers = #tpu.dot_dimension_numbers<[1], [0], [0], [1], [0, 0, 1, 1], [], []>} : vector<8x8xf32>, vector<8x8xf32>, vector<8x8xf32> -> vector<8x8xf32>
    %cst_39 = arith.constant 7.000000e+00 : f32
    %89 = vector.broadcast %cst_39 : f32 to vector<8x8xf32>
    %90 = arith.mulf %89, %63 : vector<8x8xf32>
    %91 = arith.subf %90, %88 : vector<8x8xf32>
    %cst_40 = arith.constant 1.500000e+01 : f32
    %92 = vector.broadcast %cst_40 : f32 to vector<8x8xf32>
    %93 = arith.mulf %92, %63 : vector<8x8xf32>
    %cst_41 = arith.constant dense<0.000000e+00> : vector<8x8xf32>
    %94 = tpu.matmul %88, %91, %cst_41 {dimension_numbers = #tpu.dot_dimension_numbers<[1], [0], [0], [1], [0, 0, 1, 1], [], []>} : vector<8x8xf32>, vector<8x8xf32>, vector<8x8xf32> -> vector<8x8xf32>
    %95 = arith.subf %93, %94 : vector<8x8xf32>
    %cst_42 = arith.constant 1.300000e+01 : f32
    %96 = vector.broadcast %cst_42 : f32 to vector<8x8xf32>
    %97 = arith.mulf %96, %63 : vector<8x8xf32>
    %cst_43 = arith.constant dense<0.000000e+00> : vector<8x8xf32>
    %98 = tpu.matmul %88, %95, %cst_43 {dimension_numbers = #tpu.dot_dimension_numbers<[1], [0], [0], [1], [0, 0, 1, 1], [], []>} : vector<8x8xf32>, vector<8x8xf32>, vector<8x8xf32> -> vector<8x8xf32>
    %99 = arith.subf %97, %98 : vector<8x8xf32>
    %cst_44 = arith.constant 2.500000e-01 : f32
    %100 = vector.broadcast %cst_44 : f32 to vector<8x8xf32>
    %101 = arith.mulf %100, %87 : vector<8x8xf32>
    %cst_45 = arith.constant dense<0.000000e+00> : vector<8x8xf32>
    %102 = tpu.matmul %101, %99, %cst_45 {dimension_numbers = #tpu.dot_dimension_numbers<[1], [0], [0], [1], [0, 0, 1, 1], [], []>} : vector<8x8xf32>, vector<8x8xf32>, vector<8x8xf32> -> vector<8x8xf32>
    %c2_i32 = arith.constant 2 : i32
    %cst_46 = arith.constant dense<0.000000e+00> : vector<8x8xf32>
    %103 = tpu.matmul %45, %102, %cst_46 {dimension_numbers = #tpu.dot_dimension_numbers<[1], [0], [0], [1], [0, 0, 1, 1], [], []>} : vector<8x8xf32>, vector<8x8xf32>, vector<8x8xf32> -> vector<8x8xf32>
    %cst_47 = arith.constant 7.000000e+00 : f32
    %104 = vector.broadcast %cst_47 : f32 to vector<8x8xf32>
    %105 = arith.mulf %104, %63 : vector<8x8xf32>
    %106 = arith.subf %105, %103 : vector<8x8xf32>
    %cst_48 = arith.constant 1.500000e+01 : f32
    %107 = vector.broadcast %cst_48 : f32 to vector<8x8xf32>
    %108 = arith.mulf %107, %63 : vector<8x8xf32>
    %cst_49 = arith.constant dense<0.000000e+00> : vector<8x8xf32>
    %109 = tpu.matmul %103, %106, %cst_49 {dimension_numbers = #tpu.dot_dimension_numbers<[1], [0], [0], [1], [0, 0, 1, 1], [], []>} : vector<8x8xf32>, vector<8x8xf32>, vector<8x8xf32> -> vector<8x8xf32>
    %110 = arith.subf %108, %109 : vector<8x8xf32>
    %cst_50 = arith.constant 1.300000e+01 : f32
    %111 = vector.broadcast %cst_50 : f32 to vector<8x8xf32>
    %112 = arith.mulf %111, %63 : vector<8x8xf32>
    %cst_51 = arith.constant dense<0.000000e+00> : vector<8x8xf32>
    %113 = tpu.matmul %103, %110, %cst_51 {dimension_numbers = #tpu.dot_dimension_numbers<[1], [0], [0], [1], [0, 0, 1, 1], [], []>} : vector<8x8xf32>, vector<8x8xf32>, vector<8x8xf32> -> vector<8x8xf32>
    %114 = arith.subf %112, %113 : vector<8x8xf32>
    %cst_52 = arith.constant 2.500000e-01 : f32
    %115 = vector.broadcast %cst_52 : f32 to vector<8x8xf32>
    %116 = arith.mulf %115, %102 : vector<8x8xf32>
    %cst_53 = arith.constant dense<0.000000e+00> : vector<8x8xf32>
    %117 = tpu.matmul %116, %114, %cst_53 {dimension_numbers = #tpu.dot_dimension_numbers<[1], [0], [0], [1], [0, 0, 1, 1], [], []>} : vector<8x8xf32>, vector<8x8xf32>, vector<8x8xf32> -> vector<8x8xf32>
    %c3_i32 = arith.constant 3 : i32
    %cst_54 = arith.constant dense<0.000000e+00> : vector<8x8xf32>
    %118 = tpu.matmul %45, %117, %cst_54 {dimension_numbers = #tpu.dot_dimension_numbers<[1], [0], [0], [1], [0, 0, 1, 1], [], []>} : vector<8x8xf32>, vector<8x8xf32>, vector<8x8xf32> -> vector<8x8xf32>
    %cst_55 = arith.constant 7.000000e+00 : f32
    %119 = vector.broadcast %cst_55 : f32 to vector<8x8xf32>
    %120 = arith.mulf %119, %63 : vector<8x8xf32>
    %121 = arith.subf %120, %118 : vector<8x8xf32>
    %cst_56 = arith.constant 1.500000e+01 : f32
    %122 = vector.broadcast %cst_56 : f32 to vector<8x8xf32>
    %123 = arith.mulf %122, %63 : vector<8x8xf32>
    %cst_57 = arith.constant dense<0.000000e+00> : vector<8x8xf32>
    %124 = tpu.matmul %118, %121, %cst_57 {dimension_numbers = #tpu.dot_dimension_numbers<[1], [0], [0], [1], [0, 0, 1, 1], [], []>} : vector<8x8xf32>, vector<8x8xf32>, vector<8x8xf32> -> vector<8x8xf32>
    %125 = arith.subf %123, %124 : vector<8x8xf32>
    %cst_58 = arith.constant 1.300000e+01 : f32
    %126 = vector.broadcast %cst_58 : f32 to vector<8x8xf32>
    %127 = arith.mulf %126, %63 : vector<8x8xf32>
    %cst_59 = arith.constant dense<0.000000e+00> : vector<8x8xf32>
    %128 = tpu.matmul %118, %125, %cst_59 {dimension_numbers = #tpu.dot_dimension_numbers<[1], [0], [0], [1], [0, 0, 1, 1], [], []>} : vector<8x8xf32>, vector<8x8xf32>, vector<8x8xf32> -> vector<8x8xf32>
    %129 = arith.subf %127, %128 : vector<8x8xf32>
    %cst_60 = arith.constant 2.500000e-01 : f32
    %130 = vector.broadcast %cst_60 : f32 to vector<8x8xf32>
    %131 = arith.mulf %130, %117 : vector<8x8xf32>
    %cst_61 = arith.constant dense<0.000000e+00> : vector<8x8xf32>
    %132 = tpu.matmul %131, %129, %cst_61 {dimension_numbers = #tpu.dot_dimension_numbers<[1], [0], [0], [1], [0, 0, 1, 1], [], []>} : vector<8x8xf32>, vector<8x8xf32>, vector<8x8xf32> -> vector<8x8xf32>
    %c4_i32 = arith.constant 4 : i32
    %cst_62 = arith.constant dense<0.000000e+00> : vector<8x8xf32>
    %133 = tpu.matmul %45, %132, %cst_62 {dimension_numbers = #tpu.dot_dimension_numbers<[1], [0], [0], [1], [0, 0, 1, 1], [], []>} : vector<8x8xf32>, vector<8x8xf32>, vector<8x8xf32> -> vector<8x8xf32>
    %cst_63 = arith.constant 7.000000e+00 : f32
    %134 = vector.broadcast %cst_63 : f32 to vector<8x8xf32>
    %135 = arith.mulf %134, %63 : vector<8x8xf32>
    %136 = arith.subf %135, %133 : vector<8x8xf32>
    %cst_64 = arith.constant 1.500000e+01 : f32
    %137 = vector.broadcast %cst_64 : f32 to vector<8x8xf32>
    %138 = arith.mulf %137, %63 : vector<8x8xf32>
    %cst_65 = arith.constant dense<0.000000e+00> : vector<8x8xf32>
    %139 = tpu.matmul %133, %136, %cst_65 {dimension_numbers = #tpu.dot_dimension_numbers<[1], [0], [0], [1], [0, 0, 1, 1], [], []>} : vector<8x8xf32>, vector<8x8xf32>, vector<8x8xf32> -> vector<8x8xf32>
    %140 = arith.subf %138, %139 : vector<8x8xf32>
    %cst_66 = arith.constant 1.300000e+01 : f32
    %141 = vector.broadcast %cst_66 : f32 to vector<8x8xf32>
    %142 = arith.mulf %141, %63 : vector<8x8xf32>
    %cst_67 = arith.constant dense<0.000000e+00> : vector<8x8xf32>
    %143 = tpu.matmul %133, %140, %cst_67 {dimension_numbers = #tpu.dot_dimension_numbers<[1], [0], [0], [1], [0, 0, 1, 1], [], []>} : vector<8x8xf32>, vector<8x8xf32>, vector<8x8xf32> -> vector<8x8xf32>
    %144 = arith.subf %142, %143 : vector<8x8xf32>
    %cst_68 = arith.constant 2.500000e-01 : f32
    %145 = vector.broadcast %cst_68 : f32 to vector<8x8xf32>
    %146 = arith.mulf %145, %132 : vector<8x8xf32>
    %cst_69 = arith.constant dense<0.000000e+00> : vector<8x8xf32>
    %147 = tpu.matmul %146, %144, %cst_69 {dimension_numbers = #tpu.dot_dimension_numbers<[1], [0], [0], [1], [0, 0, 1, 1], [], []>} : vector<8x8xf32>, vector<8x8xf32>, vector<8x8xf32> -> vector<8x8xf32>
    %c5_i32 = arith.constant 5 : i32
    %cst_70 = arith.constant dense<0.000000e+00> : vector<8x8xf32>
    %148 = tpu.matmul %45, %147, %cst_70 {dimension_numbers = #tpu.dot_dimension_numbers<[1], [0], [0], [1], [0, 0, 1, 1], [], []>} : vector<8x8xf32>, vector<8x8xf32>, vector<8x8xf32> -> vector<8x8xf32>
    %cst_71 = arith.constant 7.000000e+00 : f32
    %149 = vector.broadcast %cst_71 : f32 to vector<8x8xf32>
    %150 = arith.mulf %149, %63 : vector<8x8xf32>
    %151 = arith.subf %150, %148 : vector<8x8xf32>
    %cst_72 = arith.constant 1.500000e+01 : f32
    %152 = vector.broadcast %cst_72 : f32 to vector<8x8xf32>
    %153 = arith.mulf %152, %63 : vector<8x8xf32>
    %cst_73 = arith.constant dense<0.000000e+00> : vector<8x8xf32>
    %154 = tpu.matmul %148, %151, %cst_73 {dimension_numbers = #tpu.dot_dimension_numbers<[1], [0], [0], [1], [0, 0, 1, 1], [], []>} : vector<8x8xf32>, vector<8x8xf32>, vector<8x8xf32> -> vector<8x8xf32>
    %155 = arith.subf %153, %154 : vector<8x8xf32>
    %cst_74 = arith.constant 1.300000e+01 : f32
    %156 = vector.broadcast %cst_74 : f32 to vector<8x8xf32>
    %157 = arith.mulf %156, %63 : vector<8x8xf32>
    %cst_75 = arith.constant dense<0.000000e+00> : vector<8x8xf32>
    %158 = tpu.matmul %148, %155, %cst_75 {dimension_numbers = #tpu.dot_dimension_numbers<[1], [0], [0], [1], [0, 0, 1, 1], [], []>} : vector<8x8xf32>, vector<8x8xf32>, vector<8x8xf32> -> vector<8x8xf32>
    %159 = arith.subf %157, %158 : vector<8x8xf32>
    %cst_76 = arith.constant 2.500000e-01 : f32
    %160 = vector.broadcast %cst_76 : f32 to vector<8x8xf32>
    %161 = arith.mulf %160, %147 : vector<8x8xf32>
    %cst_77 = arith.constant dense<0.000000e+00> : vector<8x8xf32>
    %162 = tpu.matmul %161, %159, %cst_77 {dimension_numbers = #tpu.dot_dimension_numbers<[1], [0], [0], [1], [0, 0, 1, 1], [], []>} : vector<8x8xf32>, vector<8x8xf32>, vector<8x8xf32> -> vector<8x8xf32>
    %163 = arith.truncf %58 : vector<8x64xf32> to vector<8x64xbf16>
    %cst_78 = arith.constant dense<0.000000e+00> : vector<8x32xf32>
    %164 = tpu.matmul %163, %11, %cst_78 {dimension_numbers = #tpu.dot_dimension_numbers<[1], [0], [0], [1], [0, 0, 1, 1], [], []>} : vector<8x64xbf16>, vector<64x32xbf16>, vector<8x32xf32> -> vector<8x32xf32>
    %cst_79 = arith.constant dense<0.000000e+00> : vector<8x32xf32>
    %165 = tpu.matmul %162, %164, %cst_79 {dimension_numbers = #tpu.dot_dimension_numbers<[1], [0], [0], [1], [0, 0, 1, 1], [], []>} : vector<8x8xf32>, vector<8x32xf32>, vector<8x32xf32> -> vector<8x32xf32>
    %166 = arith.truncf %34 : vector<64x8xf32> to vector<64x8xbf16>
    %167 = arith.truncf %165 : vector<8x32xf32> to vector<8x32xbf16>
    %cst_80 = arith.constant dense<0.000000e+00> : vector<64x32xf32>
    %168 = tpu.matmul %166, %167, %cst_80 {dimension_numbers = #tpu.dot_dimension_numbers<[1], [0], [0], [1], [0, 0, 1, 1], [], []>} : vector<64x8xbf16>, vector<8x32xbf16>, vector<64x32xf32> -> vector<64x32xf32>
    %169 = arith.truncf %168 : vector<64x32xf32> to vector<64x32xbf16>
    %c0_81 = arith.constant 0 : index
    %c0_82 = arith.constant 0 : index
    %c0_83 = arith.constant 0 : index
    %c0_84 = arith.constant 0 : index
    %170 = vector.load %arg6[%c0_81, %c0_82, %c0_83, %c0_84] : memref<1x2x64x32xbf16, #tpu.memory_space<vmem>>, vector<1x1x64x32xbf16>
    %171 = vector.shape_cast %170 : vector<1x1x64x32xbf16> to vector<64x32xbf16>
    %172 = vector.shape_cast %169 : vector<64x32xbf16> to vector<1x1x64x32xbf16>
    tpu.vector_store %arg6[%c0_81, %c0_82, %c0_83, %c0_84], %172 {strides = array<i32>} : memref<1x2x64x32xbf16, #tpu.memory_space<vmem>>, vector<1x1x64x32xbf16>,
    %c0_85 = arith.constant 0 : index
    %c1 = arith.constant 1 : index
    %c0_86 = arith.constant 0 : index
    %c0_87 = arith.constant 0 : index
    %173 = vector.load %arg2[%c0_85, %c1, %c0_86, %c0_87] : memref<1x2x64x32xbf16, #tpu.memory_space<vmem>>, vector<1x1x64x32xbf16>
    %174 = vector.shape_cast %173 : vector<1x1x64x32xbf16> to vector<64x32xbf16>
    %c0_88 = arith.constant 0 : index
    %c1_89 = arith.constant 1 : index
    %c0_90 = arith.constant 0 : index
    %c0_91 = arith.constant 0 : index
    %175 = vector.load %arg3[%c0_88, %c1_89, %c0_90, %c0_91] : memref<1x2x64x32xbf16, #tpu.memory_space<vmem>>, vector<1x1x64x32xbf16>
    %176 = vector.shape_cast %175 : vector<1x1x64x32xbf16> to vector<64x32xbf16>
    %c0_92 = arith.constant 0 : index
    %c1_93 = arith.constant 1 : index
    %c0_94 = arith.constant 0 : index
    %c0_95 = arith.constant 0 : index
    %177 = vector.load %arg4[%c0_92, %c1_93, %c0_94, %c0_95] : memref<1x2x64x32xbf16, #tpu.memory_space<vmem>>, vector<1x1x64x32xbf16>
    %178 = vector.shape_cast %177 : vector<1x1x64x32xbf16> to vector<64x32xbf16>
    %179 = arith.extf %174 : vector<64x32xbf16> to vector<64x32xf32>
    %180 = vector.shape_cast %179 : vector<64x32xf32> to vector<8x8x32xf32>
    %cst_96 = arith.constant dense<0.000000e+00> : vector<8x32xf32>
    %181 = vector.multi_reduction <add>, %180, %cst_96 [1] : vector<8x8x32xf32> to vector<8x32xf32>
    %cst_97 = arith.constant 1.250000e-01 : f32
    %182 = vector.broadcast %cst_97 : f32 to vector<8x32xf32>
    %183 = arith.mulf %181, %182 : vector<8x32xf32>
    %184 = arith.extf %176 : vector<64x32xbf16> to vector<64x32xf32>
    %185 = vector.shape_cast %184 : vector<64x32xf32> to vector<8x8x32xf32>
    %cst_98 = arith.constant dense<0.000000e+00> : vector<8x32xf32>
    %186 = vector.multi_reduction <add>, %185, %cst_98 [1] : vector<8x8x32xf32> to vector<8x32xf32>
    %cst_99 = arith.constant 1.250000e-01 : f32
    %187 = vector.broadcast %cst_99 : f32 to vector<8x32xf32>
    %188 = arith.mulf %186, %187 : vector<8x32xf32>
    %189 = arith.truncf %183 : vector<8x32xf32> to vector<8x32xbf16>
    %190 = arith.truncf %188 : vector<8x32xf32> to vector<8x32xbf16>
    %cst_100 = arith.constant dense<0.000000e+00> : vector<64x8xf32>
    %191 = tpu.matmul %174, %190, %cst_100 {dimension_numbers = #tpu.dot_dimension_numbers<[1], [1], [0], [0], [0, 0, 1, 0], [], []>} : vector<64x32xbf16>, vector<8x32xbf16>, vector<64x8xf32> -> vector<64x8xf32>
    %cst_101 = arith.constant dense<0xFF800000> : vector<64xf32>
    %192 = vector.multi_reduction <maximumf>, %191, %cst_101 [1] : vector<64x8xf32> to vector<64xf32>
    %193 = vector.shape_cast %192 : vector<64xf32> to vector<64x1xf32>
    %194 = vector.broadcast %193 : vector<64x1xf32> to vector<64x8xf32>
    %195 = arith.subf %191, %194 : vector<64x8xf32>
    %196 = math.exp %195 : vector<64x8xf32>
    %cst_102 = arith.constant dense<0.000000e+00> : vector<64xf32>
    %197 = vector.multi_reduction <add>, %196, %cst_102 [1] : vector<64x8xf32> to vector<64xf32>
    %198 = vector.shape_cast %197 : vector<64xf32> to vector<64x1xf32>
    %199 = tpu.reciprocal %198 {approx = true} : vector<64x1xf32> -> vector<64x1xf32>
    %200 = vector.broadcast %199 : vector<64x1xf32> to vector<64x8xf32>
    %201 = arith.mulf %196, %200 : vector<64x8xf32>
    %cst_103 = arith.constant dense<0.000000e+00> : vector<8x8xf32>
    %202 = tpu.matmul %183, %188, %cst_103 {dimension_numbers = #tpu.dot_dimension_numbers<[1], [1], [0], [0], [0, 0, 1, 0], [], []>} : vector<8x32xf32>, vector<8x32xf32>, vector<8x8xf32> -> vector<8x8xf32>
    %cst_104 = arith.constant dense<0xFF800000> : vector<8xf32>
    %203 = vector.multi_reduction <maximumf>, %202, %cst_104 [1] : vector<8x8xf32> to vector<8xf32>
    %204 = vector.shape_cast %203 : vector<8xf32> to vector<8x1xf32>
    %205 = vector.broadcast %204 : vector<8x1xf32> to vector<8x8xf32>
    %206 = arith.subf %202, %205 : vector<8x8xf32>
    %207 = math.exp %206 : vector<8x8xf32>
    %cst_105 = arith.constant dense<0.000000e+00> : vector<8xf32>
    %208 = vector.multi_reduction <add>, %207, %cst_105 [1] : vector<8x8xf32> to vector<8xf32>
    %209 = vector.shape_cast %208 : vector<8xf32> to vector<8x1xf32>
    %210 = tpu.reciprocal %209 : vector<8x1xf32> -> vector<8x1xf32>
    %211 = vector.broadcast %210 : vector<8x1xf32> to vector<8x8xf32>
    %212 = arith.mulf %207, %211 : vector<8x8xf32>
    %cst_106 = arith.constant dense<0.000000e+00> : vector<8x64xf32>
    %213 = tpu.matmul %189, %176, %cst_106 {dimension_numbers = #tpu.dot_dimension_numbers<[1], [1], [0], [0], [0, 0, 1, 0], [], []>} : vector<8x32xbf16>, vector<64x32xbf16>, vector<8x64xf32> -> vector<8x64xf32>
    %214 = vector.broadcast %5 : vector<1x64xf32> to vector<8x64xf32>
    %215 = arith.subf %213, %214 : vector<8x64xf32>
    %cst_107 = arith.constant dense<0xFF800000> : vector<8xf32>
    %216 = vector.multi_reduction <maximumf>, %215, %cst_107 [1] : vector<8x64xf32> to vector<8xf32>
    %217 = vector.shape_cast %216 : vector<8xf32> to vector<8x1xf32>
    %218 = vector.broadcast %217 : vector<8x1xf32> to vector<8x64xf32>
    %219 = arith.subf %215, %218 : vector<8x64xf32>
    %220 = math.exp %219 : vector<8x64xf32>
    %cst_108 = arith.constant dense<0.000000e+00> : vector<8xf32>
    %221 = vector.multi_reduction <add>, %220, %cst_108 [1] : vector<8x64xf32> to vector<8xf32>
    %222 = vector.shape_cast %221 : vector<8xf32> to vector<8x1xf32>
    %223 = tpu.reciprocal %222 {approx = true} : vector<8x1xf32> -> vector<8x1xf32>
    %224 = vector.broadcast %223 : vector<8x1xf32> to vector<8x64xf32>
    %225 = arith.mulf %220, %224 : vector<8x64xf32>
    %226 = tpu.iota {dimensions = array<i32: 0>} : vector<8x8xi32>
    %227 = tpu.iota {dimensions = array<i32: 1>} : vector<8x8xi32>
    %228 = arith.cmpi eq, %226, %227 : vector<8x8xi32>
    %229 = arith.extui %228 : vector<8x8xi1> to vector<8x8xi32>
    %230 = arith.sitofp %229 : vector<8x8xi32> to vector<8x8xf32>
    %cst_109 = arith.constant dense<0.000000e+00> : vector<8xf32>
    %231 = vector.multi_reduction <add>, %212, %cst_109 [0] : vector<8x8xf32> to vector<8xf32>
    %232 = vector.shape_cast %231 : vector<8xf32> to vector<1x8xf32>
    %233 = vector.shape_cast %232 : vector<1x8xf32> to vector<1x1x8xf32>
    %cst_110 = arith.constant dense<0xFF800000> : vector<1xf32>
    %234 = vector.multi_reduction <maximumf>, %233, %cst_110 [1, 2] : vector<1x1x8xf32> to vector<1xf32>
    %235 = vector.shape_cast %234 : vector<1xf32> to vector<1x1x1xf32>
    %236 = vector.extract %235[0, 0, 0] : f32 from vector<1x1x1xf32>
    %237 = tpu.transpose %212, [1, 0] : vector<8x8xf32> -> vector<8x8xf32>
    %238 = vector.broadcast %236 : f32 to vector<8x8xf32>
    %239 = arith.divf %237, %238 : vector<8x8xf32>
    %c0_i32_111 = arith.constant 0 : i32
    %cst_112 = arith.constant dense<0.000000e+00> : vector<8x8xf32>
    %240 = tpu.matmul %212, %239, %cst_112 {dimension_numbers = #tpu.dot_dimension_numbers<[1], [0], [0], [1], [0, 0, 1, 1], [], []>} : vector<8x8xf32>, vector<8x8xf32>, vector<8x8xf32> -> vector<8x8xf32>
    %cst_113 = arith.constant 7.000000e+00 : f32
    %241 = vector.broadcast %cst_113 : f32 to vector<8x8xf32>
    %242 = arith.mulf %241, %230 : vector<8x8xf32>
    %243 = arith.subf %242, %240 : vector<8x8xf32>
    %cst_114 = arith.constant 1.500000e+01 : f32
    %244 = vector.broadcast %cst_114 : f32 to vector<8x8xf32>
    %245 = arith.mulf %244, %230 : vector<8x8xf32>
    %cst_115 = arith.constant dense<0.000000e+00> : vector<8x8xf32>
    %246 = tpu.matmul %240, %243, %cst_115 {dimension_numbers = #tpu.dot_dimension_numbers<[1], [0], [0], [1], [0, 0, 1, 1], [], []>} : vector<8x8xf32>, vector<8x8xf32>, vector<8x8xf32> -> vector<8x8xf32>
    %247 = arith.subf %245, %246 : vector<8x8xf32>
    %cst_116 = arith.constant 1.300000e+01 : f32
    %248 = vector.broadcast %cst_116 : f32 to vector<8x8xf32>
    %249 = arith.mulf %248, %230 : vector<8x8xf32>
    %cst_117 = arith.constant dense<0.000000e+00> : vector<8x8xf32>
    %250 = tpu.matmul %240, %247, %cst_117 {dimension_numbers = #tpu.dot_dimension_numbers<[1], [0], [0], [1], [0, 0, 1, 1], [], []>} : vector<8x8xf32>, vector<8x8xf32>, vector<8x8xf32> -> vector<8x8xf32>
    %251 = arith.subf %249, %250 : vector<8x8xf32>
    %cst_118 = arith.constant 2.500000e-01 : f32
    %252 = vector.broadcast %cst_118 : f32 to vector<8x8xf32>
    %253 = arith.mulf %252, %239 : vector<8x8xf32>
    %cst_119 = arith.constant dense<0.000000e+00> : vector<8x8xf32>
    %254 = tpu.matmul %253, %251, %cst_119 {dimension_numbers = #tpu.dot_dimension_numbers<[1], [0], [0], [1], [0, 0, 1, 1], [], []>} : vector<8x8xf32>, vector<8x8xf32>, vector<8x8xf32> -> vector<8x8xf32>
    %c1_i32_120 = arith.constant 1 : i32
    %cst_121 = arith.constant dense<0.000000e+00> : vector<8x8xf32>
    %255 = tpu.matmul %212, %254, %cst_121 {dimension_numbers = #tpu.dot_dimension_numbers<[1], [0], [0], [1], [0, 0, 1, 1], [], []>} : vector<8x8xf32>, vector<8x8xf32>, vector<8x8xf32> -> vector<8x8xf32>
    %cst_122 = arith.constant 7.000000e+00 : f32
    %256 = vector.broadcast %cst_122 : f32 to vector<8x8xf32>
    %257 = arith.mulf %256, %230 : vector<8x8xf32>
    %258 = arith.subf %257, %255 : vector<8x8xf32>
    %cst_123 = arith.constant 1.500000e+01 : f32
    %259 = vector.broadcast %cst_123 : f32 to vector<8x8xf32>
    %260 = arith.mulf %259, %230 : vector<8x8xf32>
    %cst_124 = arith.constant dense<0.000000e+00> : vector<8x8xf32>
    %261 = tpu.matmul %255, %258, %cst_124 {dimension_numbers = #tpu.dot_dimension_numbers<[1], [0], [0], [1], [0, 0, 1, 1], [], []>} : vector<8x8xf32>, vector<8x8xf32>, vector<8x8xf32> -> vector<8x8xf32>
    %262 = arith.subf %260, %261 : vector<8x8xf32>
    %cst_125 = arith.constant 1.300000e+01 : f32
    %263 = vector.broadcast %cst_125 : f32 to vector<8x8xf32>
    %264 = arith.mulf %263, %230 : vector<8x8xf32>
    %cst_126 = arith.constant dense<0.000000e+00> : vector<8x8xf32>
    %265 = tpu.matmul %255, %262, %cst_126 {dimension_numbers = #tpu.dot_dimension_numbers<[1], [0], [0], [1], [0, 0, 1, 1], [], []>} : vector<8x8xf32>, vector<8x8xf32>, vector<8x8xf32> -> vector<8x8xf32>
    %266 = arith.subf %264, %265 : vector<8x8xf32>
    %cst_127 = arith.constant 2.500000e-01 : f32
    %267 = vector.broadcast %cst_127 : f32 to vector<8x8xf32>
    %268 = arith.mulf %267, %254 : vector<8x8xf32>
    %cst_128 = arith.constant dense<0.000000e+00> : vector<8x8xf32>
    %269 = tpu.matmul %268, %266, %cst_128 {dimension_numbers = #tpu.dot_dimension_numbers<[1], [0], [0], [1], [0, 0, 1, 1], [], []>} : vector<8x8xf32>, vector<8x8xf32>, vector<8x8xf32> -> vector<8x8xf32>
    %c2_i32_129 = arith.constant 2 : i32
    %cst_130 = arith.constant dense<0.000000e+00> : vector<8x8xf32>
    %270 = tpu.matmul %212, %269, %cst_130 {dimension_numbers = #tpu.dot_dimension_numbers<[1], [0], [0], [1], [0, 0, 1, 1], [], []>} : vector<8x8xf32>, vector<8x8xf32>, vector<8x8xf32> -> vector<8x8xf32>
    %cst_131 = arith.constant 7.000000e+00 : f32
    %271 = vector.broadcast %cst_131 : f32 to vector<8x8xf32>
    %272 = arith.mulf %271, %230 : vector<8x8xf32>
    %273 = arith.subf %272, %270 : vector<8x8xf32>
    %cst_132 = arith.constant 1.500000e+01 : f32
    %274 = vector.broadcast %cst_132 : f32 to vector<8x8xf32>
    %275 = arith.mulf %274, %230 : vector<8x8xf32>
    %cst_133 = arith.constant dense<0.000000e+00> : vector<8x8xf32>
    %276 = tpu.matmul %270, %273, %cst_133 {dimension_numbers = #tpu.dot_dimension_numbers<[1], [0], [0], [1], [0, 0, 1, 1], [], []>} : vector<8x8xf32>, vector<8x8xf32>, vector<8x8xf32> -> vector<8x8xf32>
    %277 = arith.subf %275, %276 : vector<8x8xf32>
    %cst_134 = arith.constant 1.300000e+01 : f32
    %278 = vector.broadcast %cst_134 : f32 to vector<8x8xf32>
    %279 = arith.mulf %278, %230 : vector<8x8xf32>
    %cst_135 = arith.constant dense<0.000000e+00> : vector<8x8xf32>
    %280 = tpu.matmul %270, %277, %cst_135 {dimension_numbers = #tpu.dot_dimension_numbers<[1], [0], [0], [1], [0, 0, 1, 1], [], []>} : vector<8x8xf32>, vector<8x8xf32>, vector<8x8xf32> -> vector<8x8xf32>
    %281 = arith.subf %279, %280 : vector<8x8xf32>
    %cst_136 = arith.constant 2.500000e-01 : f32
    %282 = vector.broadcast %cst_136 : f32 to vector<8x8xf32>
    %283 = arith.mulf %282, %269 : vector<8x8xf32>
    %cst_137 = arith.constant dense<0.000000e+00> : vector<8x8xf32>
    %284 = tpu.matmul %283, %281, %cst_137 {dimension_numbers = #tpu.dot_dimension_numbers<[1], [0], [0], [1], [0, 0, 1, 1], [], []>} : vector<8x8xf32>, vector<8x8xf32>, vector<8x8xf32> -> vector<8x8xf32>
    %c3_i32_138 = arith.constant 3 : i32
    %cst_139 = arith.constant dense<0.000000e+00> : vector<8x8xf32>
    %285 = tpu.matmul %212, %284, %cst_139 {dimension_numbers = #tpu.dot_dimension_numbers<[1], [0], [0], [1], [0, 0, 1, 1], [], []>} : vector<8x8xf32>, vector<8x8xf32>, vector<8x8xf32> -> vector<8x8xf32>
    %cst_140 = arith.constant 7.000000e+00 : f32
    %286 = vector.broadcast %cst_140 : f32 to vector<8x8xf32>
    %287 = arith.mulf %286, %230 : vector<8x8xf32>
    %288 = arith.subf %287, %285 : vector<8x8xf32>
    %cst_141 = arith.constant 1.500000e+01 : f32
    %289 = vector.broadcast %cst_141 : f32 to vector<8x8xf32>
    %290 = arith.mulf %289, %230 : vector<8x8xf32>
    %cst_142 = arith.constant dense<0.000000e+00> : vector<8x8xf32>
    %291 = tpu.matmul %285, %288, %cst_142 {dimension_numbers = #tpu.dot_dimension_numbers<[1], [0], [0], [1], [0, 0, 1, 1], [], []>} : vector<8x8xf32>, vector<8x8xf32>, vector<8x8xf32> -> vector<8x8xf32>
    %292 = arith.subf %290, %291 : vector<8x8xf32>
    %cst_143 = arith.constant 1.300000e+01 : f32
    %293 = vector.broadcast %cst_143 : f32 to vector<8x8xf32>
    %294 = arith.mulf %293, %230 : vector<8x8xf32>
    %cst_144 = arith.constant dense<0.000000e+00> : vector<8x8xf32>
    %295 = tpu.matmul %285, %292, %cst_144 {dimension_numbers = #tpu.dot_dimension_numbers<[1], [0], [0], [1], [0, 0, 1, 1], [], []>} : vector<8x8xf32>, vector<8x8xf32>, vector<8x8xf32> -> vector<8x8xf32>
    %296 = arith.subf %294, %295 : vector<8x8xf32>
    %cst_145 = arith.constant 2.500000e-01 : f32
    %297 = vector.broadcast %cst_145 : f32 to vector<8x8xf32>
    %298 = arith.mulf %297, %284 : vector<8x8xf32>
    %cst_146 = arith.constant dense<0.000000e+00> : vector<8x8xf32>
    %299 = tpu.matmul %298, %296, %cst_146 {dimension_numbers = #tpu.dot_dimension_numbers<[1], [0], [0], [1], [0, 0, 1, 1], [], []>} : vector<8x8xf32>, vector<8x8xf32>, vector<8x8xf32> -> vector<8x8xf32>
    %c4_i32_147 = arith.constant 4 : i32
    %cst_148 = arith.constant dense<0.000000e+00> : vector<8x8xf32>
    %300 = tpu.matmul %212, %299, %cst_148 {dimension_numbers = #tpu.dot_dimension_numbers<[1], [0], [0], [1], [0, 0, 1, 1], [], []>} : vector<8x8xf32>, vector<8x8xf32>, vector<8x8xf32> -> vector<8x8xf32>
    %cst_149 = arith.constant 7.000000e+00 : f32
    %301 = vector.broadcast %cst_149 : f32 to vector<8x8xf32>
    %302 = arith.mulf %301, %230 : vector<8x8xf32>
    %303 = arith.subf %302, %300 : vector<8x8xf32>
    %cst_150 = arith.constant 1.500000e+01 : f32
    %304 = vector.broadcast %cst_150 : f32 to vector<8x8xf32>
    %305 = arith.mulf %304, %230 : vector<8x8xf32>
    %cst_151 = arith.constant dense<0.000000e+00> : vector<8x8xf32>
    %306 = tpu.matmul %300, %303, %cst_151 {dimension_numbers = #tpu.dot_dimension_numbers<[1], [0], [0], [1], [0, 0, 1, 1], [], []>} : vector<8x8xf32>, vector<8x8xf32>, vector<8x8xf32> -> vector<8x8xf32>
    %307 = arith.subf %305, %306 : vector<8x8xf32>
    %cst_152 = arith.constant 1.300000e+01 : f32
    %308 = vector.broadcast %cst_152 : f32 to vector<8x8xf32>
    %309 = arith.mulf %308, %230 : vector<8x8xf32>
    %cst_153 = arith.constant dense<0.000000e+00> : vector<8x8xf32>
    %310 = tpu.matmul %300, %307, %cst_153 {dimension_numbers = #tpu.dot_dimension_numbers<[1], [0], [0], [1], [0, 0, 1, 1], [], []>} : vector<8x8xf32>, vector<8x8xf32>, vector<8x8xf32> -> vector<8x8xf32>
    %311 = arith.subf %309, %310 : vector<8x8xf32>
    %cst_154 = arith.constant 2.500000e-01 : f32
    %312 = vector.broadcast %cst_154 : f32 to vector<8x8xf32>
    %313 = arith.mulf %312, %299 : vector<8x8xf32>
    %cst_155 = arith.constant dense<0.000000e+00> : vector<8x8xf32>
    %314 = tpu.matmul %313, %311, %cst_155 {dimension_numbers = #tpu.dot_dimension_numbers<[1], [0], [0], [1], [0, 0, 1, 1], [], []>} : vector<8x8xf32>, vector<8x8xf32>, vector<8x8xf32> -> vector<8x8xf32>
    %c5_i32_156 = arith.constant 5 : i32
    %cst_157 = arith.constant dense<0.000000e+00> : vector<8x8xf32>
    %315 = tpu.matmul %212, %314, %cst_157 {dimension_numbers = #tpu.dot_dimension_numbers<[1], [0], [0], [1], [0, 0, 1, 1], [], []>} : vector<8x8xf32>, vector<8x8xf32>, vector<8x8xf32> -> vector<8x8xf32>
    %cst_158 = arith.constant 7.000000e+00 : f32
    %316 = vector.broadcast %cst_158 : f32 to vector<8x8xf32>
    %317 = arith.mulf %316, %230 : vector<8x8xf32>
    %318 = arith.subf %317, %315 : vector<8x8xf32>
    %cst_159 = arith.constant 1.500000e+01 : f32
    %319 = vector.broadcast %cst_159 : f32 to vector<8x8xf32>
    %320 = arith.mulf %319, %230 : vector<8x8xf32>
    %cst_160 = arith.constant dense<0.000000e+00> : vector<8x8xf32>
    %321 = tpu.matmul %315, %318, %cst_160 {dimension_numbers = #tpu.dot_dimension_numbers<[1], [0], [0], [1], [0, 0, 1, 1], [], []>} : vector<8x8xf32>, vector<8x8xf32>, vector<8x8xf32> -> vector<8x8xf32>
    %322 = arith.subf %320, %321 : vector<8x8xf32>
    %cst_161 = arith.constant 1.300000e+01 : f32
    %323 = vector.broadcast %cst_161 : f32 to vector<8x8xf32>
    %324 = arith.mulf %323, %230 : vector<8x8xf32>
    %cst_162 = arith.constant dense<0.000000e+00> : vector<8x8xf32>
    %325 = tpu.matmul %315, %322, %cst_162 {dimension_numbers = #tpu.dot_dimension_numbers<[1], [0], [0], [1], [0, 0, 1, 1], [], []>} : vector<8x8xf32>, vector<8x8xf32>, vector<8x8xf32> -> vector<8x8xf32>
    %326 = arith.subf %324, %325 : vector<8x8xf32>
    %cst_163 = arith.constant 2.500000e-01 : f32
    %327 = vector.broadcast %cst_163 : f32 to vector<8x8xf32>
    %328 = arith.mulf %327, %314 : vector<8x8xf32>
    %cst_164 = arith.constant dense<0.000000e+00> : vector<8x8xf32>
    %329 = tpu.matmul %328, %326, %cst_164 {dimension_numbers = #tpu.dot_dimension_numbers<[1], [0], [0], [1], [0, 0, 1, 1], [], []>} : vector<8x8xf32>, vector<8x8xf32>, vector<8x8xf32> -> vector<8x8xf32>
    %330 = arith.truncf %225 : vector<8x64xf32> to vector<8x64xbf16>
    %cst_165 = arith.constant dense<0.000000e+00> : vector<8x32xf32>
    %331 = tpu.matmul %330, %178, %cst_165 {dimension_numbers = #tpu.dot_dimension_numbers<[1], [0], [0], [1], [0, 0, 1, 1], [], []>} : vector<8x64xbf16>, vector<64x32xbf16>, vector<8x32xf32> -> vector<8x32xf32>
    %cst_166 = arith.constant dense<0.000000e+00> : vector<8x32xf32>
    %332 = tpu.matmul %329, %331, %cst_166 {dimension_numbers = #tpu.dot_dimension_numbers<[1], [0], [0], [1], [0, 0, 1, 1], [], []>} : vector<8x8xf32>, vector<8x32xf32>, vector<8x32xf32> -> vector<8x32xf32>
    %333 = arith.truncf %201 : vector<64x8xf32> to vector<64x8xbf16>
    %334 = arith.truncf %332 : vector<8x32xf32> to vector<8x32xbf16>
    %cst_167 = arith.constant dense<0.000000e+00> : vector<64x32xf32>
    %335 = tpu.matmul %333, %334, %cst_167 {dimension_numbers = #tpu.dot_dimension_numbers<[1], [0], [0], [1], [0, 0, 1, 1], [], []>} : vector<64x8xbf16>, vector<8x32xbf16>, vector<64x32xf32> -> vector<64x32xf32>
    %336 = arith.truncf %335 : vector<64x32xf32> to vector<64x32xbf16>
    %c0_168 = arith.constant 0 : index
    %c1_169 = arith.constant 1 : index
    %c0_170 = arith.constant 0 : index
    %c0_171 = arith.constant 0 : index
    %337 = vector.load %arg6[%c0_168, %c1_169, %c0_170, %c0_171] : memref<1x2x64x32xbf16, #tpu.memory_space<vmem>>, vector<1x1x64x32xbf16>
    %338 = vector.shape_cast %337 : vector<1x1x64x32xbf16> to vector<64x32xbf16>
    %339 = vector.shape_cast %336 : vector<64x32xbf16> to vector<1x1x64x32xbf16>
    tpu.vector_store %arg6[%c0_168, %c1_169, %c0_170, %c0_171], %339 {strides = array<i32>} : memref<1x2x64x32xbf16, #tpu.memory_space<vmem>>, vector<1x1x64x32xbf16>,
    return
  }
  func.func @transform_0(%arg0: i32, %arg1: i32) -> (i32, i32, i32, i32) {
    %c0_i32 = arith.constant 0 : i32
    %c0_i32_0 = arith.constant 0 : i32
    %c0_i32_1 = arith.constant 0 : i32
    return %arg0, %arg1, %c0_i32, %c0_i32_0 : i32, i32, i32, i32
  }
  func.func @transform_1(%arg0: i32, %arg1: i32) -> (i32, i32, i32, i32) {
    %c0_i32 = arith.constant 0 : i32
    %c0_i32_0 = arith.constant 0 : i32
    %c0_i32_1 = arith.constant 0 : i32
    return %arg0, %arg1, %c0_i32, %c0_i32_0 : i32, i32, i32, i32
  }
  func.func @transform_2(%arg0: i32, %arg1: i32) -> (i32, i32, i32, i32) {
    %c0_i32 = arith.constant 0 : i32
    %c0_i32_0 = arith.constant 0 : i32
    %c0_i32_1 = arith.constant 0 : i32
    return %arg0, %arg1, %c0_i32, %c0_i32_0 : i32, i32, i32, i32
  }
  func.func @transform_3(%arg0: i32, %arg1: i32) -> (i32, i32, i32) {
    %c0_i32 = arith.constant 0 : i32
    %c0_i32_0 = arith.constant 0 : i32
    %c0_i32_1 = arith.constant 0 : i32
    return %arg0, %c0_i32, %c0_i32_0 : i32, i32, i32
  }
  func.func @transform_4(%arg0: i32, %arg1: i32) -> (i32, i32, i32, i32) {
    %c0_i32 = arith.constant 0 : i32
    %c0_i32_0 = arith.constant 0 : i32
    %c0_i32_1 = arith.constant 0 : i32
    return %arg0, %arg1, %c0_i32, %c0_i32_0 : i32, i32, i32, i32
  }
}

</mosaic_0001>

<llo_original>
// kernel: tpu_custom_call.1
$region0: #{tpu_custom_call.1}
  #allocation0 [shape = 'u32[]', space=smem, size = 0x4, offset = 0x4, fixed_abs, tag = 'smem constant byte address 0x4 - core index']
  #allocation1 [shape = 'u32[144,128]{1,0:T(1,128)}', space=vmem, size = 0x12000, scoped, tag = 'internal scratch']
  %s0 = inlined_call_operand.vmem [shape: bf16[2,2,64,32], index: 0, kind: input, shape index: {}]
  %s1 = inlined_call_operand.vmem [shape: bf16[2,2,64,32], index: 1, kind: input, shape index: {}]
  %s2 = inlined_call_operand.vmem [shape: bf16[2,2,64,32], index: 2, kind: input, shape index: {}]
  %s3 = inlined_call_operand.vmem [shape: f32[2,1,64], index: 3, kind: input, shape index: {}]
  %s4 = inlined_call_operand.vmem [shape: bf16[2,2,64,32], index: 4, kind: output, shape index: {}]
  %s5 = sld [smem:[#allocation0]]
  $region49: #{tpu_custom_call.1} parent=0
    _
  %s7 = ssub.s32 1, %s5
  %s8 = scalar_select 0, %s7, %s5
  loop: start=0, step=1, limit=4
  $region2: #{tpu_custom_call.1} parent=0 // loop_pre_header
    _
  $region3: #{tpu_custom_call.1} parent=0 // loop_header
    %s10 = sphi 0, %s14
    %p11 = scmp.ge.s32.totalorder %s10, 4
    %s17 = sphi 0, %s29
    %s18 = sphi 0, %s25
    %s19 = sphi 0, %s17
    %s20 = sphi 0, %s18
    %s21 = sphi 0, %s19
    %s22 = sphi 0, %s20
    %s34 = sphi 0, %s36
    %s37 = sphi 0, %s34
    %s38 = sphi 0, %s37
    %s54 = sphi 0, %s38
    %s62 = sphi 0, %s64
    %s65 = sphi 0, %s62
    %s66 = sphi 0, %s65
    %s82 = sphi 0, %s66
    %s90 = sphi 0, %s92
    %s93 = sphi 0, %s90
    %s94 = sphi 0, %s93
    %s110 = sphi 0, %s94
    %s116 = sphi 0, %s118
    %s119 = sphi 0, %s116
    %s120 = sphi 0, %s119
    %s136 = sphi 0, %s120
    %s144 = sphi 0, %s146
    %s147 = sphi 0, %s144
    %s148 = sphi 0, %s147
    %s164 = sphi 0, %s148
  $region4: #{tpu_custom_call.1} parent=0 // loop_header_branch
    %13 = sbr.rel (%p11) target = $region8
  $region5: #{tpu_custom_call.1} parent=0 // loop_body
    %s15 = ssub.s32 %s10, 1
    %s16 = ssub.s32 %s10, 2
    %s23 = sadd.s32 1, %s18
    %p24 = scmp.ge.s32.totalorder %s23, 1
    %s25 = scalar_select %p24, 0, %s23
    %s26 = sadd.s32 1, %s17
    %s27 = scalar_select %p24, %s26, %s17
    %p28 = scmp.ge.s32.totalorder %s27, 2
    %s29 = scalar_select %p28, 0, %s27
    %s30 = ssub.s32 %s17, %s29
    %s31 = ssub.s32 %s18, %s25
    %s32 = sor.u32 %s30, %s31
    %p33 = scmp.eq.s32.totalorder %s32, 0
    %s35 = sadd.s32 %s34, 1
    %s36 = scalar_select %p33, %s34, %s35
    %p39 = pneg %p33
    %p40 = scmp.eq.s32.totalorder %s10, 1
    %p41 = por %p39, %p40
    %p42 = scmp.ne.s32.totalorder %s34, %s37
    %p43 = scmp.eq.s32.totalorder %s10, 0
    %p44 = por %p42, %p43
    %p45 = scmp.ne.s32.totalorder %s34, %s37
    %p46 = scmp.eq.s32.totalorder %s15, 1
    %p47 = por %p45, %p46
    %p48 = scmp.ne.s32.totalorder %s37, %s38
    %p49 = scmp.eq.s32.totalorder %s15, 0
    %p50 = por %p48, %p49
    %p51 = scmp.ne.s32.totalorder %s37, %s38
    %p52 = scmp.eq.s32.totalorder %s16, 1
    %p53 = por %p51, %p52
    %p55 = scmp.ne.s32.totalorder %s38, %s54
    %p56 = scmp.eq.s32.totalorder %s16, 0
    %p57 = por %p55, %p56
    %s58 = ssub.s32 %s17, %s29
    %s59 = ssub.s32 %s18, %s25
    %s60 = sor.u32 %s58, %s59
    %p61 = scmp.eq.s32.totalorder %s60, 0
    %s63 = sadd.s32 %s62, 1
    %s64 = scalar_select %p61, %s62, %s63
    %p67 = pneg %p61
    %p68 = scmp.eq.s32.totalorder %s10, 1
    %p69 = por %p67, %p68
    %p70 = scmp.ne.s32.totalorder %s62, %s65
    %p71 = scmp.eq.s32.totalorder %s10, 0
    %p72 = por %p70, %p71
    %p73 = scmp.ne.s32.totalorder %s62, %s65
    %p74 = scmp.eq.s32.totalorder %s15, 1
    %p75 = por %p73, %p74
    %p76 = scmp.ne.s32.totalorder %s65, %s66
    %p77 = scmp.eq.s32.totalorder %s15, 0
    %p78 = por %p76, %p77
    %p79 = scmp.ne.s32.totalorder %s65, %s66
    %p80 = scmp.eq.s32.totalorder %s16, 1
    %p81 = por %p79, %p80
    %p83 = scmp.ne.s32.totalorder %s66, %s82
    %p84 = scmp.eq.s32.totalorder %s16, 0
    %p85 = por %p83, %p84
    %s86 = ssub.s32 %s17, %s29
    %s87 = ssub.s32 %s18, %s25
    %s88 = sor.u32 %s86, %s87
    %p89 = scmp.eq.s32.totalorder %s88, 0
    %s91 = sadd.s32 %s90, 1
    %s92 = scalar_select %p89, %s90, %s91
    %p95 = pneg %p89
    %p96 = scmp.eq.s32.totalorder %s10, 1
    %p97 = por %p95, %p96
    %p98 = scmp.ne.s32.totalorder %s90, %s93
    %p99 = scmp.eq.s32.totalorder %s10, 0
    %p100 = por %p98, %p99
    %p101 = scmp.ne.s32.totalorder %s90, %s93
    %p102 = scmp.eq.s32.totalorder %s15, 1
    %p103 = por %p101, %p102
    %p104 = scmp.ne.s32.totalorder %s93, %s94
    %p105 = scmp.eq.s32.totalorder %s15, 0
    %p106 = por %p104, %p105
    %p107 = scmp.ne.s32.totalorder %s93, %s94
    %p108 = scmp.eq.s32.totalorder %s16, 1
    %p109 = por %p107, %p108
    %p111 = scmp.ne.s32.totalorder %s94, %s110
    %p112 = scmp.eq.s32.totalorder %s16, 0
    %p113 = por %p111, %p112
    %s114 = ssub.s32 %s17, %s29
    %p115 = scmp.eq.s32.totalorder %s114, 0
    %s117 = sadd.s32 %s116, 1
    %s118 = scalar_select %p115, %s116, %s117
    %p121 = pneg %p115
    %p122 = scmp.eq.s32.totalorder %s10, 1
    %p123 = por %p121, %p122
    %p124 = scmp.ne.s32.totalorder %s116, %s119
    %p125 = scmp.eq.s32.totalorder %s10, 0
    %p126 = por %p124, %p125
    %p127 = scmp.ne.s32.totalorder %s116, %s119
    %p128 = scmp.eq.s32.totalorder %s15, 1
    %p129 = por %p127, %p128
    %p130 = scmp.ne.s32.totalorder %s119, %s120
    %p131 = scmp.eq.s32.totalorder %s15, 0
    %p132 = por %p130, %p131
    %p133 = scmp.ne.s32.totalorder %s119, %s120
    %p134 = scmp.eq.s32.totalorder %s16, 1
    %p135 = por %p133, %p134
    %p137 = scmp.ne.s32.totalorder %s120, %s136
    %p138 = scmp.eq.s32.totalorder %s16, 0
    %p139 = por %p137, %p138
    %s140 = ssub.s32 %s17, %s29
    %s141 = ssub.s32 %s18, %s25
    %s142 = sor.u32 %s140, %s141
    %p143 = scmp.eq.s32.totalorder %s142, 0
    %s145 = sadd.s32 %s144, 1
    %s146 = scalar_select %p143, %s144, %s145
    %p149 = pneg %p143
    %p150 = scmp.eq.s32.totalorder %s10, 1
    %p151 = por %p149, %p150
    %p152 = scmp.ne.s32.totalorder %s144, %s147
    %p153 = scmp.eq.s32.totalorder %s10, 0
    %p154 = por %p152, %p153
    %p155 = scmp.ne.s32.totalorder %s144, %s147
    %p156 = scmp.eq.s32.totalorder %s15, 1
    %p157 = por %p155, %p156
    %p158 = scmp.ne.s32.totalorder %s147, %s148
    %p159 = scmp.eq.s32.totalorder %s15, 0
    %p160 = por %p158, %p159
    %p161 = scmp.ne.s32.totalorder %s147, %s148
    %p162 = scmp.eq.s32.totalorder %s16, 1
    %p163 = por %p161, %p162
    %p165 = scmp.ne.s32.totalorder %s148, %s164
    %p166 = scmp.eq.s32.totalorder %s16, 0
    %p167 = por %p165, %p166
    %p168 = scmp.le.s32.totalorder 1, %s10
    %p169 = scmp.lt.s32.totalorder %s10, 3
    %p170 = pnand %p168, %p169
    %p171 = pneg %p170
    // Predicated region
    $region9: #{tpu_custom_call.1} parent=5 // pred_check
      _
    $region10: #{tpu_custom_call.1} parent=5 // pred_check_branch
      %173 = sbr.rel (%p170) target = $region12
    $region11: #{tpu_custom_call.1} parent=5 // pred_region
      %s174 = ssub.s32 %s10, 1
    $region12: #{tpu_custom_call.1} parent=5 // pred_fallthru
      _
    %p175 = scmp.lt.s32.totalorder %s10, 2
    // Predicated region
    $region13: #{tpu_custom_call.1} parent=5 // pred_check
      %p176 = pneg %p175
    $region14: #{tpu_custom_call.1} parent=5 // pred_check_branch
      %178 = sbr.rel (%p176) target = $region16
    $region15: #{tpu_custom_call.1} parent=5 // pred_region
      // Predicated region
      $region17: #{tpu_custom_call.1} parent=15 // pred_check
        %p179 = pneg %p44
      $region18: #{tpu_custom_call.1} parent=15 // pred_check_branch
        %181 = sbr.rel (%p179) target = $region20
      $region19: #{tpu_custom_call.1} parent=15 // pred_region
        %s182 = smul.u32 2, %s18
        %p183 = scmp.lt.s32.totalorder %s17, 1
        %s184 = scalar_select %p183, %s17, 1
        %p185 = scmp.lt.s32.totalorder %s182, 1
        %s186 = scalar_select %p185, %s182, 1
        %s187 = smul.addr %s186, 8
        %s188 = smul.addr %s184, 16
        %s189 = sadd.s32 %s187, %s188
        %s190 = smul.addr %s189, 4
        %s191 = scalar_lea.vmem %s0, %s190
        %s192 = smul.u32 2, %s18
      $region20: #{tpu_custom_call.1} parent=15 // pred_fallthru
        _
      // Predicated region
      $region21: #{tpu_custom_call.1} parent=15 // pred_check
        %p193 = pneg %p72
      $region22: #{tpu_custom_call.1} parent=15 // pred_check_branch
        %195 = sbr.rel (%p193) target = $region24
      $region23: #{tpu_custom_call.1} parent=15 // pred_region
        %s196 = smul.u32 2, %s18
        %p197 = scmp.lt.s32.totalorder %s17, 1
        %s198 = scalar_select %p197, %s17, 1
        %p199 = scmp.lt.s32.totalorder %s196, 1
        %s200 = scalar_select %p199, %s196, 1
        %s201 = smul.addr %s200, 8
        %s202 = smul.addr %s198, 16
        %s203 = sadd.s32 %s201, %s202
        %s204 = smul.addr %s203, 4
        %s205 = scalar_lea.vmem %s1, %s204
        %s206 = smul.u32 2, %s18
      $region24: #{tpu_custom_call.1} parent=15 // pred_fallthru
        _
      // Predicated region
      $region25: #{tpu_custom_call.1} parent=15 // pred_check
        %p207 = pneg %p100
      $region26: #{tpu_custom_call.1} parent=15 // pred_check_branch
        %209 = sbr.rel (%p207) target = $region28
      $region27: #{tpu_custom_call.1} parent=15 // pred_region
        %s210 = smul.u32 2, %s18
        %p211 = scmp.lt.s32.totalorder %s17, 1
        %s212 = scalar_select %p211, %s17, 1
        %p213 = scmp.lt.s32.totalorder %s210, 1
        %s214 = scalar_select %p213, %s210, 1
        %s215 = smul.addr %s214, 8
        %s216 = smul.addr %s212, 16
        %s217 = sadd.s32 %s215, %s216
        %s218 = smul.addr %s217, 4
        %s219 = scalar_lea.vmem %s2, %s218
        %s220 = smul.u32 2, %s18
      $region28: #{tpu_custom_call.1} parent=15 // pred_fallthru
        _
      // Predicated region
      $region29: #{tpu_custom_call.1} parent=15 // pred_check
        %p221 = pneg %p126
      $region30: #{tpu_custom_call.1} parent=15 // pred_check_branch
        %223 = sbr.rel (%p221) target = $region32
      $region31: #{tpu_custom_call.1} parent=15 // pred_region
        %p224 = scmp.lt.s32.totalorder %s17, 1
        %s225 = scalar_select %p224, %s17, 1
        %s226 = scalar_lea.vmem %s3, %s225
      $region32: #{tpu_custom_call.1} parent=15 // pred_fallthru
        _
    $region16: #{tpu_custom_call.1} parent=5 // pred_fallthru
      _
    %p227 = scmp.le.s32.totalorder 1, %s10
    %p228 = scmp.lt.s32.totalorder %s10, 3
    %p229 = pnand %p227, %p228
    %p230 = pneg %p229
    // Predicated region
    $region33: #{tpu_custom_call.1} parent=5 // pred_check
      _
    $region34: #{tpu_custom_call.1} parent=5 // pred_check_branch
      %232 = sbr.rel (%p229) target = $region36
    $region35: #{tpu_custom_call.1} parent=5 // pred_region
      %s233 = ssub.s32 %s10, 1
      %s234 = smul.u32 2, %s20
      %p235 = scmp.lt.s32.totalorder %s19, 1
      %s236 = scalar_select %p235, %s19, 1
      %p237 = scmp.lt.s32.totalorder %s234, 1
      %s238 = scalar_select %p237, %s234, 1
      %s239 = smul.addr %s238, 8
      %s240 = smul.addr %s236, 16
      %s241 = sadd.s32 %s239, %s240
      %s242 = smul.addr %s241, 4
      %s243 = scalar_lea.vmem %s0, %s242
      %p244 = pneg %p50
      %p245 = pneg %p47
      %s246 = smul.u32 2, %s20
      %p247 = scmp.lt.s32.totalorder %s19, 1
      %s248 = scalar_select %p247, %s19, 1
      %p249 = scmp.lt.s32.totalorder %s246, 1
      %s250 = scalar_select %p249, %s246, 1
      %s251 = smul.addr %s250, 8
      %s252 = smul.addr %s248, 16
      %s253 = sadd.s32 %s251, %s252
      %s254 = smul.addr %s253, 4
      %s255 = scalar_lea.vmem %s1, %s254
      %p256 = pneg %p78
      %p257 = pneg %p75
      %s258 = smul.u32 2, %s20
      %p259 = scmp.lt.s32.totalorder %s19, 1
      %s260 = scalar_select %p259, %s19, 1
      %p261 = scmp.lt.s32.totalorder %s258, 1
      %s262 = scalar_select %p261, %s258, 1
      %s263 = smul.addr %s262, 8
      %s264 = smul.addr %s260, 16
      %s265 = sadd.s32 %s263, %s264
      %s266 = smul.addr %s265, 4
      %s267 = scalar_lea.vmem %s2, %s266
      %p268 = pneg %p106
      %p269 = pneg %p103
      %p270 = scmp.lt.s32.totalorder %s19, 1
      %s271 = scalar_select %p270, %s19, 1
      %s272 = scalar_lea.vmem %s3, %s271
      %p273 = pneg %p132
      %p274 = pneg %p129
      %p275 = pneg %p160
      %p276 = pneg %p157
      %s277 = smul.u32 2, %s20
      %p278 = scmp.lt.s32.totalorder %s19, 1
      %s279 = scalar_select %p278, %s19, 1
      %p280 = scmp.lt.s32.totalorder %s277, 1
      %s281 = scalar_select %p280, %s277, 1
      %s282 = smul.addr %s281, 8
      %s283 = smul.addr %s279, 16
      %s284 = sadd.s32 %s282, %s283
      %s285 = smul.addr %s284, 4
      %s286 = scalar_lea.vmem %s4, %s285
      %s287 = smul.u32 2, %s20
      %p288 = scmp.lt.s32.totalorder %s19, 1
      %s289 = scalar_select %p288, %s19, 1
      %p290 = scmp.lt.s32.totalorder %s287, 1
      %s291 = scalar_select %p290, %s287, 1
      %s292 = smul.addr %s291, 8
      %s293 = smul.addr %s289, 16
      %s294 = sadd.s32 %s292, %s293
      %s295 = smul.addr %s294, 4
      %s296 = scalar_lea.vmem %s0, %s295
      %s297 = smul.u32 2, %s20
      %s298 = smul.u32 2, %s20
      %p299 = scmp.lt.s32.totalorder %s19, 1
      %s300 = scalar_select %p299, %s19, 1
      %p301 = scmp.lt.s32.totalorder %s298, 1
      %s302 = scalar_select %p301, %s298, 1
      %s303 = smul.addr %s302, 8
      %s304 = smul.addr %s300, 16
      %s305 = sadd.s32 %s303, %s304
      %s306 = smul.addr %s305, 4
      %s307 = scalar_lea.vmem %s1, %s306
      %s308 = smul.u32 2, %s20
      %s309 = smul.u32 2, %s20
      %p310 = scmp.lt.s32.totalorder %s19, 1
      %s311 = scalar_select %p310, %s19, 1
      %p312 = scmp.lt.s32.totalorder %s309, 1
      %s313 = scalar_select %p312, %s309, 1
      %s314 = smul.addr %s313, 8
      %s315 = smul.addr %s311, 16
      %s316 = sadd.s32 %s314, %s315
      %s317 = smul.addr %s316, 4
      %s318 = scalar_lea.vmem %s2, %s317
      %s319 = smul.u32 2, %s20
      %p320 = scmp.lt.s32.totalorder %s19, 1
      %s321 = scalar_select %p320, %s19, 1
      %s322 = scalar_lea.vmem %s3, %s321
      %s323 = smul.u32 2, %s20
      %p324 = scmp.lt.s32.totalorder %s19, 1
      %s325 = scalar_select %p324, %s19, 1
      %p326 = scmp.lt.s32.totalorder %s323, 1
      %s327 = scalar_select %p326, %s323, 1
      %s328 = smul.addr %s327, 8
      %s329 = smul.addr %s325, 16
      %s330 = sadd.s32 %s328, %s329
      %s331 = smul.addr %s330, 4
      %s332 = scalar_lea.vmem %s4, %s331
      %s333 = smul.u32 2, %s20
      %v335 = vld [vmem:[%s322] sm:$0x1]
      %v336 = vsub.f32 1.0, %v335
      %v337 = vmul.f32 %v336, 1e+09
      %v338 = vld [vmem:[%s296] sm:$0xf]
      %v339 = vld [vmem:[%s296 + $0x4] sm:$0xf]
      %v340 = vld [vmem:[%s296 + $0x8] sm:$0xf]
      %v341 = vld [vmem:[%s296 + $0xc] sm:$0xf]
      %v342 = vld [vmem:[%s296 + $0x10] sm:$0xf]
      %v343 = vld [vmem:[%s296 + $0x14] sm:$0xf]
      %v344 = vld [vmem:[%s296 + $0x18] sm:$0xf]
      %v345 = vld [vmem:[%s296 + $0x1c] sm:$0xf]
      %v346 = vld [vmem:[%s307] sm:$0xf]
      %v347 = vld [vmem:[%s307 + $0x4] sm:$0xf]
      %v348 = vld [vmem:[%s307 + $0x8] sm:$0xf]
      %v349 = vld [vmem:[%s307 + $0xc] sm:$0xf]
      %v350 = vld [vmem:[%s307 + $0x10] sm:$0xf]
      %v351 = vld [vmem:[%s307 + $0x14] sm:$0xf]
      %v352 = vld [vmem:[%s307 + $0x18] sm:$0xf]
      %v353 = vld [vmem:[%s307 + $0x1c] sm:$0xf]
      %v354 = vld [vmem:[%s318] sm:$0xf]
      %v355 = vld [vmem:[%s318 + $0x4] sm:$0xf]
      %v356 = vld [vmem:[%s318 + $0x8] sm:$0xf]
      %v357 = vld [vmem:[%s318 + $0xc] sm:$0xf]
      %v358 = vld [vmem:[%s318 + $0x10] sm:$0xf]
      %v359 = vld [vmem:[%s318 + $0x14] sm:$0xf]
      %v360 = vld [vmem:[%s318 + $0x18] sm:$0xf]
      %v361 = vld [vmem:[%s318 + $0x1c] sm:$0xf]
      %v362 = vunpack.c.l.bf16 %v338
      %v363 = vunpack.c.l.bf16 %v339
      %v364 = vunpack.c.l.bf16 %v340
      %v365 = vunpack.c.l.bf16 %v341
      %v366 = vunpack.c.l.bf16 %v342
      %v367 = vunpack.c.l.bf16 %v343
      %v368 = vunpack.c.l.bf16 %v344
      %v369 = vunpack.c.l.bf16 %v345
      %vm370 = vcmask 261120
      %v371 = vsel %vm370, %v362, 0.0
      %v372 = vrot.slane %v371, 4
      %v373 = vadd.f32 %v371, %v372
      %v374 = vrot.slane %v373, 2
      %v375 = vadd.f32 %v373, %v374
      %v376 = vrot.slane %v375, 1
      %v377 = vadd.f32 %v375, %v376
      %v378 = vsel %vm370, %v363, 0.0
      %v379 = vrot.slane %v378, 4
      %v380 = vadd.f32 %v378, %v379
      %v381 = vrot.slane %v380, 2
      %v382 = vadd.f32 %v380, %v381
      %v383 = vrot.slane %v382, 1
      %v384 = vadd.f32 %v382, %v383
      %v385 = vsel %vm370, %v364, 0.0
      %v386 = vrot.slane %v385, 4
      %v387 = vadd.f32 %v385, %v386
      %v388 = vrot.slane %v387, 2
      %v389 = vadd.f32 %v387, %v388
      %v390 = vrot.slane %v389, 1
      %v391 = vadd.f32 %v389, %v390
      %v392 = vsel %vm370, %v365, 0.0
      %v393 = vrot.slane %v392, 4
      %v394 = vadd.f32 %v392, %v393
      %v395 = vrot.slane %v394, 2
      %v396 = vadd.f32 %v394, %v395
      %v397 = vrot.slane %v396, 1
      %v398 = vadd.f32 %v396, %v397
      %v399 = vsel %vm370, %v366, 0.0
      %v400 = vrot.slane %v399, 4
      %v401 = vadd.f32 %v399, %v400
      %v402 = vrot.slane %v401, 2
      %v403 = vadd.f32 %v401, %v402
      %v404 = vrot.slane %v403, 1
      %v405 = vadd.f32 %v403, %v404
      %v406 = vsel %vm370, %v367, 0.0
      %v407 = vrot.slane %v406, 4
      %v408 = vadd.f32 %v406, %v407
      %v409 = vrot.slane %v408, 2
      %v410 = vadd.f32 %v408, %v409
      %v411 = vrot.slane %v410, 1
      %v412 = vadd.f32 %v410, %v411
      %v413 = vsel %vm370, %v368, 0.0
      %v414 = vrot.slane %v413, 4
      %v415 = vadd.f32 %v413, %v414
      %v416 = vrot.slane %v415, 2
      %v417 = vadd.f32 %v415, %v416
      %v418 = vrot.slane %v417, 1
      %v419 = vadd.f32 %v417, %v418
      %v420 = vsel %vm370, %v369, 0.0
      %v421 = vrot.slane %v420, 4
      %v422 = vadd.f32 %v420, %v421
      %v423 = vrot.slane %v422, 2
      %v424 = vadd.f32 %v422, %v423
      %v425 = vrot.slane %v424, 1
      %v426 = vadd.f32 %v424, %v425
      %v427 = vmul.f32 %v377, 0.125
      %v428 = vmul.f32 %v384, 0.125
      %v429 = vmul.f32 %v391, 0.125
      %v430 = vmul.f32 %v398, 0.125
      %v431 = vmul.f32 %v405, 0.125
      %v432 = vmul.f32 %v412, 0.125
      %v433 = vmul.f32 %v419, 0.125
      %v434 = vmul.f32 %v426, 0.125
      %v435 = vunpack.c.l.bf16 %v346
      %v436 = vunpack.c.l.bf16 %v347
      %v437 = vunpack.c.l.bf16 %v348
      %v438 = vunpack.c.l.bf16 %v349
      %v439 = vunpack.c.l.bf16 %v350
      %v440 = vunpack.c.l.bf16 %v351
      %v441 = vunpack.c.l.bf16 %v352
      %v442 = vunpack.c.l.bf16 %v353
      %v443 = vsel %vm370, %v435, 0.0
      %v444 = vrot.slane %v443, 4
      %v445 = vadd.f32 %v443, %v444
      %v446 = vrot.slane %v445, 2
      %v447 = vadd.f32 %v445, %v446
      %v448 = vrot.slane %v447, 1
      %v449 = vadd.f32 %v447, %v448
      %v450 = vsel %vm370, %v436, 0.0
      %v451 = vrot.slane %v450, 4
      %v452 = vadd.f32 %v450, %v451
      %v453 = vrot.slane %v452, 2
      %v454 = vadd.f32 %v452, %v453
      %v455 = vrot.slane %v454, 1
      %v456 = vadd.f32 %v454, %v455
      %v457 = vsel %vm370, %v437, 0.0
      %v458 = vrot.slane %v457, 4
      %v459 = vadd.f32 %v457, %v458
      %v460 = vrot.slane %v459, 2
      %v461 = vadd.f32 %v459, %v460
      %v462 = vrot.slane %v461, 1
      %v463 = vadd.f32 %v461, %v462
      %v464 = vsel %vm370, %v438, 0.0
      %v465 = vrot.slane %v464, 4
      %v466 = vadd.f32 %v464, %v465
      %v467 = vrot.slane %v466, 2
      %v468 = vadd.f32 %v466, %v467
      %v469 = vrot.slane %v468, 1
      %v470 = vadd.f32 %v468, %v469
      %v471 = vsel %vm370, %v439, 0.0
      %v472 = vrot.slane %v471, 4
      %v473 = vadd.f32 %v471, %v472
      %v474 = vrot.slane %v473, 2
      %v475 = vadd.f32 %v473, %v474
      %v476 = vrot.slane %v475, 1
      %v477 = vadd.f32 %v475, %v476
      %v478 = vsel %vm370, %v440, 0.0
      %v479 = vrot.slane %v478, 4
      %v480 = vadd.f32 %v478, %v479
      %v481 = vrot.slane %v480, 2
      %v482 = vadd.f32 %v480, %v481
      %v483 = vrot.slane %v482, 1
      %v484 = vadd.f32 %v482, %v483
      %v485 = vsel %vm370, %v441, 0.0
      %v486 = vrot.slane %v485, 4
      %v487 = vadd.f32 %v485, %v486
      %v488 = vrot.slane %v487, 2
      %v489 = vadd.f32 %v487, %v488
      %v490 = vrot.slane %v489, 1
      %v491 = vadd.f32 %v489, %v490
      %v492 = vsel %vm370, %v442, 0.0
      %v493 = vrot.slane %v492, 4
      %v494 = vadd.f32 %v492, %v493
      %v495 = vrot.slane %v494, 2
      %v496 = vadd.f32 %v494, %v495
      %v497 = vrot.slane %v496, 1
      %v498 = vadd.f32 %v496, %v497
      %v499 = vmul.f32 %v449, 0.125
      %v500 = vmul.f32 %v456, 0.125
      %v501 = vmul.f32 %v463, 0.125
      %v502 = vmul.f32 %v470, 0.125
      %v503 = vmul.f32 %v477, 0.125
      %v504 = vmul.f32 %v484, 0.125
      %v505 = vmul.f32 %v491, 0.125
      %v506 = vmul.f32 %v498, 0.125
      %v507 = vpack.c.bf16 %v427, %v427
      %v508 = vpack.c.bf16 %v428, %v428
      %v509 = vpack.c.bf16 %v429, %v429
      %v510 = vpack.c.bf16 %v430, %v430
      %v511 = vpack.c.bf16 %v431, %v431
      %v512 = vpack.c.bf16 %v432, %v432
      %v513 = vpack.c.bf16 %v433, %v433
      %v514 = vpack.c.bf16 %v434, %v434
      %v515 = vpack.c.bf16 %v499, %v499
      %v516 = vpack.c.bf16 %v500, %v500
      %v517 = vpack.c.bf16 %v501, %v501
      %v518 = vpack.c.bf16 %v502, %v502
      %v519 = vpack.c.bf16 %v503, %v503
      %v520 = vpack.c.bf16 %v504, %v504
      %v521 = vpack.c.bf16 %v505, %v505
      %v522 = vpack.c.bf16 %v506, %v506
      %v531 = vunpack.c.l.b16 %v338
      %v532 = vunpack.c.l.b16 %v339
      %v533 = vunpack.c.l.b16 %v340
      %v534 = vunpack.c.l.b16 %v341
      %v535 = vunpack.c.l.b16 %v342
      %v536 = vunpack.c.l.b16 %v343
      %v537 = vunpack.c.l.b16 %v344
      %v538 = vunpack.c.l.b16 %v345
      %v539 = vpack.c.b16 %v532, %v531
      %v540 = vpack.c.b16 %v534, %v533
      %v541 = vpack.c.b16 %v536, %v535
      %v542 = vpack.c.b16 %v538, %v537
      %v551 = vunpack.c.l.b16 %v515
      %v552 = vunpack.c.l.b16 %v516
      %v553 = vunpack.c.l.b16 %v517
      %v554 = vunpack.c.l.b16 %v518
      %v555 = vunpack.c.l.b16 %v519
      %v556 = vunpack.c.l.b16 %v520
      %v557 = vunpack.c.l.b16 %v521
      %v558 = vunpack.c.l.b16 %v522
      %vm559 = vcmask 1041409
      %v560 = vsel %vm559, %v552, %v551
      %vm561 = vcmask 1042434
      %v562 = vsel %vm561, %v553, %v560
      %vm563 = vcmask 1043459
      %v564 = vsel %vm563, %v554, %v562
      %vm565 = vcmask 1044484
      %v566 = vsel %vm565, %v555, %v564
      %vm567 = vcmask 1045509
      %v568 = vsel %vm567, %v556, %v566
      %vm569 = vcmask 1046534
      %v570 = vsel %vm569, %v557, %v568
      %vm571 = vcmask 1047559
      %v572 = vsel %vm571, %v558, %v570
      %v573 = vpack.c.b16 %v572, %v572
      %v575 = vsel %vm370, %v539, 0
      %v578 = vsel %vm370, %v540, 0
      %v581 = vsel %vm370, %v541, 0
      %v584 = vsel %vm370, %v542, 0
      %v587 = vsel %vm370, %v573, 0
      %589 = vmatprep.subr.bf16.mxu0 0
      %590 = vmatpush1.bf16.xpose.msra.mxu0 %v587
      %591 = vmatprep.subr.bf16.mxu0 0
      %592 = vmatpush1.bf16.xpose.msra.mxu0 0
      %593 = vmatprep.subr.bf16.mxu0 0
      %594 = vmatpush1.bf16.xpose.msra.mxu0 0
      %595 = vmatprep.subr.bf16.mxu0 0
      %596 = vmatpush1.bf16.xpose.msra.mxu0 0
      %597 = vmatprep.subr.bf16.mxu0 0
      %598 = vmatpush1.bf16.xpose.msra.mxu0 0
      %599 = vmatprep.subr.bf16.mxu0 0
      %600 = vmatpush1.bf16.xpose.msra.mxu0 0
      %601 = vmatprep.subr.bf16.mxu0 0
      %602 = vmatpush1.bf16.xpose.msra.mxu0 0
      %603 = vmatprep.subr.bf16.mxu0 0
      %604 = vmatpush1.bf16.xpose.msra.mxu0 0
      %605 = vmatprep.subr.bf16.mxu0 0
      %606 = vmatpush1.bf16.xpose.msra.mxu0 0
      %607 = vmatprep.subr.bf16.mxu0 0
      %608 = vmatpush1.bf16.xpose.msra.mxu0 0
      %609 = vmatprep.subr.bf16.mxu0 0
      %610 = vmatpush1.bf16.xpose.msra.mxu0 0
      %611 = vmatprep.subr.bf16.mxu0 0
      %612 = vmatpush1.bf16.xpose.msra.mxu0 0
      %613 = vmatprep.subr.bf16.mxu0 0
      %614 = vmatpush1.bf16.xpose.msra.mxu0 0
      %615 = vmatprep.subr.bf16.mxu0 0
      %616 = vmatpush1.bf16.xpose.msra.mxu0 0
      %617 = vmatprep.subr.bf16.mxu0 0
      %618 = vmatpush1.bf16.xpose.msra.mxu0 0
      %619 = vmatprep.subr.bf16.mxu0 0
      %620 = vmatpush1.bf16.xpose.msra.mxu0 0
      %621 = vmatprep.mubr.bf16.mxu0 0
      %622 = vmatmul.mubr.bf16.gmra.mrb[0].mxu0 %v575
      %v623 = vpop.f32.mrb[0].mxu0
      %v624 = vadd.f32 0.0, %v623
      %v625 = vpop.f32.mrb[0].mxu0
      %v626 = vpop.f32.mrb[0].mxu0
      %v627 = vadd.f32 0.0, %v626
      %v628 = vpop.f32.mrb[0].mxu0
      %629 = vmatprep.mubr.bf16.mxu0 0
      %630 = vmatmul.mubr.bf16.gmra.mrb[0].mxu0 %v578
      %v631 = vpop.f32.mrb[0].mxu0
      %v632 = vadd.f32 0.0, %v631
      %v633 = vpop.f32.mrb[0].mxu0
      %v634 = vpop.f32.mrb[0].mxu0
      %v635 = vadd.f32 0.0, %v634
      %v636 = vpop.f32.mrb[0].mxu0
      %637 = vmatprep.mubr.bf16.mxu0 0
      %638 = vmatmul.mubr.bf16.gmra.mrb[0].mxu0 %v581
      %v639 = vpop.f32.mrb[0].mxu0
      %v640 = vadd.f32 0.0, %v639
      %v641 = vpop.f32.mrb[0].mxu0
      %v642 = vpop.f32.mrb[0].mxu0
      %v643 = vadd.f32 0.0, %v642
      %v644 = vpop.f32.mrb[0].mxu0
      %645 = vmatprep.mubr.bf16.mxu0 0
      %646 = vmatmul.mubr.bf16.gmra.mrb[0].mxu0 %v584
      %v647 = vpop.f32.mrb[0].mxu0
      %v648 = vadd.f32 0.0, %v647
      %v649 = vpop.f32.mrb[0].mxu0
      %v650 = vpop.f32.mrb[0].mxu0
      %v651 = vadd.f32 0.0, %v650
      %v652 = vpop.f32.mrb[0].mxu0
      %653 = vdwg.mxu0
      %vm654 = vcmask 64512
      %v655 = vsel %vm654, %v624, -inf
      %656 = vmax.xlane.f32.xlu0 %v655
      %v657 = vpop.xlane.xlu0 %656
      %v658 = vsel %vm654, %v627, -inf
      %659 = vmax.xlane.f32.xlu0 %v658
      %v660 = vpop.xlane.xlu0 %659
      %v661 = vsel %vm654, %v632, -inf
      %662 = vmax.xlane.f32.xlu0 %v661
      %v663 = vpop.xlane.xlu0 %662
      %v664 = vsel %vm654, %v635, -inf
      %665 = vmax.xlane.f32.xlu0 %v664
      %v666 = vpop.xlane.xlu0 %665
      %v667 = vsel %vm654, %v640, -inf
      %668 = vmax.xlane.f32.xlu0 %v667
      %v669 = vpop.xlane.xlu0 %668
      %v670 = vsel %vm654, %v643, -inf
      %671 = vmax.xlane.f32.xlu0 %v670
      %v672 = vpop.xlane.xlu0 %671
      %v673 = vsel %vm654, %v648, -inf
      %674 = vmax.xlane.f32.xlu0 %v673
      %v675 = vpop.xlane.xlu0 %674
      %v676 = vsel %vm654, %v651, -inf
      %677 = vmax.xlane.f32.xlu0 %v676
      %v678 = vpop.xlane.xlu0 %677
      %v679 = vsub.f32 %v624, %v657
      %v680 = vsub.f32 %v627, %v660
      %v681 = vsub.f32 %v632, %v663
      %v682 = vsub.f32 %v635, %v666
      %v683 = vsub.f32 %v640, %v669
      %v684 = vsub.f32 %v643, %v672
      %v685 = vsub.f32 %v648, %v675
      %v686 = vsub.f32 %v651, %v678
      %v687 = vmul.f32 %v679, 1.442695
      %v688 = vpow.pop %v687
      %v689 = vmul.f32 %v680, 1.442695
      %v690 = vpow.pop %v689
      %v691 = vmul.f32 %v681, 1.442695
      %v692 = vpow.pop %v691
      %v693 = vmul.f32 %v682, 1.442695
      %v694 = vpow.pop %v693
      %v695 = vmul.f32 %v683, 1.442695
      %v696 = vpow.pop %v695
      %v697 = vmul.f32 %v684, 1.442695
      %v698 = vpow.pop %v697
      %v699 = vmul.f32 %v685, 1.442695
      %v700 = vpow.pop %v699
      %v701 = vmul.f32 %v686, 1.442695
      %v702 = vpow.pop %v701
      %v703 = vsel %vm654, %v688, 0.0
      %704 = vadd.xlane.f32.xlu0 %v703
      %v705 = vpop.xlane.xlu0 %704
      %v706 = vsel %vm654, %v690, 0.0
      %707 = vadd.xlane.f32.xlu0 %v706
      %v708 = vpop.xlane.xlu0 %707
      %v709 = vsel %vm654, %v692, 0.0
      %710 = vadd.xlane.f32.xlu0 %v709
      %v711 = vpop.xlane.xlu0 %710
      %v712 = vsel %vm654, %v694, 0.0
      %713 = vadd.xlane.f32.xlu0 %v712
      %v714 = vpop.xlane.xlu0 %713
      %v715 = vsel %vm654, %v696, 0.0
      %716 = vadd.xlane.f32.xlu0 %v715
      %v717 = vpop.xlane.xlu0 %716
      %v718 = vsel %vm654, %v698, 0.0
      %719 = vadd.xlane.f32.xlu0 %v718
      %v720 = vpop.xlane.xlu0 %719
      %v721 = vsel %vm654, %v700, 0.0
      %722 = vadd.xlane.f32.xlu0 %v721
      %v723 = vpop.xlane.xlu0 %722
      %v724 = vsel %vm654, %v702, 0.0
      %725 = vadd.xlane.f32.xlu0 %v724
      %v726 = vpop.xlane.xlu0 %725
      %v727 = vrcp.pop %v705
      %v728 = vrcp.pop %v708
      %v729 = vrcp.pop %v711
      %v730 = vrcp.pop %v714
      %v731 = vrcp.pop %v717
      %v732 = vrcp.pop %v720
      %v733 = vrcp.pop %v723
      %v734 = vrcp.pop %v726
      %v735 = vmul.f32 %v688, %v727
      %v736 = vmul.f32 %v690, %v728
      %v737 = vmul.f32 %v692, %v729
      %v738 = vmul.f32 %v694, %v730
      %v739 = vmul.f32 %v696, %v731
      %v740 = vmul.f32 %v698, %v732
      %v741 = vmul.f32 %v700, %v733
      %v742 = vmul.f32 %v702, %v734
      %v751 = vsel %vm559, %v428, %v427
      %v752 = vsel %vm561, %v429, %v751
      %v753 = vsel %vm563, %v430, %v752
      %v754 = vsel %vm565, %v431, %v753
      %v755 = vsel %vm567, %v432, %v754
      %v756 = vsel %vm569, %v433, %v755
      %v757 = vsel %vm571, %v434, %v756
      %v766 = vsel %vm559, %v500, %v499
      %v767 = vsel %vm561, %v501, %v766
      %v768 = vsel %vm563, %v502, %v767
      %v769 = vsel %vm565, %v503, %v768
      %v770 = vsel %vm567, %v504, %v769
      %v771 = vsel %vm569, %v505, %v770
      %v772 = vsel %vm571, %v506, %v771
      %v773 = vsel %vm370, %v757, 0
      %v775 = vsel %vm370, %v772, 0
      %777 = vmatprep.subr.mxu0 0.0
      %778 = vmatpush1.xpose.msra.mxu0 %v775
      %779 = vmatprep.subr.mxu0 0.0
      %780 = vmatpush1.xpose.msra.mxu0 0.0
      %781 = vmatprep.subr.mxu0 0.0
      %782 = vmatpush1.xpose.msra.mxu0 0.0
      %783 = vmatprep.subr.mxu0 0.0
      %784 = vmatpush1.xpose.msra.mxu0 0.0
      %785 = vmatprep.subr.mxu0 0.0
      %786 = vmatpush1.xpose.msra.mxu0 0.0
      %787 = vmatprep.subr.mxu0 0.0
      %788 = vmatpush1.xpose.msra.mxu0 0.0
      %789 = vmatprep.subr.mxu0 0.0
      %790 = vmatpush1.xpose.msra.mxu0 0.0
      %791 = vmatprep.subr.mxu0 0.0
      %792 = vmatpush1.xpose.msra.mxu0 0.0
      %793 = vmatprep.subr.mxu0 0.0
      %794 = vmatpush1.xpose.msra.mxu0 0.0
      %795 = vmatprep.subr.mxu0 0.0
      %796 = vmatpush1.xpose.msra.mxu0 0.0
      %797 = vmatprep.subr.mxu0 0.0
      %798 = vmatpush1.xpose.msra.mxu0 0.0
      %799 = vmatprep.subr.mxu0 0.0
      %800 = vmatpush1.xpose.msra.mxu0 0.0
      %801 = vmatprep.subr.mxu0 0.0
      %802 = vmatpush1.xpose.msra.mxu0 0.0
      %803 = vmatprep.subr.mxu0 0.0
      %804 = vmatpush1.xpose.msra.mxu0 0.0
      %805 = vmatprep.subr.mxu0 0.0
      %806 = vmatpush1.xpose.msra.mxu0 0.0
      %807 = vmatprep.subr.mxu0 0.0
      %808 = vmatpush1.xpose.msra.mxu0 0.0
      %809 = vmatprep.subr.mxu0 0.0
      %810 = vmatpush1.xpose.msra.mxu0 0.0
      %811 = vmatprep.subr.mxu0 0.0
      %812 = vmatpush1.xpose.msra.mxu0 0.0
      %813 = vmatprep.subr.mxu0 0.0
      %814 = vmatpush1.xpose.msra.mxu0 0.0
      %815 = vmatprep.subr.mxu0 0.0
      %816 = vmatpush1.xpose.msra.mxu0 0.0
      %817 = vmatprep.subr.mxu0 0.0
      %818 = vmatpush1.xpose.msra.mxu0 0.0
      %819 = vmatprep.subr.mxu0 0.0
      %820 = vmatpush1.xpose.msra.mxu0 0.0
      %821 = vmatprep.subr.mxu0 0.0
      %822 = vmatpush1.xpose.msra.mxu0 0.0
      %823 = vmatprep.subr.mxu0 0.0
      %824 = vmatpush1.xpose.msra.mxu0 0.0
      %825 = vmatprep.subr.mxu0 0.0
      %826 = vmatpush1.xpose.msra.mxu0 0.0
      %827 = vmatprep.subr.mxu0 0.0
      %828 = vmatpush1.xpose.msra.mxu0 0.0
      %829 = vmatprep.subr.mxu0 0.0
      %830 = vmatpush1.xpose.msra.mxu0 0.0
      %831 = vmatprep.subr.mxu0 0.0
      %832 = vmatpush1.xpose.msra.mxu0 0.0
      %833 = vmatprep.subr.mxu0 0.0
      %834 = vmatpush1.xpose.msra.mxu0 0.0
      %835 = vmatprep.subr.mxu0 0.0
      %836 = vmatpush1.xpose.msra.mxu0 0.0
      %837 = vmatprep.subr.mxu0 0.0
      %838 = vmatpush1.xpose.msra.mxu0 0.0
      %839 = vmatprep.subr.mxu0 0.0
      %840 = vmatpush1.xpose.msra.mxu0 0.0
      %841 = vmatprep.mubr.f32.mxu0 0.0
      %842 = vmatmul.mubr.f32.gmra.mrb[0].mxu0 %v773
      %v843 = vpop.f32.mrb[0].mxu0
      %v844 = vadd.f32 0.0, %v843
      %v845 = vpop.f32.mrb[0].mxu0
      %846 = vdwg.mxu0
      %v847 = vsel %vm654, %v844, -inf
      %848 = vmax.xlane.f32.xlu0 %v847
      %v849 = vpop.xlane.xlu0 %848
      %v850 = vsub.f32 %v844, %v849
      %v851 = vmul.f32 %v850, 1.442695
      %v852 = vpow.pop %v851
      %v853 = vsel %vm654, %v852, 0.0
      %854 = vadd.xlane.f32.xlu0 %v853
      %v855 = vpop.xlane.xlu0 %854
      %v856 = vrcp.pop %v855
      %v857 = vmul.f32 %v852, %v856
      %v866 = vunpack.c.l.b16 %v507
      %v867 = vunpack.c.l.b16 %v508
      %v868 = vunpack.c.l.b16 %v509
      %v869 = vunpack.c.l.b16 %v510
      %v870 = vunpack.c.l.b16 %v511
      %v871 = vunpack.c.l.b16 %v512
      %v872 = vunpack.c.l.b16 %v513
      %v873 = vunpack.c.l.b16 %v514
      %v874 = vsel %vm559, %v867, %v866
      %v875 = vsel %vm561, %v868, %v874
      %v876 = vsel %vm563, %v869, %v875
      %v877 = vsel %vm565, %v870, %v876
      %v878 = vsel %vm567, %v871, %v877
      %v879 = vsel %vm569, %v872, %v878
      %v880 = vsel %vm571, %v873, %v879
      %v881 = vpack.c.b16 %v880, %v880
      %v890 = vunpack.c.l.b16 %v346
      %v891 = vunpack.c.l.b16 %v347
      %v892 = vunpack.c.l.b16 %v348
      %v893 = vunpack.c.l.b16 %v349
      %v894 = vunpack.c.l.b16 %v350
      %v895 = vunpack.c.l.b16 %v351
      %v896 = vunpack.c.l.b16 %v352
      %v897 = vunpack.c.l.b16 %v353
      %v898 = vpack.c.b16 %v891, %v890
      %v899 = vpack.c.b16 %v893, %v892
      %v900 = vpack.c.b16 %v895, %v894
      %v901 = vpack.c.b16 %v897, %v896
      %v903 = vsel %vm370, %v881, 0
      %v906 = vsel %vm370, %v898, 0
      %v909 = vsel %vm370, %v899, 0
      %v912 = vsel %vm370, %v900, 0
      %v915 = vsel %vm370, %v901, 0
      %917 = vmatprep.subr.bf16.mxu0 0
      %918 = vmatpush1.bf16.xpose.msra.mxu0 %v906
      %919 = vmatprep.subr.bf16.mxu0 0
      %920 = vmatpush1.bf16.xpose.msra.mxu0 %v909
      %921 = vmatprep.subr.bf16.mxu0 0
      %922 = vmatpush1.bf16.xpose.msra.mxu0 %v912
      %923 = vmatprep.subr.bf16.mxu0 0
      %924 = vmatpush1.bf16.xpose.msra.mxu0 %v915
      %925 = vmatprep.subr.bf16.mxu0 0
      %926 = vmatpush1.bf16.xpose.msra.mxu0 0
      %927 = vmatprep.subr.bf16.mxu0 0
      %928 = vmatpush1.bf16.xpose.msra.mxu0 0
      %929 = vmatprep.subr.bf16.mxu0 0
      %930 = vmatpush1.bf16.xpose.msra.mxu0 0
      %931 = vmatprep.subr.bf16.mxu0 0
      %932 = vmatpush1.bf16.xpose.msra.mxu0 0
      %933 = vmatprep.subr.bf16.mxu0 0
      %934 = vmatpush1.bf16.xpose.msra.mxu0 0
      %935 = vmatprep.subr.bf16.mxu0 0
      %936 = vmatpush1.bf16.xpose.msra.mxu0 0
      %937 = vmatprep.subr.bf16.mxu0 0
      %938 = vmatpush1.bf16.xpose.msra.mxu0 0
      %939 = vmatprep.subr.bf16.mxu0 0
      %940 = vmatpush1.bf16.xpose.msra.mxu0 0
      %941 = vmatprep.subr.bf16.mxu0 0
      %942 = vmatpush1.bf16.xpose.msra.mxu0 0
      %943 = vmatprep.subr.bf16.mxu0 0
      %944 = vmatpush1.bf16.xpose.msra.mxu0 0
      %945 = vmatprep.subr.bf16.mxu0 0
      %946 = vmatpush1.bf16.xpose.msra.mxu0 0
      %947 = vmatprep.subr.bf16.mxu0 0
      %948 = vmatpush1.bf16.xpose.msra.mxu0 0
      %949 = vmatprep.mubr.bf16.mxu0 0
      %950 = vmatmul.mubr.bf16.gmra.mrb[0].mxu0 %v903
      %v951 = vpop.f32.mrb[0].mxu0
      %v952 = vadd.f32 0.0, %v951
      %v953 = vpop.f32.mrb[0].mxu0
      %v954 = vpop.f32.mrb[0].mxu0
      %v955 = vpop.f32.mrb[0].mxu0
      %956 = vdwg.mxu0
      %v958 = vlaneseq
      %v959 = vshrl.u32 %v958, 7
      %v960 = vsub.s32 0, %v959
      %v961 = vrot.slane %v337, %v960
      %v963 = vsub.f32 %v952, %v961
      %vm964 = vcmask 523264
      %v965 = vsel %vm964, %v963, -inf
      %966 = vmax.xlane.f32.xlu0 %v965
      %v967 = vpop.xlane.xlu0 %966
      %v968 = vsub.f32 %v963, %v967
      %v969 = vmul.f32 %v968, 1.442695
      %v970 = vpow.pop %v969
      %v971 = vsel %vm964, %v970, 0.0
      %972 = vadd.xlane.f32.xlu0 %v971
      %v973 = vpop.xlane.xlu0 %972
      %v974 = vrcp.pop %v973
      %v975 = vmul.f32 %v970, %v974
      %v976 = vlaneseq
      %v977 = vshrl.u32 %v976, 7
      %v978 = vlaneseq
      %v979 = vand.u32 %v978, 127
      %vm980 = vcmp.eq.s32.totalorder %v977, %v979
      %v981 = vsel %vm980, 1, 0
      %v982 = vcvt.s32.f32 %v981
      %v983 = vsel %vm654, %v857, 0.0
      %v984 = vrot.slane %v983, 4
      %v985 = vadd.f32 %v983, %v984
      %v986 = vrot.slane %v985, 2
      %v987 = vadd.f32 %v985, %v986
      %v988 = vrot.slane %v987, 1
      %v989 = vadd.f32 %v987, %v988
      %v990 = vsel %vm654, %v989, -inf
      %991 = vmax.xlane.f32.xlu0 %v990
      %v992 = vpop.xlane.xlu0 %991
      %s993 = vtos %v992
      %994 = vxpose.xlu0.b32.start [1/16] %v857, 128
      %995 = vxpose.xlu0.b32.cont [2/16] 0.0, 128
      %996 = vxpose.xlu0.b32.cont [3/16] 0.0, 128
      %997 = vxpose.xlu0.b32.cont [4/16] 0.0, 128
      %998 = vxpose.xlu0.b32.cont [5/16] 0.0, 128
      %999 = vxpose.xlu0.b32.cont [6/16] 0.0, 128
      %1000 = vxpose.xlu0.b32.cont [7/16] 0.0, 128
      %1001 = vxpose.xlu0.b32.cont [8/16] 0.0, 128
      %1002 = vxpose.xlu0.b32.cont [9/16] 0.0, 128
      %1003 = vxpose.xlu0.b32.cont [10/16] 0.0, 128
      %1004 = vxpose.xlu0.b32.cont [11/16] 0.0, 128
      %1005 = vxpose.xlu0.b32.cont [12/16] 0.0, 128
      %1006 = vxpose.xlu0.b32.cont [13/16] 0.0, 128
      %1007 = vxpose.xlu0.b32.cont [14/16] 0.0, 128
      %1008 = vxpose.xlu0.b32.cont [15/16] 0.0, 128
      %1009 = vxpose.xlu0.b32.end [16/16] 0.0, 128
      %v1010 = vpop.trf.xlu0
      %v1011 = vpop.trf.xlu0
      %v1012 = vpop.trf.xlu0
      %v1013 = vpop.trf.xlu0
      %v1014 = vpop.trf.xlu0
      %v1015 = vpop.trf.xlu0
      %v1016 = vpop.trf.xlu0
      %v1017 = vpop.trf.xlu0
      %v1018 = vpop.trf.xlu0
      %v1019 = vpop.trf.xlu0
      %v1020 = vpop.trf.xlu0
      %v1021 = vpop.trf.xlu0
      %v1022 = vpop.trf.xlu0
      %v1023 = vpop.trf.xlu0
      %v1024 = vpop.trf.xlu0
      %v1025 = vpop.trf.xlu0
      %v1026 = vstv %s993
      %v1027 = vrcp.pop %v1026
      %v1028 = vmul.f32 %v1010, %v1027
      %v1030 = vsel %vm654, %v857, 0
      %1032 = vmatprep.subr.mxu0 0.0
      %1033 = vmatpush1.msra.mxu0 %v1028
      %1034 = vmatprep.subr.mxu0 0.0
      %1035 = vmatpush1.msra.mxu0 0.0
      %1036 = vmatprep.subr.mxu0 0.0
      %1037 = vmatpush1.msra.mxu0 0.0
      %1038 = vmatprep.subr.mxu0 0.0
      %1039 = vmatpush1.msra.mxu0 0.0
      %1040 = vmatprep.subr.mxu0 0.0
      %1041 = vmatpush1.msra.mxu0 0.0
      %1042 = vmatprep.subr.mxu0 0.0
      %1043 = vmatpush1.msra.mxu0 0.0
      %1044 = vmatprep.subr.mxu0 0.0
      %1045 = vmatpush1.msra.mxu0 0.0
      %1046 = vmatprep.subr.mxu0 0.0
      %1047 = vmatpush1.msra.mxu0 0.0
      %1048 = vmatprep.subr.mxu0 0.0
      %1049 = vmatpush1.msra.mxu0 0.0
      %1050 = vmatprep.subr.mxu0 0.0
      %1051 = vmatpush1.msra.mxu0 0.0
      %1052 = vmatprep.subr.mxu0 0.0
      %1053 = vmatpush1.msra.mxu0 0.0
      %1054 = vmatprep.subr.mxu0 0.0
      %1055 = vmatpush1.msra.mxu0 0.0
      %1056 = vmatprep.subr.mxu0 0.0
      %1057 = vmatpush1.msra.mxu0 0.0
      %1058 = vmatprep.subr.mxu0 0.0
      %1059 = vmatpush1.msra.mxu0 0.0
      %1060 = vmatprep.subr.mxu0 0.0
      %1061 = vmatpush1.msra.mxu0 0.0
      %1062 = vmatprep.subr.mxu0 0.0
      %1063 = vmatpush1.msra.mxu0 0.0
      %1064 = vmatprep.subr.mxu0 0.0
      %1065 = vmatpush1.msra.mxu0 0.0
      %1066 = vmatprep.subr.mxu0 0.0
      %1067 = vmatpush1.msra.mxu0 0.0
      %1068 = vmatprep.subr.mxu0 0.0
      %1069 = vmatpush1.msra.mxu0 0.0
      %1070 = vmatprep.subr.mxu0 0.0
      %1071 = vmatpush1.msra.mxu0 0.0
      %1072 = vmatprep.subr.mxu0 0.0
      %1073 = vmatpush1.msra.mxu0 0.0
      %1074 = vmatprep.subr.mxu0 0.0
      %1075 = vmatpush1.msra.mxu0 0.0
      %1076 = vmatprep.subr.mxu0 0.0
      %1077 = vmatpush1.msra.mxu0 0.0
      %1078 = vmatprep.subr.mxu0 0.0
      %1079 = vmatpush1.msra.mxu0 0.0
      %1080 = vmatprep.subr.mxu0 0.0
      %1081 = vmatpush1.msra.mxu0 0.0
      %1082 = vmatprep.subr.mxu0 0.0
      %1083 = vmatpush1.msra.mxu0 0.0
      %1084 = vmatprep.subr.mxu0 0.0
      %1085 = vmatpush1.msra.mxu0 0.0
      %1086 = vmatprep.subr.mxu0 0.0
      %1087 = vmatpush1.msra.mxu0 0.0
      %1088 = vmatprep.subr.mxu0 0.0
      %1089 = vmatpush1.msra.mxu0 0.0
      %1090 = vmatprep.subr.mxu0 0.0
      %1091 = vmatpush1.msra.mxu0 0.0
      %1092 = vmatprep.subr.mxu0 0.0
      %1093 = vmatpush1.msra.mxu0 0.0
      %1094 = vmatprep.subr.mxu0 0.0
      %1095 = vmatpush1.msra.mxu0 0.0
      %1096 = vmatprep.mubr.f32.mxu0 0.0
      %1097 = vmatmul.mubr.f32.gmra.mrb[0].mxu0 %v1030
      %v1098 = vpop.f32.mrb[0].mxu0
      %v1099 = vadd.f32 0.0, %v1098
      %v1100 = vpop.f32.mrb[0].mxu0
      %1101 = vdwg.mxu0
      %v1102 = vmul.f32 %v982, 7.0
      %v1103 = vsub.f32 %v1102, %v1099
      %v1104 = vmul.f32 %v982, 15.0
      %v1106 = vsel %vm654, %v1099, 0
      %1108 = vmatprep.subr.mxu0 0.0
      %1109 = vmatpush1.msra.mxu0 %v1103
      %1110 = vmatprep.subr.mxu0 0.0
      %1111 = vmatpush1.msra.mxu0 0.0
      %1112 = vmatprep.subr.mxu0 0.0
      %1113 = vmatpush1.msra.mxu0 0.0
      %1114 = vmatprep.subr.mxu0 0.0
      %1115 = vmatpush1.msra.mxu0 0.0
      %1116 = vmatprep.subr.mxu0 0.0
      %1117 = vmatpush1.msra.mxu0 0.0
      %1118 = vmatprep.subr.mxu0 0.0
      %1119 = vmatpush1.msra.mxu0 0.0
      %1120 = vmatprep.subr.mxu0 0.0
      %1121 = vmatpush1.msra.mxu0 0.0
      %1122 = vmatprep.subr.mxu0 0.0
      %1123 = vmatpush1.msra.mxu0 0.0
      %1124 = vmatprep.subr.mxu0 0.0
      %1125 = vmatpush1.msra.mxu0 0.0
      %1126 = vmatprep.subr.mxu0 0.0
      %1127 = vmatpush1.msra.mxu0 0.0
      %1128 = vmatprep.subr.mxu0 0.0
      %1129 = vmatpush1.msra.mxu0 0.0
      %1130 = vmatprep.subr.mxu0 0.0
      %1131 = vmatpush1.msra.mxu0 0.0
      %1132 = vmatprep.subr.mxu0 0.0
      %1133 = vmatpush1.msra.mxu0 0.0
      %1134 = vmatprep.subr.mxu0 0.0
      %1135 = vmatpush1.msra.mxu0 0.0
      %1136 = vmatprep.subr.mxu0 0.0
      %1137 = vmatpush1.msra.mxu0 0.0
      %1138 = vmatprep.subr.mxu0 0.0
      %1139 = vmatpush1.msra.mxu0 0.0
      %1140 = vmatprep.subr.mxu0 0.0
      %1141 = vmatpush1.msra.mxu0 0.0
      %1142 = vmatprep.subr.mxu0 0.0
      %1143 = vmatpush1.msra.mxu0 0.0
      %1144 = vmatprep.subr.mxu0 0.0
      %1145 = vmatpush1.msra.mxu0 0.0
      %1146 = vmatprep.subr.mxu0 0.0
      %1147 = vmatpush1.msra.mxu0 0.0
      %1148 = vmatprep.subr.mxu0 0.0
      %1149 = vmatpush1.msra.mxu0 0.0
      %1150 = vmatprep.subr.mxu0 0.0
      %1151 = vmatpush1.msra.mxu0 0.0
      %1152 = vmatprep.subr.mxu0 0.0
      %1153 = vmatpush1.msra.mxu0 0.0
      %1154 = vmatprep.subr.mxu0 0.0
      %1155 = vmatpush1.msra.mxu0 0.0
      %1156 = vmatprep.subr.mxu0 0.0
      %1157 = vmatpush1.msra.mxu0 0.0
      %1158 = vmatprep.subr.mxu0 0.0
      %1159 = vmatpush1.msra.mxu0 0.0
      %1160 = vmatprep.subr.mxu0 0.0
      %1161 = vmatpush1.msra.mxu0 0.0
      %1162 = vmatprep.subr.mxu0 0.0
      %1163 = vmatpush1.msra.mxu0 0.0
      %1164 = vmatprep.subr.mxu0 0.0
      %1165 = vmatpush1.msra.mxu0 0.0
      %1166 = vmatprep.subr.mxu0 0.0
      %1167 = vmatpush1.msra.mxu0 0.0
      %1168 = vmatprep.subr.mxu0 0.0
      %1169 = vmatpush1.msra.mxu0 0.0
      %1170 = vmatprep.subr.mxu0 0.0
      %1171 = vmatpush1.msra.mxu0 0.0
      %1172 = vmatprep.mubr.f32.mxu0 0.0
      %1173 = vmatmul.mubr.f32.gmra.mrb[0].mxu0 %v1106
      %v1174 = vpop.f32.mrb[0].mxu0
      %v1175 = vadd.f32 0.0, %v1174
      %v1176 = vpop.f32.mrb[0].mxu0
      %1177 = vdwg.mxu0
      %v1178 = vsub.f32 %v1104, %v1175
      %v1179 = vmul.f32 %v982, 13.0
      %1180 = vmatprep.subr.mxu0 0.0
      %1181 = vmatpush1.msra.mxu0 %v1178
      %1182 = vmatprep.subr.mxu0 0.0
      %1183 = vmatpush1.msra.mxu0 0.0
      %1184 = vmatprep.subr.mxu0 0.0
      %1185 = vmatpush1.msra.mxu0 0.0
      %1186 = vmatprep.subr.mxu0 0.0
      %1187 = vmatpush1.msra.mxu0 0.0
      %1188 = vmatprep.subr.mxu0 0.0
      %1189 = vmatpush1.msra.mxu0 0.0
      %1190 = vmatprep.subr.mxu0 0.0
      %1191 = vmatpush1.msra.mxu0 0.0
      %1192 = vmatprep.subr.mxu0 0.0
      %1193 = vmatpush1.msra.mxu0 0.0
      %1194 = vmatprep.subr.mxu0 0.0
      %1195 = vmatpush1.msra.mxu0 0.0
      %1196 = vmatprep.subr.mxu0 0.0
      %1197 = vmatpush1.msra.mxu0 0.0
      %1198 = vmatprep.subr.mxu0 0.0
      %1199 = vmatpush1.msra.mxu0 0.0
      %1200 = vmatprep.subr.mxu0 0.0
      %1201 = vmatpush1.msra.mxu0 0.0
      %1202 = vmatprep.subr.mxu0 0.0
      %1203 = vmatpush1.msra.mxu0 0.0
      %1204 = vmatprep.subr.mxu0 0.0
      %1205 = vmatpush1.msra.mxu0 0.0
      %1206 = vmatprep.subr.mxu0 0.0
      %1207 = vmatpush1.msra.mxu0 0.0
      %1208 = vmatprep.subr.mxu0 0.0
      %1209 = vmatpush1.msra.mxu0 0.0
      %1210 = vmatprep.subr.mxu0 0.0
      %1211 = vmatpush1.msra.mxu0 0.0
      %1212 = vmatprep.subr.mxu0 0.0
      %1213 = vmatpush1.msra.mxu0 0.0
      %1214 = vmatprep.subr.mxu0 0.0
      %1215 = vmatpush1.msra.mxu0 0.0
      %1216 = vmatprep.subr.mxu0 0.0
      %1217 = vmatpush1.msra.mxu0 0.0
      %1218 = vmatprep.subr.mxu0 0.0
      %1219 = vmatpush1.msra.mxu0 0.0
      %1220 = vmatprep.subr.mxu0 0.0
      %1221 = vmatpush1.msra.mxu0 0.0
      %1222 = vmatprep.subr.mxu0 0.0
      %1223 = vmatpush1.msra.mxu0 0.0
      %1224 = vmatprep.subr.mxu0 0.0
      %1225 = vmatpush1.msra.mxu0 0.0
      %1226 = vmatprep.subr.mxu0 0.0
      %1227 = vmatpush1.msra.mxu0 0.0
      %1228 = vmatprep.subr.mxu0 0.0
      %1229 = vmatpush1.msra.mxu0 0.0
      %1230 = vmatprep.subr.mxu0 0.0
      %1231 = vmatpush1.msra.mxu0 0.0
      %1232 = vmatprep.subr.mxu0 0.0
      %1233 = vmatpush1.msra.mxu0 0.0
      %1234 = vmatprep.subr.mxu0 0.0
      %1235 = vmatpush1.msra.mxu0 0.0
      %1236 = vmatprep.subr.mxu0 0.0
      %1237 = vmatpush1.msra.mxu0 0.0
      %1238 = vmatprep.subr.mxu0 0.0
      %1239 = vmatpush1.msra.mxu0 0.0
      %1240 = vmatprep.subr.mxu0 0.0
      %1241 = vmatpush1.msra.mxu0 0.0
      %1242 = vmatprep.subr.mxu0 0.0
      %1243 = vmatpush1.msra.mxu0 0.0
      %1244 = vmatprep.mubr.f32.mxu0 0.0
      %1245 = vmatmul.mubr.f32.gmra.mrb[0].mxu0 %v1106
      %v1246 = vpop.f32.mrb[0].mxu0
      %v1247 = vadd.f32 0.0, %v1246
      %v1248 = vpop.f32.mrb[0].mxu0
      %1249 = vdwg.mxu0
      %v1250 = vsub.f32 %v1179, %v1247
      %v1251 = vmul.f32 %v1028, 0.25
      %v1253 = vsel %vm654, %v1251, 0
      %1255 = vmatprep.subr.mxu0 0.0
      %1256 = vmatpush1.msra.mxu0 %v1250
      %1257 = vmatprep.subr.mxu0 0.0
      %1258 = vmatpush1.msra.mxu0 0.0
      %1259 = vmatprep.subr.mxu0 0.0
      %1260 = vmatpush1.msra.mxu0 0.0
      %1261 = vmatprep.subr.mxu0 0.0
      %1262 = vmatpush1.msra.mxu0 0.0
      %1263 = vmatprep.subr.mxu0 0.0
      %1264 = vmatpush1.msra.mxu0 0.0
      %1265 = vmatprep.subr.mxu0 0.0
      %1266 = vmatpush1.msra.mxu0 0.0
      %1267 = vmatprep.subr.mxu0 0.0
      %1268 = vmatpush1.msra.mxu0 0.0
      %1269 = vmatprep.subr.mxu0 0.0
      %1270 = vmatpush1.msra.mxu0 0.0
      %1271 = vmatprep.subr.mxu0 0.0
      %1272 = vmatpush1.msra.mxu0 0.0
      %1273 = vmatprep.subr.mxu0 0.0
      %1274 = vmatpush1.msra.mxu0 0.0
      %1275 = vmatprep.subr.mxu0 0.0
      %1276 = vmatpush1.msra.mxu0 0.0
      %1277 = vmatprep.subr.mxu0 0.0
      %1278 = vmatpush1.msra.mxu0 0.0
      %1279 = vmatprep.subr.mxu0 0.0
      %1280 = vmatpush1.msra.mxu0 0.0
      %1281 = vmatprep.subr.mxu0 0.0
      %1282 = vmatpush1.msra.mxu0 0.0
      %1283 = vmatprep.subr.mxu0 0.0
      %1284 = vmatpush1.msra.mxu0 0.0
      %1285 = vmatprep.subr.mxu0 0.0
      %1286 = vmatpush1.msra.mxu0 0.0
      %1287 = vmatprep.subr.mxu0 0.0
      %1288 = vmatpush1.msra.mxu0 0.0
      %1289 = vmatprep.subr.mxu0 0.0
      %1290 = vmatpush1.msra.mxu0 0.0
      %1291 = vmatprep.subr.mxu0 0.0
      %1292 = vmatpush1.msra.mxu0 0.0
      %1293 = vmatprep.subr.mxu0 0.0
      %1294 = vmatpush1.msra.mxu0 0.0
      %1295 = vmatprep.subr.mxu0 0.0
      %1296 = vmatpush1.msra.mxu0 0.0
      %1297 = vmatprep.subr.mxu0 0.0
      %1298 = vmatpush1.msra.mxu0 0.0
      %1299 = vmatprep.subr.mxu0 0.0
      %1300 = vmatpush1.msra.mxu0 0.0
      %1301 = vmatprep.subr.mxu0 0.0
      %1302 = vmatpush1.msra.mxu0 0.0
      %1303 = vmatprep.subr.mxu0 0.0
      %1304 = vmatpush1.msra.mxu0 0.0
      %1305 = vmatprep.subr.mxu0 0.0
      %1306 = vmatpush1.msra.mxu0 0.0
      %1307 = vmatprep.subr.mxu0 0.0
      %1308 = vmatpush1.msra.mxu0 0.0
      %1309 = vmatprep.subr.mxu0 0.0
      %1310 = vmatpush1.msra.mxu0 0.0
      %1311 = vmatprep.subr.mxu0 0.0
      %1312 = vmatpush1.msra.mxu0 0.0
      %1313 = vmatprep.subr.mxu0 0.0
      %1314 = vmatpush1.msra.mxu0 0.0
      %1315 = vmatprep.subr.mxu0 0.0
      %1316 = vmatpush1.msra.mxu0 0.0
      %1317 = vmatprep.subr.mxu0 0.0
      %1318 = vmatpush1.msra.mxu0 0.0
      %1319 = vmatprep.mubr.f32.mxu0 0.0
      %1320 = vmatmul.mubr.f32.gmra.mrb[0].mxu0 %v1253
      %v1321 = vpop.f32.mrb[0].mxu0
      %v1322 = vadd.f32 0.0, %v1321
      %v1323 = vpop.f32.mrb[0].mxu0
      %1324 = vdwg.mxu0
      %1325 = vmatprep.subr.mxu0 0.0
      %1326 = vmatpush1.msra.mxu0 %v1322
      %1327 = vmatprep.subr.mxu0 0.0
      %1328 = vmatpush1.msra.mxu0 0.0
      %1329 = vmatprep.subr.mxu0 0.0
      %1330 = vmatpush1.msra.mxu0 0.0
      %1331 = vmatprep.subr.mxu0 0.0
      %1332 = vmatpush1.msra.mxu0 0.0
      %1333 = vmatprep.subr.mxu0 0.0
      %1334 = vmatpush1.msra.mxu0 0.0
      %1335 = vmatprep.subr.mxu0 0.0
      %1336 = vmatpush1.msra.mxu0 0.0
      %1337 = vmatprep.subr.mxu0 0.0
      %1338 = vmatpush1.msra.mxu0 0.0
      %1339 = vmatprep.subr.mxu0 0.0
      %1340 = vmatpush1.msra.mxu0 0.0
      %1341 = vmatprep.subr.mxu0 0.0
      %1342 = vmatpush1.msra.mxu0 0.0
      %1343 = vmatprep.subr.mxu0 0.0
      %1344 = vmatpush1.msra.mxu0 0.0
      %1345 = vmatprep.subr.mxu0 0.0
      %1346 = vmatpush1.msra.mxu0 0.0
      %1347 = vmatprep.subr.mxu0 0.0
      %1348 = vmatpush1.msra.mxu0 0.0
      %1349 = vmatprep.subr.mxu0 0.0
      %1350 = vmatpush1.msra.mxu0 0.0
      %1351 = vmatprep.subr.mxu0 0.0
      %1352 = vmatpush1.msra.mxu0 0.0
      %1353 = vmatprep.subr.mxu0 0.0
      %1354 = vmatpush1.msra.mxu0 0.0
      %1355 = vmatprep.subr.mxu0 0.0
      %1356 = vmatpush1.msra.mxu0 0.0
      %1357 = vmatprep.subr.mxu0 0.0
      %1358 = vmatpush1.msra.mxu0 0.0
      %1359 = vmatprep.subr.mxu0 0.0
      %1360 = vmatpush1.msra.mxu0 0.0
      %1361 = vmatprep.subr.mxu0 0.0
      %1362 = vmatpush1.msra.mxu0 0.0
      %1363 = vmatprep.subr.mxu0 0.0
      %1364 = vmatpush1.msra.mxu0 0.0
      %1365 = vmatprep.subr.mxu0 0.0
      %1366 = vmatpush1.msra.mxu0 0.0
      %1367 = vmatprep.subr.mxu0 0.0
      %1368 = vmatpush1.msra.mxu0 0.0
      %1369 = vmatprep.subr.mxu0 0.0
      %1370 = vmatpush1.msra.mxu0 0.0
      %1371 = vmatprep.subr.mxu0 0.0
      %1372 = vmatpush1.msra.mxu0 0.0
      %1373 = vmatprep.subr.mxu0 0.0
      %1374 = vmatpush1.msra.mxu0 0.0
      %1375 = vmatprep.subr.mxu0 0.0
      %1376 = vmatpush1.msra.mxu0 0.0
      %1377 = vmatprep.subr.mxu0 0.0
      %1378 = vmatpush1.msra.mxu0 0.0
      %1379 = vmatprep.subr.mxu0 0.0
      %1380 = vmatpush1.msra.mxu0 0.0
      %1381 = vmatprep.subr.mxu0 0.0
      %1382 = vmatpush1.msra.mxu0 0.0
      %1383 = vmatprep.subr.mxu0 0.0
      %1384 = vmatpush1.msra.mxu0 0.0
      %1385 = vmatprep.subr.mxu0 0.0
      %1386 = vmatpush1.msra.mxu0 0.0
      %1387 = vmatprep.subr.mxu0 0.0
      %1388 = vmatpush1.msra.mxu0 0.0
      %1389 = vmatprep.mubr.f32.mxu0 0.0
      %1390 = vmatmul.mubr.f32.gmra.mrb[0].mxu0 %v1030
      %v1391 = vpop.f32.mrb[0].mxu0
      %v1392 = vadd.f32 0.0, %v1391
      %v1393 = vpop.f32.mrb[0].mxu0
      %1394 = vdwg.mxu0
      %v1395 = vsub.f32 %v1102, %v1392
      %v1397 = vsel %vm654, %v1392, 0
      %1399 = vmatprep.subr.mxu0 0.0
      %1400 = vmatpush1.msra.mxu0 %v1395
      %1401 = vmatprep.subr.mxu0 0.0
      %1402 = vmatpush1.msra.mxu0 0.0
      %1403 = vmatprep.subr.mxu0 0.0
      %1404 = vmatpush1.msra.mxu0 0.0
      %1405 = vmatprep.subr.mxu0 0.0
      %1406 = vmatpush1.msra.mxu0 0.0
      %1407 = vmatprep.subr.mxu0 0.0
      %1408 = vmatpush1.msra.mxu0 0.0
      %1409 = vmatprep.subr.mxu0 0.0
      %1410 = vmatpush1.msra.mxu0 0.0
      %1411 = vmatprep.subr.mxu0 0.0
      %1412 = vmatpush1.msra.mxu0 0.0
      %1413 = vmatprep.subr.mxu0 0.0
      %1414 = vmatpush1.msra.mxu0 0.0
      %1415 = vmatprep.subr.mxu0 0.0
      %1416 = vmatpush1.msra.mxu0 0.0
      %1417 = vmatprep.subr.mxu0 0.0
      %1418 = vmatpush1.msra.mxu0 0.0
      %1419 = vmatprep.subr.mxu0 0.0
      %1420 = vmatpush1.msra.mxu0 0.0
      %1421 = vmatprep.subr.mxu0 0.0
      %1422 = vmatpush1.msra.mxu0 0.0
      %1423 = vmatprep.subr.mxu0 0.0
      %1424 = vmatpush1.msra.mxu0 0.0
      %1425 = vmatprep.subr.mxu0 0.0
      %1426 = vmatpush1.msra.mxu0 0.0
      %1427 = vmatprep.subr.mxu0 0.0
      %1428 = vmatpush1.msra.mxu0 0.0
      %1429 = vmatprep.subr.mxu0 0.0
      %1430 = vmatpush1.msra.mxu0 0.0
      %1431 = vmatprep.subr.mxu0 0.0
      %1432 = vmatpush1.msra.mxu0 0.0
      %1433 = vmatprep.subr.mxu0 0.0
      %1434 = vmatpush1.msra.mxu0 0.0
      %1435 = vmatprep.subr.mxu0 0.0
      %1436 = vmatpush1.msra.mxu0 0.0
      %1437 = vmatprep.subr.mxu0 0.0
      %1438 = vmatpush1.msra.mxu0 0.0
      %1439 = vmatprep.subr.mxu0 0.0
      %1440 = vmatpush1.msra.mxu0 0.0
      %1441 = vmatprep.subr.mxu0 0.0
      %1442 = vmatpush1.msra.mxu0 0.0
      %1443 = vmatprep.subr.mxu0 0.0
      %1444 = vmatpush1.msra.mxu0 0.0
      %1445 = vmatprep.subr.mxu0 0.0
      %1446 = vmatpush1.msra.mxu0 0.0
      %1447 = vmatprep.subr.mxu0 0.0
      %1448 = vmatpush1.msra.mxu0 0.0
      %1449 = vmatprep.subr.mxu0 0.0
      %1450 = vmatpush1.msra.mxu0 0.0
      %1451 = vmatprep.subr.mxu0 0.0
      %1452 = vmatpush1.msra.mxu0 0.0
      %1453 = vmatprep.subr.mxu0 0.0
      %1454 = vmatpush1.msra.mxu0 0.0
      %1455 = vmatprep.subr.mxu0 0.0
      %1456 = vmatpush1.msra.mxu0 0.0
      %1457 = vmatprep.subr.mxu0 0.0
      %1458 = vmatpush1.msra.mxu0 0.0
      %1459 = vmatprep.subr.mxu0 0.0
      %1460 = vmatpush1.msra.mxu0 0.0
      %1461 = vmatprep.subr.mxu0 0.0
      %1462 = vmatpush1.msra.mxu0 0.0
      %1463 = vmatprep.mubr.f32.mxu0 0.0
      %1464 = vmatmul.mubr.f32.gmra.mrb[0].mxu0 %v1397
      %v1465 = vpop.f32.mrb[0].mxu0
      %v1466 = vadd.f32 0.0, %v1465
      %v1467 = vpop.f32.mrb[0].mxu0
      %1468 = vdwg.mxu0
      %v1469 = vsub.f32 %v1104, %v1466
      %1470 = vmatprep.subr.mxu0 0.0
      %1471 = vmatpush1.msra.mxu0 %v1469
      %1472 = vmatprep.subr.mxu0 0.0
      %1473 = vmatpush1.msra.mxu0 0.0
      %1474 = vmatprep.subr.mxu0 0.0
      %1475 = vmatpush1.msra.mxu0 0.0
      %1476 = vmatprep.subr.mxu0 0.0
      %1477 = vmatpush1.msra.mxu0 0.0
      %1478 = vmatprep.subr.mxu0 0.0
      %1479 = vmatpush1.msra.mxu0 0.0
      %1480 = vmatprep.subr.mxu0 0.0
      %1481 = vmatpush1.msra.mxu0 0.0
      %1482 = vmatprep.subr.mxu0 0.0
      %1483 = vmatpush1.msra.mxu0 0.0
      %1484 = vmatprep.subr.mxu0 0.0
      %1485 = vmatpush1.msra.mxu0 0.0
      %1486 = vmatprep.subr.mxu0 0.0
      %1487 = vmatpush1.msra.mxu0 0.0
      %1488 = vmatprep.subr.mxu0 0.0
      %1489 = vmatpush1.msra.mxu0 0.0
      %1490 = vmatprep.subr.mxu0 0.0
      %1491 = vmatpush1.msra.mxu0 0.0
      %1492 = vmatprep.subr.mxu0 0.0
      %1493 = vmatpush1.msra.mxu0 0.0
      %1494 = vmatprep.subr.mxu0 0.0
      %1495 = vmatpush1.msra.mxu0 0.0
      %1496 = vmatprep.subr.mxu0 0.0
      %1497 = vmatpush1.msra.mxu0 0.0
      %1498 = vmatprep.subr.mxu0 0.0
      %1499 = vmatpush1.msra.mxu0 0.0
      %1500 = vmatprep.subr.mxu0 0.0
      %1501 = vmatpush1.msra.mxu0 0.0
      %1502 = vmatprep.subr.mxu0 0.0
      %1503 = vmatpush1.msra.mxu0 0.0
      %1504 = vmatprep.subr.mxu0 0.0
      %1505 = vmatpush1.msra.mxu0 0.0
      %1506 = vmatprep.subr.mxu0 0.0
      %1507 = vmatpush1.msra.mxu0 0.0
      %1508 = vmatprep.subr.mxu0 0.0
      %1509 = vmatpush1.msra.mxu0 0.0
      %1510 = vmatprep.subr.mxu0 0.0
      %1511 = vmatpush1.msra.mxu0 0.0
      %1512 = vmatprep.subr.mxu0 0.0
      %1513 = vmatpush1.msra.mxu0 0.0
      %1514 = vmatprep.subr.mxu0 0.0
      %1515 = vmatpush1.msra.mxu0 0.0
      %1516 = vmatprep.subr.mxu0 0.0
      %1517 = vmatpush1.msra.mxu0 0.0
      %1518 = vmatprep.subr.mxu0 0.0
      %1519 = vmatpush1.msra.mxu0 0.0
      %1520 = vmatprep.subr.mxu0 0.0
      %1521 = vmatpush1.msra.mxu0 0.0
      %1522 = vmatprep.subr.mxu0 0.0
      %1523 = vmatpush1.msra.mxu0 0.0
      %1524 = vmatprep.subr.mxu0 0.0
      %1525 = vmatpush1.msra.mxu0 0.0
      %1526 = vmatprep.subr.mxu0 0.0
      %1527 = vmatpush1.msra.mxu0 0.0
      %1528 = vmatprep.subr.mxu0 0.0
      %1529 = vmatpush1.msra.mxu0 0.0
      %1530 = vmatprep.subr.mxu0 0.0
      %1531 = vmatpush1.msra.mxu0 0.0
      %1532 = vmatprep.subr.mxu0 0.0
      %1533 = vmatpush1.msra.mxu0 0.0
      %1534 = vmatprep.mubr.f32.mxu0 0.0
      %1535 = vmatmul.mubr.f32.gmra.mrb[0].mxu0 %v1397
      %v1536 = vpop.f32.mrb[0].mxu0
      %v1537 = vadd.f32 0.0, %v1536
      %v1538 = vpop.f32.mrb[0].mxu0
      %1539 = vdwg.mxu0
      %v1540 = vsub.f32 %v1179, %v1537
      %v1541 = vmul.f32 %v1322, 0.25
      %v1543 = vsel %vm654, %v1541, 0
      %1545 = vmatprep.subr.mxu0 0.0
      %1546 = vmatpush1.msra.mxu0 %v1540
      %1547 = vmatprep.subr.mxu0 0.0
      %1548 = vmatpush1.msra.mxu0 0.0
      %1549 = vmatprep.subr.mxu0 0.0
      %1550 = vmatpush1.msra.mxu0 0.0
      %1551 = vmatprep.subr.mxu0 0.0
      %1552 = vmatpush1.msra.mxu0 0.0
      %1553 = vmatprep.subr.mxu0 0.0
      %1554 = vmatpush1.msra.mxu0 0.0
      %1555 = vmatprep.subr.mxu0 0.0
      %1556 = vmatpush1.msra.mxu0 0.0
      %1557 = vmatprep.subr.mxu0 0.0
      %1558 = vmatpush1.msra.mxu0 0.0
      %1559 = vmatprep.subr.mxu0 0.0
      %1560 = vmatpush1.msra.mxu0 0.0
      %1561 = vmatprep.subr.mxu0 0.0
      %1562 = vmatpush1.msra.mxu0 0.0
      %1563 = vmatprep.subr.mxu0 0.0
      %1564 = vmatpush1.msra.mxu0 0.0
      %1565 = vmatprep.subr.mxu0 0.0
      %1566 = vmatpush1.msra.mxu0 0.0
      %1567 = vmatprep.subr.mxu0 0.0
      %1568 = vmatpush1.msra.mxu0 0.0
      %1569 = vmatprep.subr.mxu0 0.0
      %1570 = vmatpush1.msra.mxu0 0.0
      %1571 = vmatprep.subr.mxu0 0.0
      %1572 = vmatpush1.msra.mxu0 0.0
      %1573 = vmatprep.subr.mxu0 0.0
      %1574 = vmatpush1.msra.mxu0 0.0
      %1575 = vmatprep.subr.mxu0 0.0
      %1576 = vmatpush1.msra.mxu0 0.0
      %1577 = vmatprep.subr.mxu0 0.0
      %1578 = vmatpush1.msra.mxu0 0.0
      %1579 = vmatprep.subr.mxu0 0.0
      %1580 = vmatpush1.msra.mxu0 0.0
      %1581 = vmatprep.subr.mxu0 0.0
      %1582 = vmatpush1.msra.mxu0 0.0
      %1583 = vmatprep.subr.mxu0 0.0
      %1584 = vmatpush1.msra.mxu0 0.0
      %1585 = vmatprep.subr.mxu0 0.0
      %1586 = vmatpush1.msra.mxu0 0.0
      %1587 = vmatprep.subr.mxu0 0.0
      %1588 = vmatpush1.msra.mxu0 0.0
      %1589 = vmatprep.subr.mxu0 0.0
      %1590 = vmatpush1.msra.mxu0 0.0
      %1591 = vmatprep.subr.mxu0 0.0
      %1592 = vmatpush1.msra.mxu0 0.0
      %1593 = vmatprep.subr.mxu0 0.0
      %1594 = vmatpush1.msra.mxu0 0.0
      %1595 = vmatprep.subr.mxu0 0.0
      %1596 = vmatpush1.msra.mxu0 0.0
      %1597 = vmatprep.subr.mxu0 0.0
      %1598 = vmatpush1.msra.mxu0 0.0
      %1599 = vmatprep.subr.mxu0 0.0
      %1600 = vmatpush1.msra.mxu0 0.0
      %1601 = vmatprep.subr.mxu0 0.0
      %1602 = vmatpush1.msra.mxu0 0.0
      %1603 = vmatprep.subr.mxu0 0.0
      %1604 = vmatpush1.msra.mxu0 0.0
      %1605 = vmatprep.subr.mxu0 0.0
      %1606 = vmatpush1.msra.mxu0 0.0
      %1607 = vmatprep.subr.mxu0 0.0
      %1608 = vmatpush1.msra.mxu0 0.0
      %1609 = vmatprep.mubr.f32.mxu0 0.0
      %1610 = vmatmul.mubr.f32.gmra.mrb[0].mxu0 %v1543
      %v1611 = vpop.f32.mrb[0].mxu0
      %v1612 = vadd.f32 0.0, %v1611
      %v1613 = vpop.f32.mrb[0].mxu0
      %1614 = vdwg.mxu0
      %1615 = vmatprep.subr.mxu0 0.0
      %1616 = vmatpush1.msra.mxu0 %v1612
      %1617 = vmatprep.subr.mxu0 0.0
      %1618 = vmatpush1.msra.mxu0 0.0
      %1619 = vmatprep.subr.mxu0 0.0
      %1620 = vmatpush1.msra.mxu0 0.0
      %1621 = vmatprep.subr.mxu0 0.0
      %1622 = vmatpush1.msra.mxu0 0.0
      %1623 = vmatprep.subr.mxu0 0.0
      %1624 = vmatpush1.msra.mxu0 0.0
      %1625 = vmatprep.subr.mxu0 0.0
      %1626 = vmatpush1.msra.mxu0 0.0
      %1627 = vmatprep.subr.mxu0 0.0
      %1628 = vmatpush1.msra.mxu0 0.0
      %1629 = vmatprep.subr.mxu0 0.0
      %1630 = vmatpush1.msra.mxu0 0.0
      %1631 = vmatprep.subr.mxu0 0.0
      %1632 = vmatpush1.msra.mxu0 0.0
      %1633 = vmatprep.subr.mxu0 0.0
      %1634 = vmatpush1.msra.mxu0 0.0
      %1635 = vmatprep.subr.mxu0 0.0
      %1636 = vmatpush1.msra.mxu0 0.0
      %1637 = vmatprep.subr.mxu0 0.0
      %1638 = vmatpush1.msra.mxu0 0.0
      %1639 = vmatprep.subr.mxu0 0.0
      %1640 = vmatpush1.msra.mxu0 0.0
      %1641 = vmatprep.subr.mxu0 0.0
      %1642 = vmatpush1.msra.mxu0 0.0
      %1643 = vmatprep.subr.mxu0 0.0
      %1644 = vmatpush1.msra.mxu0 0.0
      %1645 = vmatprep.subr.mxu0 0.0
      %1646 = vmatpush1.msra.mxu0 0.0
      %1647 = vmatprep.subr.mxu0 0.0
      %1648 = vmatpush1.msra.mxu0 0.0
      %1649 = vmatprep.subr.mxu0 0.0
      %1650 = vmatpush1.msra.mxu0 0.0
      %1651 = vmatprep.subr.mxu0 0.0
      %1652 = vmatpush1.msra.mxu0 0.0
      %1653 = vmatprep.subr.mxu0 0.0
      %1654 = vmatpush1.msra.mxu0 0.0
      %1655 = vmatprep.subr.mxu0 0.0
      %1656 = vmatpush1.msra.mxu0 0.0
      %1657 = vmatprep.subr.mxu0 0.0
      %1658 = vmatpush1.msra.mxu0 0.0
      %1659 = vmatprep.subr.mxu0 0.0
      %1660 = vmatpush1.msra.mxu0 0.0
      %1661 = vmatprep.subr.mxu0 0.0
      %1662 = vmatpush1.msra.mxu0 0.0
      %1663 = vmatprep.subr.mxu0 0.0
      %1664 = vmatpush1.msra.mxu0 0.0
      %1665 = vmatprep.subr.mxu0 0.0
      %1666 = vmatpush1.msra.mxu0 0.0
      %1667 = vmatprep.subr.mxu0 0.0
      %1668 = vmatpush1.msra.mxu0 0.0
      %1669 = vmatprep.subr.mxu0 0.0
      %1670 = vmatpush1.msra.mxu0 0.0
      %1671 = vmatprep.subr.mxu0 0.0
      %1672 = vmatpush1.msra.mxu0 0.0
      %1673 = vmatprep.subr.mxu0 0.0
      %1674 = vmatpush1.msra.mxu0 0.0
      %1675 = vmatprep.subr.mxu0 0.0
      %1676 = vmatpush1.msra.mxu0 0.0
      %1677 = vmatprep.subr.mxu0 0.0
      %1678 = vmatpush1.msra.mxu0 0.0
      %1679 = vmatprep.mubr.f32.mxu0 0.0
      %1680 = vmatmul.mubr.f32.gmra.mrb[0].mxu0 %v1030
      %v1681 = vpop.f32.mrb[0].mxu0
      %v1682 = vadd.f32 0.0, %v1681
      %v1683 = vpop.f32.mrb[0].mxu0
      %1684 = vdwg.mxu0
      %v1685 = vsub.f32 %v1102, %v1682
      %v1687 = vsel %vm654, %v1682, 0
      %1689 = vmatprep.subr.mxu0 0.0
      %1690 = vmatpush1.msra.mxu0 %v1685
      %1691 = vmatprep.subr.mxu0 0.0
      %1692 = vmatpush1.msra.mxu0 0.0
      %1693 = vmatprep.subr.mxu0 0.0
      %1694 = vmatpush1.msra.mxu0 0.0
      %1695 = vmatprep.subr.mxu0 0.0
      %1696 = vmatpush1.msra.mxu0 0.0
      %1697 = vmatprep.subr.mxu0 0.0
      %1698 = vmatpush1.msra.mxu0 0.0
      %1699 = vmatprep.subr.mxu0 0.0
      %1700 = vmatpush1.msra.mxu0 0.0
      %1701 = vmatprep.subr.mxu0 0.0
      %1702 = vmatpush1.msra.mxu0 0.0
      %1703 = vmatprep.subr.mxu0 0.0
      %1704 = vmatpush1.msra.mxu0 0.0
      %1705 = vmatprep.subr.mxu0 0.0
      %1706 = vmatpush1.msra.mxu0 0.0
      %1707 = vmatprep.subr.mxu0 0.0
      %1708 = vmatpush1.msra.mxu0 0.0
      %1709 = vmatprep.subr.mxu0 0.0
      %1710 = vmatpush1.msra.mxu0 0.0
      %1711 = vmatprep.subr.mxu0 0.0
      %1712 = vmatpush1.msra.mxu0 0.0
      %1713 = vmatprep.subr.mxu0 0.0
      %1714 = vmatpush1.msra.mxu0 0.0
      %1715 = vmatprep.subr.mxu0 0.0
      %1716 = vmatpush1.msra.mxu0 0.0
      %1717 = vmatprep.subr.mxu0 0.0
      %1718 = vmatpush1.msra.mxu0 0.0
      %1719 = vmatprep.subr.mxu0 0.0
      %1720 = vmatpush1.msra.mxu0 0.0
      %1721 = vmatprep.subr.mxu0 0.0
      %1722 = vmatpush1.msra.mxu0 0.0
      %1723 = vmatprep.subr.mxu0 0.0
      %1724 = vmatpush1.msra.mxu0 0.0
      %1725 = vmatprep.subr.mxu0 0.0
      %1726 = vmatpush1.msra.mxu0 0.0
      %1727 = vmatprep.subr.mxu0 0.0
      %1728 = vmatpush1.msra.mxu0 0.0
      %1729 = vmatprep.subr.mxu0 0.0
      %1730 = vmatpush1.msra.mxu0 0.0
      %1731 = vmatprep.subr.mxu0 0.0
      %1732 = vmatpush1.msra.mxu0 0.0
      %1733 = vmatprep.subr.mxu0 0.0
      %1734 = vmatpush1.msra.mxu0 0.0
      %1735 = vmatprep.subr.mxu0 0.0
      %1736 = vmatpush1.msra.mxu0 0.0
      %1737 = vmatprep.subr.mxu0 0.0
      %1738 = vmatpush1.msra.mxu0 0.0
      %1739 = vmatprep.subr.mxu0 0.0
      %1740 = vmatpush1.msra.mxu0 0.0
      %1741 = vmatprep.subr.mxu0 0.0
      %1742 = vmatpush1.msra.mxu0 0.0
      %1743 = vmatprep.subr.mxu0 0.0
      %1744 = vmatpush1.msra.mxu0 0.0
      %1745 = vmatprep.subr.mxu0 0.0
      %1746 = vmatpush1.msra.mxu0 0.0
      %1747 = vmatprep.subr.mxu0 0.0
      %1748 = vmatpush1.msra.mxu0 0.0
      %1749 = vmatprep.subr.mxu0 0.0
      %1750 = vmatpush1.msra.mxu0 0.0
      %1751 = vmatprep.subr.mxu0 0.0
      %1752 = vmatpush1.msra.mxu0 0.0
      %1753 = vmatprep.mubr.f32.mxu0 0.0
      %1754 = vmatmul.mubr.f32.gmra.mrb[0].mxu0 %v1687
      %v1755 = vpop.f32.mrb[0].mxu0
      %v1756 = vadd.f32 0.0, %v1755
      %v1757 = vpop.f32.mrb[0].mxu0
      %1758 = vdwg.mxu0
      %v1759 = vsub.f32 %v1104, %v1756
      %1760 = vmatprep.subr.mxu0 0.0
      %1761 = vmatpush1.msra.mxu0 %v1759
      %1762 = vmatprep.subr.mxu0 0.0
      %1763 = vmatpush1.msra.mxu0 0.0
      %1764 = vmatprep.subr.mxu0 0.0
      %1765 = vmatpush1.msra.mxu0 0.0
      %1766 = vmatprep.subr.mxu0 0.0
      %1767 = vmatpush1.msra.mxu0 0.0
      %1768 = vmatprep.subr.mxu0 0.0
      %1769 = vmatpush1.msra.mxu0 0.0
      %1770 = vmatprep.subr.mxu0 0.0
      %1771 = vmatpush1.msra.mxu0 0.0
      %1772 = vmatprep.subr.mxu0 0.0
      %1773 = vmatpush1.msra.mxu0 0.0
      %1774 = vmatprep.subr.mxu0 0.0
      %1775 = vmatpush1.msra.mxu0 0.0
      %1776 = vmatprep.subr.mxu0 0.0
      %1777 = vmatpush1.msra.mxu0 0.0
      %1778 = vmatprep.subr.mxu0 0.0
      %1779 = vmatpush1.msra.mxu0 0.0
      %1780 = vmatprep.subr.mxu0 0.0
      %1781 = vmatpush1.msra.mxu0 0.0
      %1782 = vmatprep.subr.mxu0 0.0
      %1783 = vmatpush1.msra.mxu0 0.0
      %1784 = vmatprep.subr.mxu0 0.0
      %1785 = vmatpush1.msra.mxu0 0.0
      %1786 = vmatprep.subr.mxu0 0.0
      %1787 = vmatpush1.msra.mxu0 0.0
      %1788 = vmatprep.subr.mxu0 0.0
      %1789 = vmatpush1.msra.mxu0 0.0
      %1790 = vmatprep.subr.mxu0 0.0
      %1791 = vmatpush1.msra.mxu0 0.0
      %1792 = vmatprep.subr.mxu0 0.0
      %1793 = vmatpush1.msra.mxu0 0.0
      %1794 = vmatprep.subr.mxu0 0.0
      %1795 = vmatpush1.msra.mxu0 0.0
      %1796 = vmatprep.subr.mxu0 0.0
      %1797 = vmatpush1.msra.mxu0 0.0
      %1798 = vmatprep.subr.mxu0 0.0
      %1799 = vmatpush1.msra.mxu0 0.0
      %1800 = vmatprep.subr.mxu0 0.0
      %1801 = vmatpush1.msra.mxu0 0.0
      %1802 = vmatprep.subr.mxu0 0.0
      %1803 = vmatpush1.msra.mxu0 0.0
      %1804 = vmatprep.subr.mxu0 0.0
      %1805 = vmatpush1.msra.mxu0 0.0
      %1806 = vmatprep.subr.mxu0 0.0
      %1807 = vmatpush1.msra.mxu0 0.0
      %1808 = vmatprep.subr.mxu0 0.0
      %1809 = vmatpush1.msra.mxu0 0.0
      %1810 = vmatprep.subr.mxu0 0.0
      %1811 = vmatpush1.msra.mxu0 0.0
      %1812 = vmatprep.subr.mxu0 0.0
      %1813 = vmatpush1.msra.mxu0 0.0
      %1814 = vmatprep.subr.mxu0 0.0
      %1815 = vmatpush1.msra.mxu0 0.0
      %1816 = vmatprep.subr.mxu0 0.0
      %1817 = vmatpush1.msra.mxu0 0.0
      %1818 = vmatprep.subr.mxu0 0.0
      %1819 = vmatpush1.msra.mxu0 0.0
      %1820 = vmatprep.subr.mxu0 0.0
      %1821 = vmatpush1.msra.mxu0 0.0
      %1822 = vmatprep.subr.mxu0 0.0
      %1823 = vmatpush1.msra.mxu0 0.0
      %1824 = vmatprep.mubr.f32.mxu0 0.0
      %1825 = vmatmul.mubr.f32.gmra.mrb[0].mxu0 %v1687
      %v1826 = vpop.f32.mrb[0].mxu0
      %v1827 = vadd.f32 0.0, %v1826
      %v1828 = vpop.f32.mrb[0].mxu0
      %1829 = vdwg.mxu0
      %v1830 = vsub.f32 %v1179, %v1827
      %v1831 = vmul.f32 %v1612, 0.25
      %v1833 = vsel %vm654, %v1831, 0
      %1835 = vmatprep.subr.mxu0 0.0
      %1836 = vmatpush1.msra.mxu0 %v1830
      %1837 = vmatprep.subr.mxu0 0.0
      %1838 = vmatpush1.msra.mxu0 0.0
      %1839 = vmatprep.subr.mxu0 0.0
      %1840 = vmatpush1.msra.mxu0 0.0
      %1841 = vmatprep.subr.mxu0 0.0
      %1842 = vmatpush1.msra.mxu0 0.0
      %1843 = vmatprep.subr.mxu0 0.0
      %1844 = vmatpush1.msra.mxu0 0.0
      %1845 = vmatprep.subr.mxu0 0.0
      %1846 = vmatpush1.msra.mxu0 0.0
      %1847 = vmatprep.subr.mxu0 0.0
      %1848 = vmatpush1.msra.mxu0 0.0
      %1849 = vmatprep.subr.mxu0 0.0
      %1850 = vmatpush1.msra.mxu0 0.0
      %1851 = vmatprep.subr.mxu0 0.0
      %1852 = vmatpush1.msra.mxu0 0.0
      %1853 = vmatprep.subr.mxu0 0.0
      %1854 = vmatpush1.msra.mxu0 0.0
      %1855 = vmatprep.subr.mxu0 0.0
      %1856 = vmatpush1.msra.mxu0 0.0
      %1857 = vmatprep.subr.mxu0 0.0
      %1858 = vmatpush1.msra.mxu0 0.0
      %1859 = vmatprep.subr.mxu0 0.0
      %1860 = vmatpush1.msra.mxu0 0.0
      %1861 = vmatprep.subr.mxu0 0.0
      %1862 = vmatpush1.msra.mxu0 0.0
      %1863 = vmatprep.subr.mxu0 0.0
      %1864 = vmatpush1.msra.mxu0 0.0
      %1865 = vmatprep.subr.mxu0 0.0
      %1866 = vmatpush1.msra.mxu0 0.0
      %1867 = vmatprep.subr.mxu0 0.0
      %1868 = vmatpush1.msra.mxu0 0.0
      %1869 = vmatprep.subr.mxu0 0.0
      %1870 = vmatpush1.msra.mxu0 0.0
      %1871 = vmatprep.subr.mxu0 0.0
      %1872 = vmatpush1.msra.mxu0 0.0
      %1873 = vmatprep.subr.mxu0 0.0
      %1874 = vmatpush1.msra.mxu0 0.0
      %1875 = vmatprep.subr.mxu0 0.0
      %1876 = vmatpush1.msra.mxu0 0.0
      %1877 = vmatprep.subr.mxu0 0.0
      %1878 = vmatpush1.msra.mxu0 0.0
      %1879 = vmatprep.subr.mxu0 0.0
      %1880 = vmatpush1.msra.mxu0 0.0
      %1881 = vmatprep.subr.mxu0 0.0
      %1882 = vmatpush1.msra.mxu0 0.0
      %1883 = vmatprep.subr.mxu0 0.0
      %1884 = vmatpush1.msra.mxu0 0.0
      %1885 = vmatprep.subr.mxu0 0.0
      %1886 = vmatpush1.msra.mxu0 0.0
      %1887 = vmatprep.subr.mxu0 0.0
      %1888 = vmatpush1.msra.mxu0 0.0
      %1889 = vmatprep.subr.mxu0 0.0
      %1890 = vmatpush1.msra.mxu0 0.0
      %1891 = vmatprep.subr.mxu0 0.0
      %1892 = vmatpush1.msra.mxu0 0.0
      %1893 = vmatprep.subr.mxu0 0.0
      %1894 = vmatpush1.msra.mxu0 0.0
      %1895 = vmatprep.subr.mxu0 0.0
      %1896 = vmatpush1.msra.mxu0 0.0
      %1897 = vmatprep.subr.mxu0 0.0
      %1898 = vmatpush1.msra.mxu0 0.0
      %1899 = vmatprep.mubr.f32.mxu0 0.0
      %1900 = vmatmul.mubr.f32.gmra.mrb[0].mxu0 %v1833
      %v1901 = vpop.f32.mrb[0].mxu0
      %v1902 = vadd.f32 0.0, %v1901
      %v1903 = vpop.f32.mrb[0].mxu0
      %1904 = vdwg.mxu0
      %1905 = vmatprep.subr.mxu0 0.0
      %1906 = vmatpush1.msra.mxu0 %v1902
      %1907 = vmatprep.subr.mxu0 0.0
      %1908 = vmatpush1.msra.mxu0 0.0
      %1909 = vmatprep.subr.mxu0 0.0
      %1910 = vmatpush1.msra.mxu0 0.0
      %1911 = vmatprep.subr.mxu0 0.0
      %1912 = vmatpush1.msra.mxu0 0.0
      %1913 = vmatprep.subr.mxu0 0.0
      %1914 = vmatpush1.msra.mxu0 0.0
      %1915 = vmatprep.subr.mxu0 0.0
      %1916 = vmatpush1.msra.mxu0 0.0
      %1917 = vmatprep.subr.mxu0 0.0
      %1918 = vmatpush1.msra.mxu0 0.0
      %1919 = vmatprep.subr.mxu0 0.0
      %1920 = vmatpush1.msra.mxu0 0.0
      %1921 = vmatprep.subr.mxu0 0.0
      %1922 = vmatpush1.msra.mxu0 0.0
      %1923 = vmatprep.subr.mxu0 0.0
      %1924 = vmatpush1.msra.mxu0 0.0
      %1925 = vmatprep.subr.mxu0 0.0
      %1926 = vmatpush1.msra.mxu0 0.0
      %1927 = vmatprep.subr.mxu0 0.0
      %1928 = vmatpush1.msra.mxu0 0.0
      %1929 = vmatprep.subr.mxu0 0.0
      %1930 = vmatpush1.msra.mxu0 0.0
      %1931 = vmatprep.subr.mxu0 0.0
      %1932 = vmatpush1.msra.mxu0 0.0
      %1933 = vmatprep.subr.mxu0 0.0
      %1934 = vmatpush1.msra.mxu0 0.0
      %1935 = vmatprep.subr.mxu0 0.0
      %1936 = vmatpush1.msra.mxu0 0.0
      %1937 = vmatprep.subr.mxu0 0.0
      %1938 = vmatpush1.msra.mxu0 0.0
      %1939 = vmatprep.subr.mxu0 0.0
      %1940 = vmatpush1.msra.mxu0 0.0
      %1941 = vmatprep.subr.mxu0 0.0
      %1942 = vmatpush1.msra.mxu0 0.0
      %1943 = vmatprep.subr.mxu0 0.0
      %1944 = vmatpush1.msra.mxu0 0.0
      %1945 = vmatprep.subr.mxu0 0.0
      %1946 = vmatpush1.msra.mxu0 0.0
      %1947 = vmatprep.subr.mxu0 0.0
      %1948 = vmatpush1.msra.mxu0 0.0
      %1949 = vmatprep.subr.mxu0 0.0
      %1950 = vmatpush1.msra.mxu0 0.0
      %1951 = vmatprep.subr.mxu0 0.0
      %1952 = vmatpush1.msra.mxu0 0.0
      %1953 = vmatprep.subr.mxu0 0.0
      %1954 = vmatpush1.msra.mxu0 0.0
      %1955 = vmatprep.subr.mxu0 0.0
      %1956 = vmatpush1.msra.mxu0 0.0
      %1957 = vmatprep.subr.mxu0 0.0
      %1958 = vmatpush1.msra.mxu0 0.0
      %1959 = vmatprep.subr.mxu0 0.0
      %1960 = vmatpush1.msra.mxu0 0.0
      %1961 = vmatprep.subr.mxu0 0.0
      %1962 = vmatpush1.msra.mxu0 0.0
      %1963 = vmatprep.subr.mxu0 0.0
      %1964 = vmatpush1.msra.mxu0 0.0
      %1965 = vmatprep.subr.mxu0 0.0
      %1966 = vmatpush1.msra.mxu0 0.0
      %1967 = vmatprep.subr.mxu0 0.0
      %1968 = vmatpush1.msra.mxu0 0.0
      %1969 = vmatprep.mubr.f32.mxu0 0.0
      %1970 = vmatmul.mubr.f32.gmra.mrb[0].mxu0 %v1030
      %v1971 = vpop.f32.mrb[0].mxu0
      %v1972 = vadd.f32 0.0, %v1971
      %v1973 = vpop.f32.mrb[0].mxu0
      %1974 = vdwg.mxu0
      %v1975 = vsub.f32 %v1102, %v1972
      %v1977 = vsel %vm654, %v1972, 0
      %1979 = vmatprep.subr.mxu0 0.0
      %1980 = vmatpush1.msra.mxu0 %v1975
      %1981 = vmatprep.subr.mxu0 0.0
      %1982 = vmatpush1.msra.mxu0 0.0
      %1983 = vmatprep.subr.mxu0 0.0
      %1984 = vmatpush1.msra.mxu0 0.0
      %1985 = vmatprep.subr.mxu0 0.0
      %1986 = vmatpush1.msra.mxu0 0.0
      %1987 = vmatprep.subr.mxu0 0.0
      %1988 = vmatpush1.msra.mxu0 0.0
      %1989 = vmatprep.subr.mxu0 0.0
      %1990 = vmatpush1.msra.mxu0 0.0
      %1991 = vmatprep.subr.mxu0 0.0
      %1992 = vmatpush1.msra.mxu0 0.0
      %1993 = vmatprep.subr.mxu0 0.0
      %1994 = vmatpush1.msra.mxu0 0.0
      %1995 = vmatprep.subr.mxu0 0.0
      %1996 = vmatpush1.msra.mxu0 0.0
      %1997 = vmatprep.subr.mxu0 0.0
      %1998 = vmatpush1.msra.mxu0 0.0
      %1999 = vmatprep.subr.mxu0 0.0
      %2000 = vmatpush1.msra.mxu0 0.0
      %2001 = vmatprep.subr.mxu0 0.0
      %2002 = vmatpush1.msra.mxu0 0.0
      %2003 = vmatprep.subr.mxu0 0.0
      %2004 = vmatpush1.msra.mxu0 0.0
      %2005 = vmatprep.subr.mxu0 0.0
      %2006 = vmatpush1.msra.mxu0 0.0
      %2007 = vmatprep.subr.mxu0 0.0
      %2008 = vmatpush1.msra.mxu0 0.0
      %2009 = vmatprep.subr.mxu0 0.0
      %2010 = vmatpush1.msra.mxu0 0.0
      %2011 = vmatprep.subr.mxu0 0.0
      %2012 = vmatpush1.msra.mxu0 0.0
      %2013 = vmatprep.subr.mxu0 0.0
      %2014 = vmatpush1.msra.mxu0 0.0
      %2015 = vmatprep.subr.mxu0 0.0
      %2016 = vmatpush1.msra.mxu0 0.0
      %2017 = vmatprep.subr.mxu0 0.0
      %2018 = vmatpush1.msra.mxu0 0.0
      %2019 = vmatprep.subr.mxu0 0.0
      %2020 = vmatpush1.msra.mxu0 0.0
      %2021 = vmatprep.subr.mxu0 0.0
      %2022 = vmatpush1.msra.mxu0 0.0
      %2023 = vmatprep.subr.mxu0 0.0
      %2024 = vmatpush1.msra.mxu0 0.0
      %2025 = vmatprep.subr.mxu0 0.0
      %2026 = vmatpush1.msra.mxu0 0.0
      %2027 = vmatprep.subr.mxu0 0.0
      %2028 = vmatpush1.msra.mxu0 0.0
      %2029 = vmatprep.subr.mxu0 0.0
      %2030 = vmatpush1.msra.mxu0 0.0
      %2031 = vmatprep.subr.mxu0 0.0
      %2032 = vmatpush1.msra.mxu0 0.0
      %2033 = vmatprep.subr.mxu0 0.0
      %2034 = vmatpush1.msra.mxu0 0.0
      %2035 = vmatprep.subr.mxu0 0.0
      %2036 = vmatpush1.msra.mxu0 0.0
      %2037 = vmatprep.subr.mxu0 0.0
      %2038 = vmatpush1.msra.mxu0 0.0
      %2039 = vmatprep.subr.mxu0 0.0
      %2040 = vmatpush1.msra.mxu0 0.0
      %2041 = vmatprep.subr.mxu0 0.0
      %2042 = vmatpush1.msra.mxu0 0.0
      %2043 = vmatprep.mubr.f32.mxu0 0.0
      %2044 = vmatmul.mubr.f32.gmra.mrb[0].mxu0 %v1977
      %v2045 = vpop.f32.mrb[0].mxu0
      %v2046 = vadd.f32 0.0, %v2045
      %v2047 = vpop.f32.mrb[0].mxu0
      %2048 = vdwg.mxu0
      %v2049 = vsub.f32 %v1104, %v2046
      %2050 = vmatprep.subr.mxu0 0.0
      %2051 = vmatpush1.msra.mxu0 %v2049
      %2052 = vmatprep.subr.mxu0 0.0
      %2053 = vmatpush1.msra.mxu0 0.0
      %2054 = vmatprep.subr.mxu0 0.0
      %2055 = vmatpush1.msra.mxu0 0.0
      %2056 = vmatprep.subr.mxu0 0.0
      %2057 = vmatpush1.msra.mxu0 0.0
      %2058 = vmatprep.subr.mxu0 0.0
      %2059 = vmatpush1.msra.mxu0 0.0
      %2060 = vmatprep.subr.mxu0 0.0
      %2061 = vmatpush1.msra.mxu0 0.0
      %2062 = vmatprep.subr.mxu0 0.0
      %2063 = vmatpush1.msra.mxu0 0.0
      %2064 = vmatprep.subr.mxu0 0.0
      %2065 = vmatpush1.msra.mxu0 0.0
      %2066 = vmatprep.subr.mxu0 0.0
      %2067 = vmatpush1.msra.mxu0 0.0
      %2068 = vmatprep.subr.mxu0 0.0
      %2069 = vmatpush1.msra.mxu0 0.0
      %2070 = vmatprep.subr.mxu0 0.0
      %2071 = vmatpush1.msra.mxu0 0.0
      %2072 = vmatprep.subr.mxu0 0.0
      %2073 = vmatpush1.msra.mxu0 0.0
      %2074 = vmatprep.subr.mxu0 0.0
      %2075 = vmatpush1.msra.mxu0 0.0
      %2076 = vmatprep.subr.mxu0 0.0
      %2077 = vmatpush1.msra.mxu0 0.0
      %2078 = vmatprep.subr.mxu0 0.0
      %2079 = vmatpush1.msra.mxu0 0.0
      %2080 = vmatprep.subr.mxu0 0.0
      %2081 = vmatpush1.msra.mxu0 0.0
      %2082 = vmatprep.subr.mxu0 0.0
      %2083 = vmatpush1.msra.mxu0 0.0
      %2084 = vmatprep.subr.mxu0 0.0
      %2085 = vmatpush1.msra.mxu0 0.0
      %2086 = vmatprep.subr.mxu0 0.0
      %2087 = vmatpush1.msra.mxu0 0.0
      %2088 = vmatprep.subr.mxu0 0.0
      %2089 = vmatpush1.msra.mxu0 0.0
      %2090 = vmatprep.subr.mxu0 0.0
      %2091 = vmatpush1.msra.mxu0 0.0
      %2092 = vmatprep.subr.mxu0 0.0
      %2093 = vmatpush1.msra.mxu0 0.0
      %2094 = vmatprep.subr.mxu0 0.0
      %2095 = vmatpush1.msra.mxu0 0.0
      %2096 = vmatprep.subr.mxu0 0.0
      %2097 = vmatpush1.msra.mxu0 0.0
      %2098 = vmatprep.subr.mxu0 0.0
      %2099 = vmatpush1.msra.mxu0 0.0
      %2100 = vmatprep.subr.mxu0 0.0
      %2101 = vmatpush1.msra.mxu0 0.0
      %2102 = vmatprep.subr.mxu0 0.0
      %2103 = vmatpush1.msra.mxu0 0.0
      %2104 = vmatprep.subr.mxu0 0.0
      %2105 = vmatpush1.msra.mxu0 0.0
      %2106 = vmatprep.subr.mxu0 0.0
      %2107 = vmatpush1.msra.mxu0 0.0
      %2108 = vmatprep.subr.mxu0 0.0
      %2109 = vmatpush1.msra.mxu0 0.0
      %2110 = vmatprep.subr.mxu0 0.0
      %2111 = vmatpush1.msra.mxu0 0.0
      %2112 = vmatprep.subr.mxu0 0.0
      %2113 = vmatpush1.msra.mxu0 0.0
      %2114 = vmatprep.mubr.f32.mxu0 0.0
      %2115 = vmatmul.mubr.f32.gmra.mrb[0].mxu0 %v1977
      %v2116 = vpop.f32.mrb[0].mxu0
      %v2117 = vadd.f32 0.0, %v2116
      %v2118 = vpop.f32.mrb[0].mxu0
      %2119 = vdwg.mxu0
      %v2120 = vsub.f32 %v1179, %v2117
      %v2121 = vmul.f32 %v1902, 0.25
      %v2123 = vsel %vm654, %v2121, 0
      %2125 = vmatprep.subr.mxu0 0.0
      %2126 = vmatpush1.msra.mxu0 %v2120
      %2127 = vmatprep.subr.mxu0 0.0
      %2128 = vmatpush1.msra.mxu0 0.0
      %2129 = vmatprep.subr.mxu0 0.0
      %2130 = vmatpush1.msra.mxu0 0.0
      %2131 = vmatprep.subr.mxu0 0.0
      %2132 = vmatpush1.msra.mxu0 0.0
      %2133 = vmatprep.subr.mxu0 0.0
      %2134 = vmatpush1.msra.mxu0 0.0
      %2135 = vmatprep.subr.mxu0 0.0
      %2136 = vmatpush1.msra.mxu0 0.0
      %2137 = vmatprep.subr.mxu0 0.0
      %2138 = vmatpush1.msra.mxu0 0.0
      %2139 = vmatprep.subr.mxu0 0.0
      %2140 = vmatpush1.msra.mxu0 0.0
      %2141 = vmatprep.subr.mxu0 0.0
      %2142 = vmatpush1.msra.mxu0 0.0
      %2143 = vmatprep.subr.mxu0 0.0
      %2144 = vmatpush1.msra.mxu0 0.0
      %2145 = vmatprep.subr.mxu0 0.0
      %2146 = vmatpush1.msra.mxu0 0.0
      %2147 = vmatprep.subr.mxu0 0.0
      %2148 = vmatpush1.msra.mxu0 0.0
      %2149 = vmatprep.subr.mxu0 0.0
      %2150 = vmatpush1.msra.mxu0 0.0
      %2151 = vmatprep.subr.mxu0 0.0
      %2152 = vmatpush1.msra.mxu0 0.0
      %2153 = vmatprep.subr.mxu0 0.0
      %2154 = vmatpush1.msra.mxu0 0.0
      %2155 = vmatprep.subr.mxu0 0.0
      %2156 = vmatpush1.msra.mxu0 0.0
      %2157 = vmatprep.subr.mxu0 0.0
      %2158 = vmatpush1.msra.mxu0 0.0
      %2159 = vmatprep.subr.mxu0 0.0
      %2160 = vmatpush1.msra.mxu0 0.0
      %2161 = vmatprep.subr.mxu0 0.0
      %2162 = vmatpush1.msra.mxu0 0.0
      %2163 = vmatprep.subr.mxu0 0.0
      %2164 = vmatpush1.msra.mxu0 0.0
      %2165 = vmatprep.subr.mxu0 0.0
      %2166 = vmatpush1.msra.mxu0 0.0
      %2167 = vmatprep.subr.mxu0 0.0
      %2168 = vmatpush1.msra.mxu0 0.0
      %2169 = vmatprep.subr.mxu0 0.0
      %2170 = vmatpush1.msra.mxu0 0.0
      %2171 = vmatprep.subr.mxu0 0.0
      %2172 = vmatpush1.msra.mxu0 0.0
      %2173 = vmatprep.subr.mxu0 0.0
      %2174 = vmatpush1.msra.mxu0 0.0
      %2175 = vmatprep.subr.mxu0 0.0
      %2176 = vmatpush1.msra.mxu0 0.0
      %2177 = vmatprep.subr.mxu0 0.0
      %2178 = vmatpush1.msra.mxu0 0.0
      %2179 = vmatprep.subr.mxu0 0.0
      %2180 = vmatpush1.msra.mxu0 0.0
      %2181 = vmatprep.subr.mxu0 0.0
      %2182 = vmatpush1.msra.mxu0 0.0
      %2183 = vmatprep.subr.mxu0 0.0
      %2184 = vmatpush1.msra.mxu0 0.0
      %2185 = vmatprep.subr.mxu0 0.0
      %2186 = vmatpush1.msra.mxu0 0.0
      %2187 = vmatprep.subr.mxu0 0.0
      %2188 = vmatpush1.msra.mxu0 0.0
      %2189 = vmatprep.mubr.f32.mxu0 0.0
      %2190 = vmatmul.mubr.f32.gmra.mrb[0].mxu0 %v2123
      %v2191 = vpop.f32.mrb[0].mxu0
      %v2192 = vadd.f32 0.0, %v2191
      %v2193 = vpop.f32.mrb[0].mxu0
      %2194 = vdwg.mxu0
      %2195 = vmatprep.subr.mxu0 0.0
      %2196 = vmatpush1.msra.mxu0 %v2192
      %2197 = vmatprep.subr.mxu0 0.0
      %2198 = vmatpush1.msra.mxu0 0.0
      %2199 = vmatprep.subr.mxu0 0.0
      %2200 = vmatpush1.msra.mxu0 0.0
      %2201 = vmatprep.subr.mxu0 0.0
      %2202 = vmatpush1.msra.mxu0 0.0
      %2203 = vmatprep.subr.mxu0 0.0
      %2204 = vmatpush1.msra.mxu0 0.0
      %2205 = vmatprep.subr.mxu0 0.0
      %2206 = vmatpush1.msra.mxu0 0.0
      %2207 = vmatprep.subr.mxu0 0.0
      %2208 = vmatpush1.msra.mxu0 0.0
      %2209 = vmatprep.subr.mxu0 0.0
      %2210 = vmatpush1.msra.mxu0 0.0
      %2211 = vmatprep.subr.mxu0 0.0
      %2212 = vmatpush1.msra.mxu0 0.0
      %2213 = vmatprep.subr.mxu0 0.0
      %2214 = vmatpush1.msra.mxu0 0.0
      %2215 = vmatprep.subr.mxu0 0.0
      %2216 = vmatpush1.msra.mxu0 0.0
      %2217 = vmatprep.subr.mxu0 0.0
      %2218 = vmatpush1.msra.mxu0 0.0
      %2219 = vmatprep.subr.mxu0 0.0
      %2220 = vmatpush1.msra.mxu0 0.0
      %2221 = vmatprep.subr.mxu0 0.0
      %2222 = vmatpush1.msra.mxu0 0.0
      %2223 = vmatprep.subr.mxu0 0.0
      %2224 = vmatpush1.msra.mxu0 0.0
      %2225 = vmatprep.subr.mxu0 0.0
      %2226 = vmatpush1.msra.mxu0 0.0
      %2227 = vmatprep.subr.mxu0 0.0
      %2228 = vmatpush1.msra.mxu0 0.0
      %2229 = vmatprep.subr.mxu0 0.0
      %2230 = vmatpush1.msra.mxu0 0.0
      %2231 = vmatprep.subr.mxu0 0.0
      %2232 = vmatpush1.msra.mxu0 0.0
      %2233 = vmatprep.subr.mxu0 0.0
      %2234 = vmatpush1.msra.mxu0 0.0
      %2235 = vmatprep.subr.mxu0 0.0
      %2236 = vmatpush1.msra.mxu0 0.0
      %2237 = vmatprep.subr.mxu0 0.0
      %2238 = vmatpush1.msra.mxu0 0.0
      %2239 = vmatprep.subr.mxu0 0.0
      %2240 = vmatpush1.msra.mxu0 0.0
      %2241 = vmatprep.subr.mxu0 0.0
      %2242 = vmatpush1.msra.mxu0 0.0
      %2243 = vmatprep.subr.mxu0 0.0
      %2244 = vmatpush1.msra.mxu0 0.0
      %2245 = vmatprep.subr.mxu0 0.0
      %2246 = vmatpush1.msra.mxu0 0.0
      %2247 = vmatprep.subr.mxu0 0.0
      %2248 = vmatpush1.msra.mxu0 0.0
      %2249 = vmatprep.subr.mxu0 0.0
      %2250 = vmatpush1.msra.mxu0 0.0
      %2251 = vmatprep.subr.mxu0 0.0
      %2252 = vmatpush1.msra.mxu0 0.0
      %2253 = vmatprep.subr.mxu0 0.0
      %2254 = vmatpush1.msra.mxu0 0.0
      %2255 = vmatprep.subr.mxu0 0.0
      %2256 = vmatpush1.msra.mxu0 0.0
      %2257 = vmatprep.subr.mxu0 0.0
      %2258 = vmatpush1.msra.mxu0 0.0
      %2259 = vmatprep.mubr.f32.mxu0 0.0
      %2260 = vmatmul.mubr.f32.gmra.mrb[0].mxu0 %v1030
      %v2261 = vpop.f32.mrb[0].mxu0
      %v2262 = vadd.f32 0.0, %v2261
      %v2263 = vpop.f32.mrb[0].mxu0
      %2264 = vdwg.mxu0
      %v2265 = vsub.f32 %v1102, %v2262
      %v2267 = vsel %vm654, %v2262, 0
      %2269 = vmatprep.subr.mxu0 0.0
      %2270 = vmatpush1.msra.mxu0 %v2265
      %2271 = vmatprep.subr.mxu0 0.0
      %2272 = vmatpush1.msra.mxu0 0.0
      %2273 = vmatprep.subr.mxu0 0.0
      %2274 = vmatpush1.msra.mxu0 0.0
      %2275 = vmatprep.subr.mxu0 0.0
      %2276 = vmatpush1.msra.mxu0 0.0
      %2277 = vmatprep.subr.mxu0 0.0
      %2278 = vmatpush1.msra.mxu0 0.0
      %2279 = vmatprep.subr.mxu0 0.0
      %2280 = vmatpush1.msra.mxu0 0.0
      %2281 = vmatprep.subr.mxu0 0.0
      %2282 = vmatpush1.msra.mxu0 0.0
      %2283 = vmatprep.subr.mxu0 0.0
      %2284 = vmatpush1.msra.mxu0 0.0
      %2285 = vmatprep.subr.mxu0 0.0
      %2286 = vmatpush1.msra.mxu0 0.0
      %2287 = vmatprep.subr.mxu0 0.0
      %2288 = vmatpush1.msra.mxu0 0.0
      %2289 = vmatprep.subr.mxu0 0.0
      %2290 = vmatpush1.msra.mxu0 0.0
      %2291 = vmatprep.subr.mxu0 0.0
      %2292 = vmatpush1.msra.mxu0 0.0
      %2293 = vmatprep.subr.mxu0 0.0
      %2294 = vmatpush1.msra.mxu0 0.0
      %2295 = vmatprep.subr.mxu0 0.0
      %2296 = vmatpush1.msra.mxu0 0.0
      %2297 = vmatprep.subr.mxu0 0.0
      %2298 = vmatpush1.msra.mxu0 0.0
      %2299 = vmatprep.subr.mxu0 0.0
      %2300 = vmatpush1.msra.mxu0 0.0
      %2301 = vmatprep.subr.mxu0 0.0
      %2302 = vmatpush1.msra.mxu0 0.0
      %2303 = vmatprep.subr.mxu0 0.0
      %2304 = vmatpush1.msra.mxu0 0.0
      %2305 = vmatprep.subr.mxu0 0.0
      %2306 = vmatpush1.msra.mxu0 0.0
      %2307 = vmatprep.subr.mxu0 0.0
      %2308 = vmatpush1.msra.mxu0 0.0
      %2309 = vmatprep.subr.mxu0 0.0
      %2310 = vmatpush1.msra.mxu0 0.0
      %2311 = vmatprep.subr.mxu0 0.0
      %2312 = vmatpush1.msra.mxu0 0.0
      %2313 = vmatprep.subr.mxu0 0.0
      %2314 = vmatpush1.msra.mxu0 0.0
      %2315 = vmatprep.subr.mxu0 0.0
      %2316 = vmatpush1.msra.mxu0 0.0
      %2317 = vmatprep.subr.mxu0 0.0
      %2318 = vmatpush1.msra.mxu0 0.0
      %2319 = vmatprep.subr.mxu0 0.0
      %2320 = vmatpush1.msra.mxu0 0.0
      %2321 = vmatprep.subr.mxu0 0.0
      %2322 = vmatpush1.msra.mxu0 0.0
      %2323 = vmatprep.subr.mxu0 0.0
      %2324 = vmatpush1.msra.mxu0 0.0
      %2325 = vmatprep.subr.mxu0 0.0
      %2326 = vmatpush1.msra.mxu0 0.0
      %2327 = vmatprep.subr.mxu0 0.0
      %2328 = vmatpush1.msra.mxu0 0.0
      %2329 = vmatprep.subr.mxu0 0.0
      %2330 = vmatpush1.msra.mxu0 0.0
      %2331 = vmatprep.subr.mxu0 0.0
      %2332 = vmatpush1.msra.mxu0 0.0
      %2333 = vmatprep.mubr.f32.mxu0 0.0
      %2334 = vmatmul.mubr.f32.gmra.mrb[0].mxu0 %v2267
      %v2335 = vpop.f32.mrb[0].mxu0
      %v2336 = vadd.f32 0.0, %v2335
      %v2337 = vpop.f32.mrb[0].mxu0
      %2338 = vdwg.mxu0
      %v2339 = vsub.f32 %v1104, %v2336
      %2340 = vmatprep.subr.mxu0 0.0
      %2341 = vmatpush1.msra.mxu0 %v2339
      %2342 = vmatprep.subr.mxu0 0.0
      %2343 = vmatpush1.msra.mxu0 0.0
      %2344 = vmatprep.subr.mxu0 0.0
      %2345 = vmatpush1.msra.mxu0 0.0
      %2346 = vmatprep.subr.mxu0 0.0
      %2347 = vmatpush1.msra.mxu0 0.0
      %2348 = vmatprep.subr.mxu0 0.0
      %2349 = vmatpush1.msra.mxu0 0.0
      %2350 = vmatprep.subr.mxu0 0.0
      %2351 = vmatpush1.msra.mxu0 0.0
      %2352 = vmatprep.subr.mxu0 0.0
      %2353 = vmatpush1.msra.mxu0 0.0
      %2354 = vmatprep.subr.mxu0 0.0
      %2355 = vmatpush1.msra.mxu0 0.0
      %2356 = vmatprep.subr.mxu0 0.0
      %2357 = vmatpush1.msra.mxu0 0.0
      %2358 = vmatprep.subr.mxu0 0.0
      %2359 = vmatpush1.msra.mxu0 0.0
      %2360 = vmatprep.subr.mxu0 0.0
      %2361 = vmatpush1.msra.mxu0 0.0
      %2362 = vmatprep.subr.mxu0 0.0
      %2363 = vmatpush1.msra.mxu0 0.0
      %2364 = vmatprep.subr.mxu0 0.0
      %2365 = vmatpush1.msra.mxu0 0.0
      %2366 = vmatprep.subr.mxu0 0.0
      %2367 = vmatpush1.msra.mxu0 0.0
      %2368 = vmatprep.subr.mxu0 0.0
      %2369 = vmatpush1.msra.mxu0 0.0
      %2370 = vmatprep.subr.mxu0 0.0
      %2371 = vmatpush1.msra.mxu0 0.0
      %2372 = vmatprep.subr.mxu0 0.0
      %2373 = vmatpush1.msra.mxu0 0.0
      %2374 = vmatprep.subr.mxu0 0.0
      %2375 = vmatpush1.msra.mxu0 0.0
      %2376 = vmatprep.subr.mxu0 0.0
      %2377 = vmatpush1.msra.mxu0 0.0
      %2378 = vmatprep.subr.mxu0 0.0
      %2379 = vmatpush1.msra.mxu0 0.0
      %2380 = vmatprep.subr.mxu0 0.0
      %2381 = vmatpush1.msra.mxu0 0.0
      %2382 = vmatprep.subr.mxu0 0.0
      %2383 = vmatpush1.msra.mxu0 0.0
      %2384 = vmatprep.subr.mxu0 0.0
      %2385 = vmatpush1.msra.mxu0 0.0
      %2386 = vmatprep.subr.mxu0 0.0
      %2387 = vmatpush1.msra.mxu0 0.0
      %2388 = vmatprep.subr.mxu0 0.0
      %2389 = vmatpush1.msra.mxu0 0.0
      %2390 = vmatprep.subr.mxu0 0.0
      %2391 = vmatpush1.msra.mxu0 0.0
      %2392 = vmatprep.subr.mxu0 0.0
      %2393 = vmatpush1.msra.mxu0 0.0
      %2394 = vmatprep.subr.mxu0 0.0
      %2395 = vmatpush1.msra.mxu0 0.0
      %2396 = vmatprep.subr.mxu0 0.0
      %2397 = vmatpush1.msra.mxu0 0.0
      %2398 = vmatprep.subr.mxu0 0.0
      %2399 = vmatpush1.msra.mxu0 0.0
      %2400 = vmatprep.subr.mxu0 0.0
      %2401 = vmatpush1.msra.mxu0 0.0
      %2402 = vmatprep.subr.mxu0 0.0
      %2403 = vmatpush1.msra.mxu0 0.0
      %2404 = vmatprep.mubr.f32.mxu0 0.0
      %2405 = vmatmul.mubr.f32.gmra.mrb[0].mxu0 %v2267
      %v2406 = vpop.f32.mrb[0].mxu0
      %v2407 = vadd.f32 0.0, %v2406
      %v2408 = vpop.f32.mrb[0].mxu0
      %2409 = vdwg.mxu0
      %v2410 = vsub.f32 %v1179, %v2407
      %v2411 = vmul.f32 %v2192, 0.25
      %v2413 = vsel %vm654, %v2411, 0
      %2415 = vmatprep.subr.mxu0 0.0
      %2416 = vmatpush1.msra.mxu0 %v2410
      %2417 = vmatprep.subr.mxu0 0.0
      %2418 = vmatpush1.msra.mxu0 0.0
      %2419 = vmatprep.subr.mxu0 0.0
      %2420 = vmatpush1.msra.mxu0 0.0
      %2421 = vmatprep.subr.mxu0 0.0
      %2422 = vmatpush1.msra.mxu0 0.0
      %2423 = vmatprep.subr.mxu0 0.0
      %2424 = vmatpush1.msra.mxu0 0.0
      %2425 = vmatprep.subr.mxu0 0.0
      %2426 = vmatpush1.msra.mxu0 0.0
      %2427 = vmatprep.subr.mxu0 0.0
      %2428 = vmatpush1.msra.mxu0 0.0
      %2429 = vmatprep.subr.mxu0 0.0
      %2430 = vmatpush1.msra.mxu0 0.0
      %2431 = vmatprep.subr.mxu0 0.0
      %2432 = vmatpush1.msra.mxu0 0.0
      %2433 = vmatprep.subr.mxu0 0.0
      %2434 = vmatpush1.msra.mxu0 0.0
      %2435 = vmatprep.subr.mxu0 0.0
      %2436 = vmatpush1.msra.mxu0 0.0
      %2437 = vmatprep.subr.mxu0 0.0
      %2438 = vmatpush1.msra.mxu0 0.0
      %2439 = vmatprep.subr.mxu0 0.0
      %2440 = vmatpush1.msra.mxu0 0.0
      %2441 = vmatprep.subr.mxu0 0.0
      %2442 = vmatpush1.msra.mxu0 0.0
      %2443 = vmatprep.subr.mxu0 0.0
      %2444 = vmatpush1.msra.mxu0 0.0
      %2445 = vmatprep.subr.mxu0 0.0
      %2446 = vmatpush1.msra.mxu0 0.0
      %2447 = vmatprep.subr.mxu0 0.0
      %2448 = vmatpush1.msra.mxu0 0.0
      %2449 = vmatprep.subr.mxu0 0.0
      %2450 = vmatpush1.msra.mxu0 0.0
      %2451 = vmatprep.subr.mxu0 0.0
      %2452 = vmatpush1.msra.mxu0 0.0
      %2453 = vmatprep.subr.mxu0 0.0
      %2454 = vmatpush1.msra.mxu0 0.0
      %2455 = vmatprep.subr.mxu0 0.0
      %2456 = vmatpush1.msra.mxu0 0.0
      %2457 = vmatprep.subr.mxu0 0.0
      %2458 = vmatpush1.msra.mxu0 0.0
      %2459 = vmatprep.subr.mxu0 0.0
      %2460 = vmatpush1.msra.mxu0 0.0
      %2461 = vmatprep.subr.mxu0 0.0
      %2462 = vmatpush1.msra.mxu0 0.0
      %2463 = vmatprep.subr.mxu0 0.0
      %2464 = vmatpush1.msra.mxu0 0.0
      %2465 = vmatprep.subr.mxu0 0.0
      %2466 = vmatpush1.msra.mxu0 0.0
      %2467 = vmatprep.subr.mxu0 0.0
      %2468 = vmatpush1.msra.mxu0 0.0
      %2469 = vmatprep.subr.mxu0 0.0
      %2470 = vmatpush1.msra.mxu0 0.0
      %2471 = vmatprep.subr.mxu0 0.0
      %2472 = vmatpush1.msra.mxu0 0.0
      %2473 = vmatprep.subr.mxu0 0.0
      %2474 = vmatpush1.msra.mxu0 0.0
      %2475 = vmatprep.subr.mxu0 0.0
      %2476 = vmatpush1.msra.mxu0 0.0
      %2477 = vmatprep.subr.mxu0 0.0
      %2478 = vmatpush1.msra.mxu0 0.0
      %2479 = vmatprep.mubr.f32.mxu0 0.0
      %2480 = vmatmul.mubr.f32.gmra.mrb[0].mxu0 %v2413
      %v2481 = vpop.f32.mrb[0].mxu0
      %v2482 = vadd.f32 0.0, %v2481
      %v2483 = vpop.f32.mrb[0].mxu0
      %2484 = vdwg.mxu0
      %2485 = vmatprep.subr.mxu0 0.0
      %2486 = vmatpush1.msra.mxu0 %v2482
      %2487 = vmatprep.subr.mxu0 0.0
      %2488 = vmatpush1.msra.mxu0 0.0
      %2489 = vmatprep.subr.mxu0 0.0
      %2490 = vmatpush1.msra.mxu0 0.0
      %2491 = vmatprep.subr.mxu0 0.0
      %2492 = vmatpush1.msra.mxu0 0.0
      %2493 = vmatprep.subr.mxu0 0.0
      %2494 = vmatpush1.msra.mxu0 0.0
      %2495 = vmatprep.subr.mxu0 0.0
      %2496 = vmatpush1.msra.mxu0 0.0
      %2497 = vmatprep.subr.mxu0 0.0
      %2498 = vmatpush1.msra.mxu0 0.0
      %2499 = vmatprep.subr.mxu0 0.0
      %2500 = vmatpush1.msra.mxu0 0.0
      %2501 = vmatprep.subr.mxu0 0.0
      %2502 = vmatpush1.msra.mxu0 0.0
      %2503 = vmatprep.subr.mxu0 0.0
      %2504 = vmatpush1.msra.mxu0 0.0
      %2505 = vmatprep.subr.mxu0 0.0
      %2506 = vmatpush1.msra.mxu0 0.0
      %2507 = vmatprep.subr.mxu0 0.0
      %2508 = vmatpush1.msra.mxu0 0.0
      %2509 = vmatprep.subr.mxu0 0.0
      %2510 = vmatpush1.msra.mxu0 0.0
      %2511 = vmatprep.subr.mxu0 0.0
      %2512 = vmatpush1.msra.mxu0 0.0
      %2513 = vmatprep.subr.mxu0 0.0
      %2514 = vmatpush1.msra.mxu0 0.0
      %2515 = vmatprep.subr.mxu0 0.0
      %2516 = vmatpush1.msra.mxu0 0.0
      %2517 = vmatprep.subr.mxu0 0.0
      %2518 = vmatpush1.msra.mxu0 0.0
      %2519 = vmatprep.subr.mxu0 0.0
      %2520 = vmatpush1.msra.mxu0 0.0
      %2521 = vmatprep.subr.mxu0 0.0
      %2522 = vmatpush1.msra.mxu0 0.0
      %2523 = vmatprep.subr.mxu0 0.0
      %2524 = vmatpush1.msra.mxu0 0.0
      %2525 = vmatprep.subr.mxu0 0.0
      %2526 = vmatpush1.msra.mxu0 0.0
      %2527 = vmatprep.subr.mxu0 0.0
      %2528 = vmatpush1.msra.mxu0 0.0
      %2529 = vmatprep.subr.mxu0 0.0
      %2530 = vmatpush1.msra.mxu0 0.0
      %2531 = vmatprep.subr.mxu0 0.0
      %2532 = vmatpush1.msra.mxu0 0.0
      %2533 = vmatprep.subr.mxu0 0.0
      %2534 = vmatpush1.msra.mxu0 0.0
      %2535 = vmatprep.subr.mxu0 0.0
      %2536 = vmatpush1.msra.mxu0 0.0
      %2537 = vmatprep.subr.mxu0 0.0
      %2538 = vmatpush1.msra.mxu0 0.0
      %2539 = vmatprep.subr.mxu0 0.0
      %2540 = vmatpush1.msra.mxu0 0.0
      %2541 = vmatprep.subr.mxu0 0.0
      %2542 = vmatpush1.msra.mxu0 0.0
      %2543 = vmatprep.subr.mxu0 0.0
      %2544 = vmatpush1.msra.mxu0 0.0
      %2545 = vmatprep.subr.mxu0 0.0
      %2546 = vmatpush1.msra.mxu0 0.0
      %2547 = vmatprep.subr.mxu0 0.0
      %2548 = vmatpush1.msra.mxu0 0.0
      %2549 = vmatprep.mubr.f32.mxu0 0.0
      %2550 = vmatmul.mubr.f32.gmra.mrb[0].mxu0 %v1030
      %v2551 = vpop.f32.mrb[0].mxu0
      %v2552 = vadd.f32 0.0, %v2551
      %v2553 = vpop.f32.mrb[0].mxu0
      %2554 = vdwg.mxu0
      %v2555 = vsub.f32 %v1102, %v2552
      %v2557 = vsel %vm654, %v2552, 0
      %2559 = vmatprep.subr.mxu0 0.0
      %2560 = vmatpush1.msra.mxu0 %v2555
      %2561 = vmatprep.subr.mxu0 0.0
      %2562 = vmatpush1.msra.mxu0 0.0
      %2563 = vmatprep.subr.mxu0 0.0
      %2564 = vmatpush1.msra.mxu0 0.0
      %2565 = vmatprep.subr.mxu0 0.0
      %2566 = vmatpush1.msra.mxu0 0.0
      %2567 = vmatprep.subr.mxu0 0.0
      %2568 = vmatpush1.msra.mxu0 0.0
      %2569 = vmatprep.subr.mxu0 0.0
      %2570 = vmatpush1.msra.mxu0 0.0
      %2571 = vmatprep.subr.mxu0 0.0
      %2572 = vmatpush1.msra.mxu0 0.0
      %2573 = vmatprep.subr.mxu0 0.0
      %2574 = vmatpush1.msra.mxu0 0.0
      %2575 = vmatprep.subr.mxu0 0.0
      %2576 = vmatpush1.msra.mxu0 0.0
      %2577 = vmatprep.subr.mxu0 0.0
      %2578 = vmatpush1.msra.mxu0 0.0
      %2579 = vmatprep.subr.mxu0 0.0
      %2580 = vmatpush1.msra.mxu0 0.0
      %2581 = vmatprep.subr.mxu0 0.0
      %2582 = vmatpush1.msra.mxu0 0.0
      %2583 = vmatprep.subr.mxu0 0.0
      %2584 = vmatpush1.msra.mxu0 0.0
      %2585 = vmatprep.subr.mxu0 0.0
      %2586 = vmatpush1.msra.mxu0 0.0
      %2587 = vmatprep.subr.mxu0 0.0
      %2588 = vmatpush1.msra.mxu0 0.0
      %2589 = vmatprep.subr.mxu0 0.0
      %2590 = vmatpush1.msra.mxu0 0.0
      %2591 = vmatprep.subr.mxu0 0.0
      %2592 = vmatpush1.msra.mxu0 0.0
      %2593 = vmatprep.subr.mxu0 0.0
      %2594 = vmatpush1.msra.mxu0 0.0
      %2595 = vmatprep.subr.mxu0 0.0
      %2596 = vmatpush1.msra.mxu0 0.0
      %2597 = vmatprep.subr.mxu0 0.0
      %2598 = vmatpush1.msra.mxu0 0.0
      %2599 = vmatprep.subr.mxu0 0.0
      %2600 = vmatpush1.msra.mxu0 0.0
      %2601 = vmatprep.subr.mxu0 0.0
      %2602 = vmatpush1.msra.mxu0 0.0
      %2603 = vmatprep.subr.mxu0 0.0
      %2604 = vmatpush1.msra.mxu0 0.0
      %2605 = vmatprep.subr.mxu0 0.0
      %2606 = vmatpush1.msra.mxu0 0.0
      %2607 = vmatprep.subr.mxu0 0.0
      %2608 = vmatpush1.msra.mxu0 0.0
      %2609 = vmatprep.subr.mxu0 0.0
      %2610 = vmatpush1.msra.mxu0 0.0
      %2611 = vmatprep.subr.mxu0 0.0
      %2612 = vmatpush1.msra.mxu0 0.0
      %2613 = vmatprep.subr.mxu0 0.0
      %2614 = vmatpush1.msra.mxu0 0.0
      %2615 = vmatprep.subr.mxu0 0.0
      %2616 = vmatpush1.msra.mxu0 0.0
      %2617 = vmatprep.subr.mxu0 0.0
      %2618 = vmatpush1.msra.mxu0 0.0
      %2619 = vmatprep.subr.mxu0 0.0
      %2620 = vmatpush1.msra.mxu0 0.0
      %2621 = vmatprep.subr.mxu0 0.0
      %2622 = vmatpush1.msra.mxu0 0.0
      %2623 = vmatprep.mubr.f32.mxu0 0.0
      %2624 = vmatmul.mubr.f32.gmra.mrb[0].mxu0 %v2557
      %v2625 = vpop.f32.mrb[0].mxu0
      %v2626 = vadd.f32 0.0, %v2625
      %v2627 = vpop.f32.mrb[0].mxu0
      %2628 = vdwg.mxu0
      %v2629 = vsub.f32 %v1104, %v2626
      %2630 = vmatprep.subr.mxu0 0.0
      %2631 = vmatpush1.msra.mxu0 %v2629
      %2632 = vmatprep.subr.mxu0 0.0
      %2633 = vmatpush1.msra.mxu0 0.0
      %2634 = vmatprep.subr.mxu0 0.0
      %2635 = vmatpush1.msra.mxu0 0.0
      %2636 = vmatprep.subr.mxu0 0.0
      %2637 = vmatpush1.msra.mxu0 0.0
      %2638 = vmatprep.subr.mxu0 0.0
      %2639 = vmatpush1.msra.mxu0 0.0
      %2640 = vmatprep.subr.mxu0 0.0
      %2641 = vmatpush1.msra.mxu0 0.0
      %2642 = vmatprep.subr.mxu0 0.0
      %2643 = vmatpush1.msra.mxu0 0.0
      %2644 = vmatprep.subr.mxu0 0.0
      %2645 = vmatpush1.msra.mxu0 0.0
      %2646 = vmatprep.subr.mxu0 0.0
      %2647 = vmatpush1.msra.mxu0 0.0
      %2648 = vmatprep.subr.mxu0 0.0
      %2649 = vmatpush1.msra.mxu0 0.0
      %2650 = vmatprep.subr.mxu0 0.0
      %2651 = vmatpush1.msra.mxu0 0.0
      %2652 = vmatprep.subr.mxu0 0.0
      %2653 = vmatpush1.msra.mxu0 0.0
      %2654 = vmatprep.subr.mxu0 0.0
      %2655 = vmatpush1.msra.mxu0 0.0
      %2656 = vmatprep.subr.mxu0 0.0
      %2657 = vmatpush1.msra.mxu0 0.0
      %2658 = vmatprep.subr.mxu0 0.0
      %2659 = vmatpush1.msra.mxu0 0.0
      %2660 = vmatprep.subr.mxu0 0.0
      %2661 = vmatpush1.msra.mxu0 0.0
      %2662 = vmatprep.subr.mxu0 0.0
      %2663 = vmatpush1.msra.mxu0 0.0
      %2664 = vmatprep.subr.mxu0 0.0
      %2665 = vmatpush1.msra.mxu0 0.0
      %2666 = vmatprep.subr.mxu0 0.0
      %2667 = vmatpush1.msra.mxu0 0.0
      %2668 = vmatprep.subr.mxu0 0.0
      %2669 = vmatpush1.msra.mxu0 0.0
      %2670 = vmatprep.subr.mxu0 0.0
      %2671 = vmatpush1.msra.mxu0 0.0
      %2672 = vmatprep.subr.mxu0 0.0
      %2673 = vmatpush1.msra.mxu0 0.0
      %2674 = vmatprep.subr.mxu0 0.0
      %2675 = vmatpush1.msra.mxu0 0.0
      %2676 = vmatprep.subr.mxu0 0.0
      %2677 = vmatpush1.msra.mxu0 0.0
      %2678 = vmatprep.subr.mxu0 0.0
      %2679 = vmatpush1.msra.mxu0 0.0
      %2680 = vmatprep.subr.mxu0 0.0
      %2681 = vmatpush1.msra.mxu0 0.0
      %2682 = vmatprep.subr.mxu0 0.0
      %2683 = vmatpush1.msra.mxu0 0.0
      %2684 = vmatprep.subr.mxu0 0.0
      %2685 = vmatpush1.msra.mxu0 0.0
      %2686 = vmatprep.subr.mxu0 0.0
      %2687 = vmatpush1.msra.mxu0 0.0
      %2688 = vmatprep.subr.mxu0 0.0
      %2689 = vmatpush1.msra.mxu0 0.0
      %2690 = vmatprep.subr.mxu0 0.0
      %2691 = vmatpush1.msra.mxu0 0.0
      %2692 = vmatprep.subr.mxu0 0.0
      %2693 = vmatpush1.msra.mxu0 0.0
      %2694 = vmatprep.mubr.f32.mxu0 0.0
      %2695 = vmatmul.mubr.f32.gmra.mrb[0].mxu0 %v2557
      %v2696 = vpop.f32.mrb[0].mxu0
      %v2697 = vadd.f32 0.0, %v2696
      %v2698 = vpop.f32.mrb[0].mxu0
      %2699 = vdwg.mxu0
      %v2700 = vsub.f32 %v1179, %v2697
      %v2701 = vmul.f32 %v2482, 0.25
      %v2703 = vsel %vm654, %v2701, 0
      %2705 = vmatprep.subr.mxu0 0.0
      %2706 = vmatpush1.msra.mxu0 %v2700
      %2707 = vmatprep.subr.mxu0 0.0
      %2708 = vmatpush1.msra.mxu0 0.0
      %2709 = vmatprep.subr.mxu0 0.0
      %2710 = vmatpush1.msra.mxu0 0.0
      %2711 = vmatprep.subr.mxu0 0.0
      %2712 = vmatpush1.msra.mxu0 0.0
      %2713 = vmatprep.subr.mxu0 0.0
      %2714 = vmatpush1.msra.mxu0 0.0
      %2715 = vmatprep.subr.mxu0 0.0
      %2716 = vmatpush1.msra.mxu0 0.0
      %2717 = vmatprep.subr.mxu0 0.0
      %2718 = vmatpush1.msra.mxu0 0.0
      %2719 = vmatprep.subr.mxu0 0.0
      %2720 = vmatpush1.msra.mxu0 0.0
      %2721 = vmatprep.subr.mxu0 0.0
      %2722 = vmatpush1.msra.mxu0 0.0
      %2723 = vmatprep.subr.mxu0 0.0
      %2724 = vmatpush1.msra.mxu0 0.0
      %2725 = vmatprep.subr.mxu0 0.0
      %2726 = vmatpush1.msra.mxu0 0.0
      %2727 = vmatprep.subr.mxu0 0.0
      %2728 = vmatpush1.msra.mxu0 0.0
      %2729 = vmatprep.subr.mxu0 0.0
      %2730 = vmatpush1.msra.mxu0 0.0
      %2731 = vmatprep.subr.mxu0 0.0
      %2732 = vmatpush1.msra.mxu0 0.0
      %2733 = vmatprep.subr.mxu0 0.0
      %2734 = vmatpush1.msra.mxu0 0.0
      %2735 = vmatprep.subr.mxu0 0.0
      %2736 = vmatpush1.msra.mxu0 0.0
      %2737 = vmatprep.subr.mxu0 0.0
      %2738 = vmatpush1.msra.mxu0 0.0
      %2739 = vmatprep.subr.mxu0 0.0
      %2740 = vmatpush1.msra.mxu0 0.0
      %2741 = vmatprep.subr.mxu0 0.0
      %2742 = vmatpush1.msra.mxu0 0.0
      %2743 = vmatprep.subr.mxu0 0.0
      %2744 = vmatpush1.msra.mxu0 0.0
      %2745 = vmatprep.subr.mxu0 0.0
      %2746 = vmatpush1.msra.mxu0 0.0
      %2747 = vmatprep.subr.mxu0 0.0
      %2748 = vmatpush1.msra.mxu0 0.0
      %2749 = vmatprep.subr.mxu0 0.0
      %2750 = vmatpush1.msra.mxu0 0.0
      %2751 = vmatprep.subr.mxu0 0.0
      %2752 = vmatpush1.msra.mxu0 0.0
      %2753 = vmatprep.subr.mxu0 0.0
      %2754 = vmatpush1.msra.mxu0 0.0
      %2755 = vmatprep.subr.mxu0 0.0
      %2756 = vmatpush1.msra.mxu0 0.0
      %2757 = vmatprep.subr.mxu0 0.0
      %2758 = vmatpush1.msra.mxu0 0.0
      %2759 = vmatprep.subr.mxu0 0.0
      %2760 = vmatpush1.msra.mxu0 0.0
      %2761 = vmatprep.subr.mxu0 0.0
      %2762 = vmatpush1.msra.mxu0 0.0
      %2763 = vmatprep.subr.mxu0 0.0
      %2764 = vmatpush1.msra.mxu0 0.0
      %2765 = vmatprep.subr.mxu0 0.0
      %2766 = vmatpush1.msra.mxu0 0.0
      %2767 = vmatprep.subr.mxu0 0.0
      %2768 = vmatpush1.msra.mxu0 0.0
      %2769 = vmatprep.mubr.f32.mxu0 0.0
      %2770 = vmatmul.mubr.f32.gmra.mrb[0].mxu0 %v2703
      %v2771 = vpop.f32.mrb[0].mxu0
      %v2772 = vadd.f32 0.0, %v2771
      %v2773 = vpop.f32.mrb[0].mxu0
      %2774 = vdwg.mxu0
      %v2775 = vpack.c.bf16 %v975, %v975
      %v2784 = vunpack.c.l.b16 %v354
      %v2785 = vunpack.c.l.b16 %v355
      %v2786 = vunpack.c.l.b16 %v356
      %v2787 = vunpack.c.l.b16 %v357
      %v2788 = vunpack.c.l.b16 %v358
      %v2789 = vunpack.c.l.b16 %v359
      %v2790 = vunpack.c.l.b16 %v360
      %v2791 = vunpack.c.l.b16 %v361
      %v2792 = vpack.c.b16 %v2785, %v2784
      %v2793 = vpack.c.b16 %v2787, %v2786
      %v2794 = vpack.c.b16 %v2789, %v2788
      %v2795 = vpack.c.b16 %v2791, %v2790
      %v2801 = vsel %vm964, %v2775, 0
      %2803 = vmatprep.subr.bf16.mxu0 0
      %2804 = vmatpush1.bf16.msra.mxu0 %v2792
      %2805 = vmatprep.subr.bf16.mxu0 0
      %2806 = vmatpush1.bf16.msra.mxu0 %v2793
      %2807 = vmatprep.subr.bf16.mxu0 0
      %2808 = vmatpush1.bf16.msra.mxu0 %v2794
      %2809 = vmatprep.subr.bf16.mxu0 0
      %2810 = vmatpush1.bf16.msra.mxu0 %v2795
      %2811 = vmatprep.subr.bf16.mxu0 0
      %2812 = vmatpush1.bf16.msra.mxu0 0
      %2813 = vmatprep.subr.bf16.mxu0 0
      %2814 = vmatpush1.bf16.msra.mxu0 0
      %2815 = vmatprep.subr.bf16.mxu0 0
      %2816 = vmatpush1.bf16.msra.mxu0 0
      %2817 = vmatprep.subr.bf16.mxu0 0
      %2818 = vmatpush1.bf16.msra.mxu0 0
      %2819 = vmatprep.subr.bf16.mxu0 0
      %2820 = vmatpush1.bf16.msra.mxu0 0
      %2821 = vmatprep.subr.bf16.mxu0 0
      %2822 = vmatpush1.bf16.msra.mxu0 0
      %2823 = vmatprep.subr.bf16.mxu0 0
      %2824 = vmatpush1.bf16.msra.mxu0 0
      %2825 = vmatprep.subr.bf16.mxu0 0
      %2826 = vmatpush1.bf16.msra.mxu0 0
      %2827 = vmatprep.subr.bf16.mxu0 0
      %2828 = vmatpush1.bf16.msra.mxu0 0
      %2829 = vmatprep.subr.bf16.mxu0 0
      %2830 = vmatpush1.bf16.msra.mxu0 0
      %2831 = vmatprep.subr.bf16.mxu0 0
      %2832 = vmatpush1.bf16.msra.mxu0 0
      %2833 = vmatprep.subr.bf16.mxu0 0
      %2834 = vmatpush1.bf16.msra.mxu0 0
      %2835 = vmatprep.mubr.bf16.mxu0 0
      %2836 = vmatmul.mubr.bf16.gmra.mrb[0].mxu0 %v2801
      %v2837 = vpop.f32.mrb[0].mxu0
      %v2838 = vadd.f32 0.0, %v2837
      %v2839 = vpop.f32.mrb[0].mxu0
      %v2840 = vpop.f32.mrb[0].mxu0
      %v2841 = vpop.f32.mrb[0].mxu0
      %2842 = vdwg.mxu0
      %v2844 = vsel %vm654, %v2772, 0
      %2846 = vmatprep.subr.mxu0 0.0
      %2847 = vmatpush1.msra.mxu0 %v2838
      %2848 = vmatprep.subr.mxu0 0.0
      %2849 = vmatpush1.msra.mxu0 0.0
      %2850 = vmatprep.subr.mxu0 0.0
      %2851 = vmatpush1.msra.mxu0 0.0
      %2852 = vmatprep.subr.mxu0 0.0
      %2853 = vmatpush1.msra.mxu0 0.0
      %2854 = vmatprep.subr.mxu0 0.0
      %2855 = vmatpush1.msra.mxu0 0.0
      %2856 = vmatprep.subr.mxu0 0.0
      %2857 = vmatpush1.msra.mxu0 0.0
      %2858 = vmatprep.subr.mxu0 0.0
      %2859 = vmatpush1.msra.mxu0 0.0
      %2860 = vmatprep.subr.mxu0 0.0
      %2861 = vmatpush1.msra.mxu0 0.0
      %2862 = vmatprep.subr.mxu0 0.0
      %2863 = vmatpush1.msra.mxu0 0.0
      %2864 = vmatprep.subr.mxu0 0.0
      %2865 = vmatpush1.msra.mxu0 0.0
      %2866 = vmatprep.subr.mxu0 0.0
      %2867 = vmatpush1.msra.mxu0 0.0
      %2868 = vmatprep.subr.mxu0 0.0
      %2869 = vmatpush1.msra.mxu0 0.0
      %2870 = vmatprep.subr.mxu0 0.0
      %2871 = vmatpush1.msra.mxu0 0.0
      %2872 = vmatprep.subr.mxu0 0.0
      %2873 = vmatpush1.msra.mxu0 0.0
      %2874 = vmatprep.subr.mxu0 0.0
      %2875 = vmatpush1.msra.mxu0 0.0
      %2876 = vmatprep.subr.mxu0 0.0
      %2877 = vmatpush1.msra.mxu0 0.0
      %2878 = vmatprep.subr.mxu0 0.0
      %2879 = vmatpush1.msra.mxu0 0.0
      %2880 = vmatprep.subr.mxu0 0.0
      %2881 = vmatpush1.msra.mxu0 0.0
      %2882 = vmatprep.subr.mxu0 0.0
      %2883 = vmatpush1.msra.mxu0 0.0
      %2884 = vmatprep.subr.mxu0 0.0
      %2885 = vmatpush1.msra.mxu0 0.0
      %2886 = vmatprep.subr.mxu0 0.0
      %2887 = vmatpush1.msra.mxu0 0.0
      %2888 = vmatprep.subr.mxu0 0.0
      %2889 = vmatpush1.msra.mxu0 0.0
      %2890 = vmatprep.subr.mxu0 0.0
      %2891 = vmatpush1.msra.mxu0 0.0
      %2892 = vmatprep.subr.mxu0 0.0
      %2893 = vmatpush1.msra.mxu0 0.0
      %2894 = vmatprep.subr.mxu0 0.0
      %2895 = vmatpush1.msra.mxu0 0.0
      %2896 = vmatprep.subr.mxu0 0.0
      %2897 = vmatpush1.msra.mxu0 0.0
      %2898 = vmatprep.subr.mxu0 0.0
      %2899 = vmatpush1.msra.mxu0 0.0
      %2900 = vmatprep.subr.mxu0 0.0
      %2901 = vmatpush1.msra.mxu0 0.0
      %2902 = vmatprep.subr.mxu0 0.0
      %2903 = vmatpush1.msra.mxu0 0.0
      %2904 = vmatprep.subr.mxu0 0.0
      %2905 = vmatpush1.msra.mxu0 0.0
      %2906 = vmatprep.subr.mxu0 0.0
      %2907 = vmatpush1.msra.mxu0 0.0
      %2908 = vmatprep.subr.mxu0 0.0
      %2909 = vmatpush1.msra.mxu0 0.0
      %2910 = vmatprep.mubr.f32.mxu0 0.0
      %2911 = vmatmul.mubr.f32.gmra.mrb[0].mxu0 %v2844
      %v2912 = vpop.f32.mrb[0].mxu0
      %v2913 = vadd.f32 0.0, %v2912
      %v2914 = vpop.f32.mrb[0].mxu0
      %2915 = vdwg.mxu0
      %v2916 = vpack.c.bf16 %v736, %v735
      %v2917 = vpack.c.bf16 %v738, %v737
      %v2918 = vpack.c.bf16 %v740, %v739
      %v2919 = vpack.c.bf16 %v742, %v741
      %v2920 = vpack.c.bf16 %v2913, %v2913
      %v2922 = vsel %vm654, %v2916, 0
      %v2925 = vsel %vm654, %v2917, 0
      %v2928 = vsel %vm654, %v2918, 0
      %v2931 = vsel %vm654, %v2919, 0
      %vm2933 = vcmask 1043456
      %v2935 = vsel %vm2933, %v2920, 0
      %2937 = vmatprep.subr.bf16.mxu0 0
      %2938 = vmatpush1.bf16.msra.mxu0 %v2935
      %2939 = vmatprep.subr.bf16.mxu0 0
      %2940 = vmatpush1.bf16.msra.mxu0 0
      %2941 = vmatprep.subr.bf16.mxu0 0
      %2942 = vmatpush1.bf16.msra.mxu0 0
      %2943 = vmatprep.subr.bf16.mxu0 0
      %2944 = vmatpush1.bf16.msra.mxu0 0
      %2945 = vmatprep.subr.bf16.mxu0 0
      %2946 = vmatpush1.bf16.msra.mxu0 0
      %2947 = vmatprep.subr.bf16.mxu0 0
      %2948 = vmatpush1.bf16.msra.mxu0 0
      %2949 = vmatprep.subr.bf16.mxu0 0
      %2950 = vmatpush1.bf16.msra.mxu0 0
      %2951 = vmatprep.subr.bf16.mxu0 0
      %2952 = vmatpush1.bf16.msra.mxu0 0
      %2953 = vmatprep.subr.bf16.mxu0 0
      %2954 = vmatpush1.bf16.msra.mxu0 0
      %2955 = vmatprep.subr.bf16.mxu0 0
      %2956 = vmatpush1.bf16.msra.mxu0 0
      %2957 = vmatprep.subr.bf16.mxu0 0
      %2958 = vmatpush1.bf16.msra.mxu0 0
      %2959 = vmatprep.subr.bf16.mxu0 0
      %2960 = vmatpush1.bf16.msra.mxu0 0
      %2961 = vmatprep.subr.bf16.mxu0 0
      %2962 = vmatpush1.bf16.msra.mxu0 0
      %2963 = vmatprep.subr.bf16.mxu0 0
      %2964 = vmatpush1.bf16.msra.mxu0 0
      %2965 = vmatprep.subr.bf16.mxu0 0
      %2966 = vmatpush1.bf16.msra.mxu0 0
      %2967 = vmatprep.subr.bf16.mxu0 0
      %2968 = vmatpush1.bf16.msra.mxu0 0
      %2969 = vmatprep.mubr.bf16.mxu0 0
      %2970 = vmatmul.mubr.bf16.gmra.mrb[0].mxu0 %v2922
      %v2971 = vpop.f32.mrb[0].mxu0
      %v2972 = vadd.f32 0.0, %v2971
      %v2973 = vpop.f32.mrb[0].mxu0
      %v2974 = vpop.f32.mrb[0].mxu0
      %v2975 = vadd.f32 0.0, %v2974
      %v2976 = vpop.f32.mrb[0].mxu0
      %2977 = vmatprep.mubr.bf16.mxu0 0
      %2978 = vmatmul.mubr.bf16.gmra.mrb[0].mxu0 %v2925
      %v2979 = vpop.f32.mrb[0].mxu0
      %v2980 = vadd.f32 0.0, %v2979
      %v2981 = vpop.f32.mrb[0].mxu0
      %v2982 = vpop.f32.mrb[0].mxu0
      %v2983 = vadd.f32 0.0, %v2982
      %v2984 = vpop.f32.mrb[0].mxu0
      %2985 = vmatprep.mubr.bf16.mxu0 0
      %2986 = vmatmul.mubr.bf16.gmra.mrb[0].mxu0 %v2928
      %v2987 = vpop.f32.mrb[0].mxu0
      %v2988 = vadd.f32 0.0, %v2987
      %v2989 = vpop.f32.mrb[0].mxu0
      %v2990 = vpop.f32.mrb[0].mxu0
      %v2991 = vadd.f32 0.0, %v2990
      %v2992 = vpop.f32.mrb[0].mxu0
      %2993 = vmatprep.mubr.bf16.mxu0 0
      %2994 = vmatmul.mubr.bf16.gmra.mrb[0].mxu0 %v2931
      %v2995 = vpop.f32.mrb[0].mxu0
      %v2996 = vadd.f32 0.0, %v2995
      %v2997 = vpop.f32.mrb[0].mxu0
      %v2998 = vpop.f32.mrb[0].mxu0
      %v2999 = vadd.f32 0.0, %v2998
      %v3000 = vpop.f32.mrb[0].mxu0
      %3001 = vdwg.mxu0
      %v3002 = vpack.c.bf16 %v2975, %v2972
      %v3003 = vpack.c.bf16 %v2983, %v2980
      %v3004 = vpack.c.bf16 %v2991, %v2988
      %v3005 = vpack.c.bf16 %v2999, %v2996
      %v3010 = vunpack.c.l.b16 %v3002
      %v3011 = vunpack.c.h.b16 %v3002
      %v3012 = vunpack.c.l.b16 %v3003
      %v3013 = vunpack.c.h.b16 %v3003
      %v3014 = vunpack.c.l.b16 %v3004
      %v3015 = vunpack.c.h.b16 %v3004
      %v3016 = vunpack.c.l.b16 %v3005
      %v3017 = vunpack.c.h.b16 %v3005
      %v3018 = vpack.c.b16 %v3010, %v3010
      %v3019 = vpack.c.b16 %v3011, %v3011
      %v3020 = vpack.c.b16 %v3012, %v3012
      %v3021 = vpack.c.b16 %v3013, %v3013
      %v3022 = vpack.c.b16 %v3014, %v3014
      %v3023 = vpack.c.b16 %v3015, %v3015
      %v3024 = vpack.c.b16 %v3016, %v3016
      %v3025 = vpack.c.b16 %v3017, %v3017
      %vm3034 = vcmask 257024
      %3035 = vst.msk [vmem:[%s332] sm:$0xf] %vm3034, %v3018
      %3036 = vst.msk [vmem:[%s332 + $0x4] sm:$0xf] %vm3034, %v3019
      %3037 = vst.msk [vmem:[%s332 + $0x8] sm:$0xf] %vm3034, %v3020
      %3038 = vst.msk [vmem:[%s332 + $0xc] sm:$0xf] %vm3034, %v3021
      %3039 = vst.msk [vmem:[%s332 + $0x10] sm:$0xf] %vm3034, %v3022
      %3040 = vst.msk [vmem:[%s332 + $0x14] sm:$0xf] %vm3034, %v3023
      %3041 = vst.msk [vmem:[%s332 + $0x18] sm:$0xf] %vm3034, %v3024
      %3042 = vst.msk [vmem:[%s332 + $0x1c] sm:$0xf] %vm3034, %v3025
      %s3043 = scalar_lea.vmem %s296, 32
      %v3044 = vld [vmem:[%s3043] sm:$0xf]
      %v3045 = vld [vmem:[%s3043 + $0x4] sm:$0xf]
      %v3046 = vld [vmem:[%s3043 + $0x8] sm:$0xf]
      %v3047 = vld [vmem:[%s3043 + $0xc] sm:$0xf]
      %v3048 = vld [vmem:[%s3043 + $0x10] sm:$0xf]
      %v3049 = vld [vmem:[%s3043 + $0x14] sm:$0xf]
      %v3050 = vld [vmem:[%s3043 + $0x18] sm:$0xf]
      %v3051 = vld [vmem:[%s3043 + $0x1c] sm:$0xf]
      %s3052 = scalar_lea.vmem %s307, 32
      %v3053 = vld [vmem:[%s3052] sm:$0xf]
      %v3054 = vld [vmem:[%s3052 + $0x4] sm:$0xf]
      %v3055 = vld [vmem:[%s3052 + $0x8] sm:$0xf]
      %v3056 = vld [vmem:[%s3052 + $0xc] sm:$0xf]
      %v3057 = vld [vmem:[%s3052 + $0x10] sm:$0xf]
      %v3058 = vld [vmem:[%s3052 + $0x14] sm:$0xf]
      %v3059 = vld [vmem:[%s3052 + $0x18] sm:$0xf]
      %v3060 = vld [vmem:[%s3052 + $0x1c] sm:$0xf]
      %s3061 = scalar_lea.vmem %s318, 32
      %v3062 = vld [vmem:[%s3061] sm:$0xf]
      %v3063 = vld [vmem:[%s3061 + $0x4] sm:$0xf]
      %v3064 = vld [vmem:[%s3061 + $0x8] sm:$0xf]
      %v3065 = vld [vmem:[%s3061 + $0xc] sm:$0xf]
      %v3066 = vld [vmem:[%s3061 + $0x10] sm:$0xf]
      %v3067 = vld [vmem:[%s3061 + $0x14] sm:$0xf]
      %v3068 = vld [vmem:[%s3061 + $0x18] sm:$0xf]
      %v3069 = vld [vmem:[%s3061 + $0x1c] sm:$0xf]
      %v3070 = vunpack.c.l.bf16 %v3044
      %v3071 = vunpack.c.l.bf16 %v3045
      %v3072 = vunpack.c.l.bf16 %v3046
      %v3073 = vunpack.c.l.bf16 %v3047
      %v3074 = vunpack.c.l.bf16 %v3048
      %v3075 = vunpack.c.l.bf16 %v3049
      %v3076 = vunpack.c.l.bf16 %v3050
      %v3077 = vunpack.c.l.bf16 %v3051
      %v3078 = vsel %vm370, %v3070, 0.0
      %v3079 = vrot.slane %v3078, 4
      %v3080 = vadd.f32 %v3078, %v3079
      %v3081 = vrot.slane %v3080, 2
      %v3082 = vadd.f32 %v3080, %v3081
      %v3083 = vrot.slane %v3082, 1
      %v3084 = vadd.f32 %v3082, %v3083
      %v3085 = vsel %vm370, %v3071, 0.0
      %v3086 = vrot.slane %v3085, 4
      %v3087 = vadd.f32 %v3085, %v3086
      %v3088 = vrot.slane %v3087, 2
      %v3089 = vadd.f32 %v3087, %v3088
      %v3090 = vrot.slane %v3089, 1
      %v3091 = vadd.f32 %v3089, %v3090
      %v3092 = vsel %vm370, %v3072, 0.0
      %v3093 = vrot.slane %v3092, 4
      %v3094 = vadd.f32 %v3092, %v3093
      %v3095 = vrot.slane %v3094, 2
      %v3096 = vadd.f32 %v3094, %v3095
      %v3097 = vrot.slane %v3096, 1
      %v3098 = vadd.f32 %v3096, %v3097
      %v3099 = vsel %vm370, %v3073, 0.0
      %v3100 = vrot.slane %v3099, 4
      %v3101 = vadd.f32 %v3099, %v3100
      %v3102 = vrot.slane %v3101, 2
      %v3103 = vadd.f32 %v3101, %v3102
      %v3104 = vrot.slane %v3103, 1
      %v3105 = vadd.f32 %v3103, %v3104
      %v3106 = vsel %vm370, %v3074, 0.0
      %v3107 = vrot.slane %v3106, 4
      %v3108 = vadd.f32 %v3106, %v3107
      %v3109 = vrot.slane %v3108, 2
      %v3110 = vadd.f32 %v3108, %v3109
      %v3111 = vrot.slane %v3110, 1
      %v3112 = vadd.f32 %v3110, %v3111
      %v3113 = vsel %vm370, %v3075, 0.0
      %v3114 = vrot.slane %v3113, 4
      %v3115 = vadd.f32 %v3113, %v3114
      %v3116 = vrot.slane %v3115, 2
      %v3117 = vadd.f32 %v3115, %v3116
      %v3118 = vrot.slane %v3117, 1
      %v3119 = vadd.f32 %v3117, %v3118
      %v3120 = vsel %vm370, %v3076, 0.0
      %v3121 = vrot.slane %v3120, 4
      %v3122 = vadd.f32 %v3120, %v3121
      %v3123 = vrot.slane %v3122, 2
      %v3124 = vadd.f32 %v3122, %v3123
      %v3125 = vrot.slane %v3124, 1
      %v3126 = vadd.f32 %v3124, %v3125
      %v3127 = vsel %vm370, %v3077, 0.0
      %v3128 = vrot.slane %v3127, 4
      %v3129 = vadd.f32 %v3127, %v3128
      %v3130 = vrot.slane %v3129, 2
      %v3131 = vadd.f32 %v3129, %v3130
      %v3132 = vrot.slane %v3131, 1
      %v3133 = vadd.f32 %v3131, %v3132
      %v3134 = vmul.f32 %v3084, 0.125
      %v3135 = vmul.f32 %v3091, 0.125
      %v3136 = vmul.f32 %v3098, 0.125
      %v3137 = vmul.f32 %v3105, 0.125
      %v3138 = vmul.f32 %v3112, 0.125
      %v3139 = vmul.f32 %v3119, 0.125
      %v3140 = vmul.f32 %v3126, 0.125
      %v3141 = vmul.f32 %v3133, 0.125
      %v3142 = vunpack.c.l.bf16 %v3053
      %v3143 = vunpack.c.l.bf16 %v3054
      %v3144 = vunpack.c.l.bf16 %v3055
      %v3145 = vunpack.c.l.bf16 %v3056
      %v3146 = vunpack.c.l.bf16 %v3057
      %v3147 = vunpack.c.l.bf16 %v3058
      %v3148 = vunpack.c.l.bf16 %v3059
      %v3149 = vunpack.c.l.bf16 %v3060
      %v3150 = vsel %vm370, %v3142, 0.0
      %v3151 = vrot.slane %v3150, 4
      %v3152 = vadd.f32 %v3150, %v3151
      %v3153 = vrot.slane %v3152, 2
      %v3154 = vadd.f32 %v3152, %v3153
      %v3155 = vrot.slane %v3154, 1
      %v3156 = vadd.f32 %v3154, %v3155
      %v3157 = vsel %vm370, %v3143, 0.0
      %v3158 = vrot.slane %v3157, 4
      %v3159 = vadd.f32 %v3157, %v3158
      %v3160 = vrot.slane %v3159, 2
      %v3161 = vadd.f32 %v3159, %v3160
      %v3162 = vrot.slane %v3161, 1
      %v3163 = vadd.f32 %v3161, %v3162
      %v3164 = vsel %vm370, %v3144, 0.0
      %v3165 = vrot.slane %v3164, 4
      %v3166 = vadd.f32 %v3164, %v3165
      %v3167 = vrot.slane %v3166, 2
      %v3168 = vadd.f32 %v3166, %v3167
      %v3169 = vrot.slane %v3168, 1
      %v3170 = vadd.f32 %v3168, %v3169
      %v3171 = vsel %vm370, %v3145, 0.0
      %v3172 = vrot.slane %v3171, 4
      %v3173 = vadd.f32 %v3171, %v3172
      %v3174 = vrot.slane %v3173, 2
      %v3175 = vadd.f32 %v3173, %v3174
      %v3176 = vrot.slane %v3175, 1
      %v3177 = vadd.f32 %v3175, %v3176
      %v3178 = vsel %vm370, %v3146, 0.0
      %v3179 = vrot.slane %v3178, 4
      %v3180 = vadd.f32 %v3178, %v3179
      %v3181 = vrot.slane %v3180, 2
      %v3182 = vadd.f32 %v3180, %v3181
      %v3183 = vrot.slane %v3182, 1
      %v3184 = vadd.f32 %v3182, %v3183
      %v3185 = vsel %vm370, %v3147, 0.0
      %v3186 = vrot.slane %v3185, 4
      %v3187 = vadd.f32 %v3185, %v3186
      %v3188 = vrot.slane %v3187, 2
      %v3189 = vadd.f32 %v3187, %v3188
      %v3190 = vrot.slane %v3189, 1
      %v3191 = vadd.f32 %v3189, %v3190
      %v3192 = vsel %vm370, %v3148, 0.0
      %v3193 = vrot.slane %v3192, 4
      %v3194 = vadd.f32 %v3192, %v3193
      %v3195 = vrot.slane %v3194, 2
      %v3196 = vadd.f32 %v3194, %v3195
      %v3197 = vrot.slane %v3196, 1
      %v3198 = vadd.f32 %v3196, %v3197
      %v3199 = vsel %vm370, %v3149, 0.0
      %v3200 = vrot.slane %v3199, 4
      %v3201 = vadd.f32 %v3199, %v3200
      %v3202 = vrot.slane %v3201, 2
      %v3203 = vadd.f32 %v3201, %v3202
      %v3204 = vrot.slane %v3203, 1
      %v3205 = vadd.f32 %v3203, %v3204
      %v3206 = vmul.f32 %v3156, 0.125
      %v3207 = vmul.f32 %v3163, 0.125
      %v3208 = vmul.f32 %v3170, 0.125
      %v3209 = vmul.f32 %v3177, 0.125
      %v3210 = vmul.f32 %v3184, 0.125
      %v3211 = vmul.f32 %v3191, 0.125
      %v3212 = vmul.f32 %v3198, 0.125
      %v3213 = vmul.f32 %v3205, 0.125
      %v3214 = vpack.c.bf16 %v3134, %v3134
      %v3215 = vpack.c.bf16 %v3135, %v3135
      %v3216 = vpack.c.bf16 %v3136, %v3136
      %v3217 = vpack.c.bf16 %v3137, %v3137
      %v3218 = vpack.c.bf16 %v3138, %v3138
      %v3219 = vpack.c.bf16 %v3139, %v3139
      %v3220 = vpack.c.bf16 %v3140, %v3140
      %v3221 = vpack.c.bf16 %v3141, %v3141
      %v3222 = vpack.c.bf16 %v3206, %v3206
      %v3223 = vpack.c.bf16 %v3207, %v3207
      %v3224 = vpack.c.bf16 %v3208, %v3208
      %v3225 = vpack.c.bf16 %v3209, %v3209
      %v3226 = vpack.c.bf16 %v3210, %v3210
      %v3227 = vpack.c.bf16 %v3211, %v3211
      %v3228 = vpack.c.bf16 %v3212, %v3212
      %v3229 = vpack.c.bf16 %v3213, %v3213
      %v3238 = vunpack.c.l.b16 %v3044
      %v3239 = vunpack.c.l.b16 %v3045
      %v3240 = vunpack.c.l.b16 %v3046
      %v3241 = vunpack.c.l.b16 %v3047
      %v3242 = vunpack.c.l.b16 %v3048
      %v3243 = vunpack.c.l.b16 %v3049
      %v3244 = vunpack.c.l.b16 %v3050
      %v3245 = vunpack.c.l.b16 %v3051
      %v3246 = vpack.c.b16 %v3239, %v3238
      %v3247 = vpack.c.b16 %v3241, %v3240
      %v3248 = vpack.c.b16 %v3243, %v3242
      %v3249 = vpack.c.b16 %v3245, %v3244
      %v3258 = vunpack.c.l.b16 %v3222
      %v3259 = vunpack.c.l.b16 %v3223
      %v3260 = vunpack.c.l.b16 %v3224
      %v3261 = vunpack.c.l.b16 %v3225
      %v3262 = vunpack.c.l.b16 %v3226
      %v3263 = vunpack.c.l.b16 %v3227
      %v3264 = vunpack.c.l.b16 %v3228
      %v3265 = vunpack.c.l.b16 %v3229
      %v3266 = vsel %vm559, %v3259, %v3258
      %v3267 = vsel %vm561, %v3260, %v3266
      %v3268 = vsel %vm563, %v3261, %v3267
      %v3269 = vsel %vm565, %v3262, %v3268
      %v3270 = vsel %vm567, %v3263, %v3269
      %v3271 = vsel %vm569, %v3264, %v3270
      %v3272 = vsel %vm571, %v3265, %v3271
      %v3273 = vpack.c.b16 %v3272, %v3272
      %v3275 = vsel %vm370, %v3246, 0
      %v3278 = vsel %vm370, %v3247, 0
      %v3281 = vsel %vm370, %v3248, 0
      %v3284 = vsel %vm370, %v3249, 0
      %v3287 = vsel %vm370, %v3273, 0
      %3289 = vmatprep.subr.bf16.mxu0 0
      %3290 = vmatpush1.bf16.xpose.msra.mxu0 %v3287
      %3291 = vmatprep.subr.bf16.mxu0 0
      %3292 = vmatpush1.bf16.xpose.msra.mxu0 0
      %3293 = vmatprep.subr.bf16.mxu0 0
      %3294 = vmatpush1.bf16.xpose.msra.mxu0 0
      %3295 = vmatprep.subr.bf16.mxu0 0
      %3296 = vmatpush1.bf16.xpose.msra.mxu0 0
      %3297 = vmatprep.subr.bf16.mxu0 0
      %3298 = vmatpush1.bf16.xpose.msra.mxu0 0
      %3299 = vmatprep.subr.bf16.mxu0 0
      %3300 = vmatpush1.bf16.xpose.msra.mxu0 0
      %3301 = vmatprep.subr.bf16.mxu0 0
      %3302 = vmatpush1.bf16.xpose.msra.mxu0 0
      %3303 = vmatprep.subr.bf16.mxu0 0
      %3304 = vmatpush1.bf16.xpose.msra.mxu0 0
      %3305 = vmatprep.subr.bf16.mxu0 0
      %3306 = vmatpush1.bf16.xpose.msra.mxu0 0
      %3307 = vmatprep.subr.bf16.mxu0 0
      %3308 = vmatpush1.bf16.xpose.msra.mxu0 0
      %3309 = vmatprep.subr.bf16.mxu0 0
      %3310 = vmatpush1.bf16.xpose.msra.mxu0 0
      %3311 = vmatprep.subr.bf16.mxu0 0
      %3312 = vmatpush1.bf16.xpose.msra.mxu0 0
      %3313 = vmatprep.subr.bf16.mxu0 0
      %3314 = vmatpush1.bf16.xpose.msra.mxu0 0
      %3315 = vmatprep.subr.bf16.mxu0 0
      %3316 = vmatpush1.bf16.xpose.msra.mxu0 0
      %3317 = vmatprep.subr.bf16.mxu0 0
      %3318 = vmatpush1.bf16.xpose.msra.mxu0 0
      %3319 = vmatprep.subr.bf16.mxu0 0
      %3320 = vmatpush1.bf16.xpose.msra.mxu0 0
      %3321 = vmatprep.mubr.bf16.mxu0 0
      %3322 = vmatmul.mubr.bf16.gmra.mrb[0].mxu0 %v3275
      %v3323 = vpop.f32.mrb[0].mxu0
      %v3324 = vadd.f32 0.0, %v3323
      %v3325 = vpop.f32.mrb[0].mxu0
      %v3326 = vpop.f32.mrb[0].mxu0
      %v3327 = vadd.f32 0.0, %v3326
      %v3328 = vpop.f32.mrb[0].mxu0
      %3329 = vmatprep.mubr.bf16.mxu0 0
      %3330 = vmatmul.mubr.bf16.gmra.mrb[0].mxu0 %v3278
      %v3331 = vpop.f32.mrb[0].mxu0
      %v3332 = vadd.f32 0.0, %v3331
      %v3333 = vpop.f32.mrb[0].mxu0
      %v3334 = vpop.f32.mrb[0].mxu0
      %v3335 = vadd.f32 0.0, %v3334
      %v3336 = vpop.f32.mrb[0].mxu0
      %3337 = vmatprep.mubr.bf16.mxu0 0
      %3338 = vmatmul.mubr.bf16.gmra.mrb[0].mxu0 %v3281
      %v3339 = vpop.f32.mrb[0].mxu0
      %v3340 = vadd.f32 0.0, %v3339
      %v3341 = vpop.f32.mrb[0].mxu0
      %v3342 = vpop.f32.mrb[0].mxu0
      %v3343 = vadd.f32 0.0, %v3342
      %v3344 = vpop.f32.mrb[0].mxu0
      %3345 = vmatprep.mubr.bf16.mxu0 0
      %3346 = vmatmul.mubr.bf16.gmra.mrb[0].mxu0 %v3284
      %v3347 = vpop.f32.mrb[0].mxu0
      %v3348 = vadd.f32 0.0, %v3347
      %v3349 = vpop.f32.mrb[0].mxu0
      %v3350 = vpop.f32.mrb[0].mxu0
      %v3351 = vadd.f32 0.0, %v3350
      %v3352 = vpop.f32.mrb[0].mxu0
      %3353 = vdwg.mxu0
      %v3354 = vsel %vm654, %v3324, -inf
      %3355 = vmax.xlane.f32.xlu0 %v3354
      %v3356 = vpop.xlane.xlu0 %3355
      %v3357 = vsel %vm654, %v3327, -inf
      %3358 = vmax.xlane.f32.xlu0 %v3357
      %v3359 = vpop.xlane.xlu0 %3358
      %v3360 = vsel %vm654, %v3332, -inf
      %3361 = vmax.xlane.f32.xlu0 %v3360
      %v3362 = vpop.xlane.xlu0 %3361
      %v3363 = vsel %vm654, %v3335, -inf
      %3364 = vmax.xlane.f32.xlu0 %v3363
      %v3365 = vpop.xlane.xlu0 %3364
      %v3366 = vsel %vm654, %v3340, -inf
      %3367 = vmax.xlane.f32.xlu0 %v3366
      %v3368 = vpop.xlane.xlu0 %3367
      %v3369 = vsel %vm654, %v3343, -inf
      %3370 = vmax.xlane.f32.xlu0 %v3369
      %v3371 = vpop.xlane.xlu0 %3370
      %v3372 = vsel %vm654, %v3348, -inf
      %3373 = vmax.xlane.f32.xlu0 %v3372
      %v3374 = vpop.xlane.xlu0 %3373
      %v3375 = vsel %vm654, %v3351, -inf
      %3376 = vmax.xlane.f32.xlu0 %v3375
      %v3377 = vpop.xlane.xlu0 %3376
      %v3378 = vsub.f32 %v3324, %v3356
      %v3379 = vsub.f32 %v3327, %v3359
      %v3380 = vsub.f32 %v3332, %v3362
      %v3381 = vsub.f32 %v3335, %v3365
      %v3382 = vsub.f32 %v3340, %v3368
      %v3383 = vsub.f32 %v3343, %v3371
      %v3384 = vsub.f32 %v3348, %v3374
      %v3385 = vsub.f32 %v3351, %v3377
      %v3386 = vmul.f32 %v3378, 1.442695
      %v3387 = vpow.pop %v3386
      %v3388 = vmul.f32 %v3379, 1.442695
      %v3389 = vpow.pop %v3388
      %v3390 = vmul.f32 %v3380, 1.442695
      %v3391 = vpow.pop %v3390
      %v3392 = vmul.f32 %v3381, 1.442695
      %v3393 = vpow.pop %v3392
      %v3394 = vmul.f32 %v3382, 1.442695
      %v3395 = vpow.pop %v3394
      %v3396 = vmul.f32 %v3383, 1.442695
      %v3397 = vpow.pop %v3396
      %v3398 = vmul.f32 %v3384, 1.442695
      %v3399 = vpow.pop %v3398
      %v3400 = vmul.f32 %v3385, 1.442695
      %v3401 = vpow.pop %v3400
      %v3402 = vsel %vm654, %v3387, 0.0
      %3403 = vadd.xlane.f32.xlu0 %v3402
      %v3404 = vpop.xlane.xlu0 %3403
      %v3405 = vsel %vm654, %v3389, 0.0
      %3406 = vadd.xlane.f32.xlu0 %v3405
      %v3407 = vpop.xlane.xlu0 %3406
      %v3408 = vsel %vm654, %v3391, 0.0
      %3409 = vadd.xlane.f32.xlu0 %v3408
      %v3410 = vpop.xlane.xlu0 %3409
      %v3411 = vsel %vm654, %v3393, 0.0
      %3412 = vadd.xlane.f32.xlu0 %v3411
      %v3413 = vpop.xlane.xlu0 %3412
      %v3414 = vsel %vm654, %v3395, 0.0
      %3415 = vadd.xlane.f32.xlu0 %v3414
      %v3416 = vpop.xlane.xlu0 %3415
      %v3417 = vsel %vm654, %v3397, 0.0
      %3418 = vadd.xlane.f32.xlu0 %v3417
      %v3419 = vpop.xlane.xlu0 %3418
      %v3420 = vsel %vm654, %v3399, 0.0
      %3421 = vadd.xlane.f32.xlu0 %v3420
      %v3422 = vpop.xlane.xlu0 %3421
      %v3423 = vsel %vm654, %v3401, 0.0
      %3424 = vadd.xlane.f32.xlu0 %v3423
      %v3425 = vpop.xlane.xlu0 %3424
      %v3426 = vrcp.pop %v3404
      %v3427 = vrcp.pop %v3407
      %v3428 = vrcp.pop %v3410
      %v3429 = vrcp.pop %v3413
      %v3430 = vrcp.pop %v3416
      %v3431 = vrcp.pop %v3419
      %v3432 = vrcp.pop %v3422
      %v3433 = vrcp.pop %v3425
      %v3434 = vmul.f32 %v3387, %v3426
      %v3435 = vmul.f32 %v3389, %v3427
      %v3436 = vmul.f32 %v3391, %v3428
      %v3437 = vmul.f32 %v3393, %v3429
      %v3438 = vmul.f32 %v3395, %v3430
      %v3439 = vmul.f32 %v3397, %v3431
      %v3440 = vmul.f32 %v3399, %v3432
      %v3441 = vmul.f32 %v3401, %v3433
      %v3450 = vsel %vm559, %v3135, %v3134
      %v3451 = vsel %vm561, %v3136, %v3450
      %v3452 = vsel %vm563, %v3137, %v3451
      %v3453 = vsel %vm565, %v3138, %v3452
      %v3454 = vsel %vm567, %v3139, %v3453
      %v3455 = vsel %vm569, %v3140, %v3454
      %v3456 = vsel %vm571, %v3141, %v3455
      %v3465 = vsel %vm559, %v3207, %v3206
      %v3466 = vsel %vm561, %v3208, %v3465
      %v3467 = vsel %vm563, %v3209, %v3466
      %v3468 = vsel %vm565, %v3210, %v3467
      %v3469 = vsel %vm567, %v3211, %v3468
      %v3470 = vsel %vm569, %v3212, %v3469
      %v3471 = vsel %vm571, %v3213, %v3470
      %v3472 = vsel %vm370, %v3456, 0
      %v3474 = vsel %vm370, %v3471, 0
      %3476 = vmatprep.subr.mxu0 0.0
      %3477 = vmatpush1.xpose.msra.mxu0 %v3474
      %3478 = vmatprep.subr.mxu0 0.0
      %3479 = vmatpush1.xpose.msra.mxu0 0.0
      %3480 = vmatprep.subr.mxu0 0.0
      %3481 = vmatpush1.xpose.msra.mxu0 0.0
      %3482 = vmatprep.subr.mxu0 0.0
      %3483 = vmatpush1.xpose.msra.mxu0 0.0
      %3484 = vmatprep.subr.mxu0 0.0
      %3485 = vmatpush1.xpose.msra.mxu0 0.0
      %3486 = vmatprep.subr.mxu0 0.0
      %3487 = vmatpush1.xpose.msra.mxu0 0.0
      %3488 = vmatprep.subr.mxu0 0.0
      %3489 = vmatpush1.xpose.msra.mxu0 0.0
      %3490 = vmatprep.subr.mxu0 0.0
      %3491 = vmatpush1.xpose.msra.mxu0 0.0
      %3492 = vmatprep.subr.mxu0 0.0
      %3493 = vmatpush1.xpose.msra.mxu0 0.0
      %3494 = vmatprep.subr.mxu0 0.0
      %3495 = vmatpush1.xpose.msra.mxu0 0.0
      %3496 = vmatprep.subr.mxu0 0.0
      %3497 = vmatpush1.xpose.msra.mxu0 0.0
      %3498 = vmatprep.subr.mxu0 0.0
      %3499 = vmatpush1.xpose.msra.mxu0 0.0
      %3500 = vmatprep.subr.mxu0 0.0
      %3501 = vmatpush1.xpose.msra.mxu0 0.0
      %3502 = vmatprep.subr.mxu0 0.0
      %3503 = vmatpush1.xpose.msra.mxu0 0.0
      %3504 = vmatprep.subr.mxu0 0.0
      %3505 = vmatpush1.xpose.msra.mxu0 0.0
      %3506 = vmatprep.subr.mxu0 0.0
      %3507 = vmatpush1.xpose.msra.mxu0 0.0
      %3508 = vmatprep.subr.mxu0 0.0
      %3509 = vmatpush1.xpose.msra.mxu0 0.0
      %3510 = vmatprep.subr.mxu0 0.0
      %3511 = vmatpush1.xpose.msra.mxu0 0.0
      %3512 = vmatprep.subr.mxu0 0.0
      %3513 = vmatpush1.xpose.msra.mxu0 0.0
      %3514 = vmatprep.subr.mxu0 0.0
      %3515 = vmatpush1.xpose.msra.mxu0 0.0
      %3516 = vmatprep.subr.mxu0 0.0
      %3517 = vmatpush1.xpose.msra.mxu0 0.0
      %3518 = vmatprep.subr.mxu0 0.0
      %3519 = vmatpush1.xpose.msra.mxu0 0.0
      %3520 = vmatprep.subr.mxu0 0.0
      %3521 = vmatpush1.xpose.msra.mxu0 0.0
      %3522 = vmatprep.subr.mxu0 0.0
      %3523 = vmatpush1.xpose.msra.mxu0 0.0
      %3524 = vmatprep.subr.mxu0 0.0
      %3525 = vmatpush1.xpose.msra.mxu0 0.0
      %3526 = vmatprep.subr.mxu0 0.0
      %3527 = vmatpush1.xpose.msra.mxu0 0.0
      %3528 = vmatprep.subr.mxu0 0.0
      %3529 = vmatpush1.xpose.msra.mxu0 0.0
      %3530 = vmatprep.subr.mxu0 0.0
      %3531 = vmatpush1.xpose.msra.mxu0 0.0
      %3532 = vmatprep.subr.mxu0 0.0
      %3533 = vmatpush1.xpose.msra.mxu0 0.0
      %3534 = vmatprep.subr.mxu0 0.0
      %3535 = vmatpush1.xpose.msra.mxu0 0.0
      %3536 = vmatprep.subr.mxu0 0.0
      %3537 = vmatpush1.xpose.msra.mxu0 0.0
      %3538 = vmatprep.subr.mxu0 0.0
      %3539 = vmatpush1.xpose.msra.mxu0 0.0
      %3540 = vmatprep.mubr.f32.mxu0 0.0
      %3541 = vmatmul.mubr.f32.gmra.mrb[0].mxu0 %v3472
      %v3542 = vpop.f32.mrb[0].mxu0
      %v3543 = vadd.f32 0.0, %v3542
      %v3544 = vpop.f32.mrb[0].mxu0
      %3545 = vdwg.mxu0
      %v3546 = vsel %vm654, %v3543, -inf
      %3547 = vmax.xlane.f32.xlu0 %v3546
      %v3548 = vpop.xlane.xlu0 %3547
      %v3549 = vsub.f32 %v3543, %v3548
      %v3550 = vmul.f32 %v3549, 1.442695
      %v3551 = vpow.pop %v3550
      %v3552 = vsel %vm654, %v3551, 0.0
      %3553 = vadd.xlane.f32.xlu0 %v3552
      %v3554 = vpop.xlane.xlu0 %3553
      %v3555 = vrcp.pop %v3554
      %v3556 = vmul.f32 %v3551, %v3555
      %v3565 = vunpack.c.l.b16 %v3214
      %v3566 = vunpack.c.l.b16 %v3215
      %v3567 = vunpack.c.l.b16 %v3216
      %v3568 = vunpack.c.l.b16 %v3217
      %v3569 = vunpack.c.l.b16 %v3218
      %v3570 = vunpack.c.l.b16 %v3219
      %v3571 = vunpack.c.l.b16 %v3220
      %v3572 = vunpack.c.l.b16 %v3221
      %v3573 = vsel %vm559, %v3566, %v3565
      %v3574 = vsel %vm561, %v3567, %v3573
      %v3575 = vsel %vm563, %v3568, %v3574
      %v3576 = vsel %vm565, %v3569, %v3575
      %v3577 = vsel %vm567, %v3570, %v3576
      %v3578 = vsel %vm569, %v3571, %v3577
      %v3579 = vsel %vm571, %v3572, %v3578
      %v3580 = vpack.c.b16 %v3579, %v3579
      %v3589 = vunpack.c.l.b16 %v3053
      %v3590 = vunpack.c.l.b16 %v3054
      %v3591 = vunpack.c.l.b16 %v3055
      %v3592 = vunpack.c.l.b16 %v3056
      %v3593 = vunpack.c.l.b16 %v3057
      %v3594 = vunpack.c.l.b16 %v3058
      %v3595 = vunpack.c.l.b16 %v3059
      %v3596 = vunpack.c.l.b16 %v3060
      %v3597 = vpack.c.b16 %v3590, %v3589
      %v3598 = vpack.c.b16 %v3592, %v3591
      %v3599 = vpack.c.b16 %v3594, %v3593
      %v3600 = vpack.c.b16 %v3596, %v3595
      %v3602 = vsel %vm370, %v3580, 0
      %v3605 = vsel %vm370, %v3597, 0
      %v3608 = vsel %vm370, %v3598, 0
      %v3611 = vsel %vm370, %v3599, 0
      %v3614 = vsel %vm370, %v3600, 0
      %3616 = vmatprep.subr.bf16.mxu0 0
      %3617 = vmatpush1.bf16.xpose.msra.mxu0 %v3605
      %3618 = vmatprep.subr.bf16.mxu0 0
      %3619 = vmatpush1.bf16.xpose.msra.mxu0 %v3608
      %3620 = vmatprep.subr.bf16.mxu0 0
      %3621 = vmatpush1.bf16.xpose.msra.mxu0 %v3611
      %3622 = vmatprep.subr.bf16.mxu0 0
      %3623 = vmatpush1.bf16.xpose.msra.mxu0 %v3614
      %3624 = vmatprep.subr.bf16.mxu0 0
      %3625 = vmatpush1.bf16.xpose.msra.mxu0 0
      %3626 = vmatprep.subr.bf16.mxu0 0
      %3627 = vmatpush1.bf16.xpose.msra.mxu0 0
      %3628 = vmatprep.subr.bf16.mxu0 0
      %3629 = vmatpush1.bf16.xpose.msra.mxu0 0
      %3630 = vmatprep.subr.bf16.mxu0 0
      %3631 = vmatpush1.bf16.xpose.msra.mxu0 0
      %3632 = vmatprep.subr.bf16.mxu0 0
      %3633 = vmatpush1.bf16.xpose.msra.mxu0 0
      %3634 = vmatprep.subr.bf16.mxu0 0
      %3635 = vmatpush1.bf16.xpose.msra.mxu0 0
      %3636 = vmatprep.subr.bf16.mxu0 0
      %3637 = vmatpush1.bf16.xpose.msra.mxu0 0
      %3638 = vmatprep.subr.bf16.mxu0 0
      %3639 = vmatpush1.bf16.xpose.msra.mxu0 0
      %3640 = vmatprep.subr.bf16.mxu0 0
      %3641 = vmatpush1.bf16.xpose.msra.mxu0 0
      %3642 = vmatprep.subr.bf16.mxu0 0
      %3643 = vmatpush1.bf16.xpose.msra.mxu0 0
      %3644 = vmatprep.subr.bf16.mxu0 0
      %3645 = vmatpush1.bf16.xpose.msra.mxu0 0
      %3646 = vmatprep.subr.bf16.mxu0 0
      %3647 = vmatpush1.bf16.xpose.msra.mxu0 0
      %3648 = vmatprep.mubr.bf16.mxu0 0
      %3649 = vmatmul.mubr.bf16.gmra.mrb[0].mxu0 %v3602
      %v3650 = vpop.f32.mrb[0].mxu0
      %v3651 = vadd.f32 0.0, %v3650
      %v3652 = vpop.f32.mrb[0].mxu0
      %v3653 = vpop.f32.mrb[0].mxu0
      %v3654 = vpop.f32.mrb[0].mxu0
      %3655 = vdwg.mxu0
      %v3656 = vsub.f32 %v3651, %v961
      %v3657 = vsel %vm964, %v3656, -inf
      %3658 = vmax.xlane.f32.xlu0 %v3657
      %v3659 = vpop.xlane.xlu0 %3658
      %v3660 = vsub.f32 %v3656, %v3659
      %v3661 = vmul.f32 %v3660, 1.442695
      %v3662 = vpow.pop %v3661
      %v3663 = vsel %vm964, %v3662, 0.0
      %3664 = vadd.xlane.f32.xlu0 %v3663
      %v3665 = vpop.xlane.xlu0 %3664
      %v3666 = vrcp.pop %v3665
      %v3667 = vmul.f32 %v3662, %v3666
      %v3668 = vsel %vm654, %v3556, 0.0
      %v3669 = vrot.slane %v3668, 4
      %v3670 = vadd.f32 %v3668, %v3669
      %v3671 = vrot.slane %v3670, 2
      %v3672 = vadd.f32 %v3670, %v3671
      %v3673 = vrot.slane %v3672, 1
      %v3674 = vadd.f32 %v3672, %v3673
      %v3675 = vsel %vm654, %v3674, -inf
      %3676 = vmax.xlane.f32.xlu0 %v3675
      %v3677 = vpop.xlane.xlu0 %3676
      %s3678 = vtos %v3677
      %3679 = vxpose.xlu0.b32.start [1/16] %v3556, 128
      %3680 = vxpose.xlu0.b32.cont [2/16] 0.0, 128
      %3681 = vxpose.xlu0.b32.cont [3/16] 0.0, 128
      %3682 = vxpose.xlu0.b32.cont [4/16] 0.0, 128
      %3683 = vxpose.xlu0.b32.cont [5/16] 0.0, 128
      %3684 = vxpose.xlu0.b32.cont [6/16] 0.0, 128
      %3685 = vxpose.xlu0.b32.cont [7/16] 0.0, 128
      %3686 = vxpose.xlu0.b32.cont [8/16] 0.0, 128
      %3687 = vxpose.xlu0.b32.cont [9/16] 0.0, 128
      %3688 = vxpose.xlu0.b32.cont [10/16] 0.0, 128
      %3689 = vxpose.xlu0.b32.cont [11/16] 0.0, 128
      %3690 = vxpose.xlu0.b32.cont [12/16] 0.0, 128
      %3691 = vxpose.xlu0.b32.cont [13/16] 0.0, 128
      %3692 = vxpose.xlu0.b32.cont [14/16] 0.0, 128
      %3693 = vxpose.xlu0.b32.cont [15/16] 0.0, 128
      %3694 = vxpose.xlu0.b32.end [16/16] 0.0, 128
      %v3695 = vpop.trf.xlu0
      %v3696 = vpop.trf.xlu0
      %v3697 = vpop.trf.xlu0
      %v3698 = vpop.trf.xlu0
      %v3699 = vpop.trf.xlu0
      %v3700 = vpop.trf.xlu0
      %v3701 = vpop.trf.xlu0
      %v3702 = vpop.trf.xlu0
      %v3703 = vpop.trf.xlu0
      %v3704 = vpop.trf.xlu0
      %v3705 = vpop.trf.xlu0
      %v3706 = vpop.trf.xlu0
      %v3707 = vpop.trf.xlu0
      %v3708 = vpop.trf.xlu0
      %v3709 = vpop.trf.xlu0
      %v3710 = vpop.trf.xlu0
      %v3711 = vstv %s3678
      %v3712 = vrcp.pop %v3711
      %v3713 = vmul.f32 %v3695, %v3712
      %v3715 = vsel %vm654, %v3556, 0
      %3717 = vmatprep.subr.mxu0 0.0
      %3718 = vmatpush1.msra.mxu0 %v3713
      %3719 = vmatprep.subr.mxu0 0.0
      %3720 = vmatpush1.msra.mxu0 0.0
      %3721 = vmatprep.subr.mxu0 0.0
      %3722 = vmatpush1.msra.mxu0 0.0
      %3723 = vmatprep.subr.mxu0 0.0
      %3724 = vmatpush1.msra.mxu0 0.0
      %3725 = vmatprep.subr.mxu0 0.0
      %3726 = vmatpush1.msra.mxu0 0.0
      %3727 = vmatprep.subr.mxu0 0.0
      %3728 = vmatpush1.msra.mxu0 0.0
      %3729 = vmatprep.subr.mxu0 0.0
      %3730 = vmatpush1.msra.mxu0 0.0
      %3731 = vmatprep.subr.mxu0 0.0
      %3732 = vmatpush1.msra.mxu0 0.0
      %3733 = vmatprep.subr.mxu0 0.0
      %3734 = vmatpush1.msra.mxu0 0.0
      %3735 = vmatprep.subr.mxu0 0.0
      %3736 = vmatpush1.msra.mxu0 0.0
      %3737 = vmatprep.subr.mxu0 0.0
      %3738 = vmatpush1.msra.mxu0 0.0
      %3739 = vmatprep.subr.mxu0 0.0
      %3740 = vmatpush1.msra.mxu0 0.0
      %3741 = vmatprep.subr.mxu0 0.0
      %3742 = vmatpush1.msra.mxu0 0.0
      %3743 = vmatprep.subr.mxu0 0.0
      %3744 = vmatpush1.msra.mxu0 0.0
      %3745 = vmatprep.subr.mxu0 0.0
      %3746 = vmatpush1.msra.mxu0 0.0
      %3747 = vmatprep.subr.mxu0 0.0
      %3748 = vmatpush1.msra.mxu0 0.0
      %3749 = vmatprep.subr.mxu0 0.0
      %3750 = vmatpush1.msra.mxu0 0.0
      %3751 = vmatprep.subr.mxu0 0.0
      %3752 = vmatpush1.msra.mxu0 0.0
      %3753 = vmatprep.subr.mxu0 0.0
      %3754 = vmatpush1.msra.mxu0 0.0
      %3755 = vmatprep.subr.mxu0 0.0
      %3756 = vmatpush1.msra.mxu0 0.0
      %3757 = vmatprep.subr.mxu0 0.0
      %3758 = vmatpush1.msra.mxu0 0.0
      %3759 = vmatprep.subr.mxu0 0.0
      %3760 = vmatpush1.msra.mxu0 0.0
      %3761 = vmatprep.subr.mxu0 0.0
      %3762 = vmatpush1.msra.mxu0 0.0
      %3763 = vmatprep.subr.mxu0 0.0
      %3764 = vmatpush1.msra.mxu0 0.0
      %3765 = vmatprep.subr.mxu0 0.0
      %3766 = vmatpush1.msra.mxu0 0.0
      %3767 = vmatprep.subr.mxu0 0.0
      %3768 = vmatpush1.msra.mxu0 0.0
      %3769 = vmatprep.subr.mxu0 0.0
      %3770 = vmatpush1.msra.mxu0 0.0
      %3771 = vmatprep.subr.mxu0 0.0
      %3772 = vmatpush1.msra.mxu0 0.0
      %3773 = vmatprep.subr.mxu0 0.0
      %3774 = vmatpush1.msra.mxu0 0.0
      %3775 = vmatprep.subr.mxu0 0.0
      %3776 = vmatpush1.msra.mxu0 0.0
      %3777 = vmatprep.subr.mxu0 0.0
      %3778 = vmatpush1.msra.mxu0 0.0
      %3779 = vmatprep.subr.mxu0 0.0
      %3780 = vmatpush1.msra.mxu0 0.0
      %3781 = vmatprep.mubr.f32.mxu0 0.0
      %3782 = vmatmul.mubr.f32.gmra.mrb[0].mxu0 %v3715
      %v3783 = vpop.f32.mrb[0].mxu0
      %v3784 = vadd.f32 0.0, %v3783
      %v3785 = vpop.f32.mrb[0].mxu0
      %3786 = vdwg.mxu0
      %v3787 = vsub.f32 %v1102, %v3784
      %v3789 = vsel %vm654, %v3784, 0
      %3791 = vmatprep.subr.mxu0 0.0
      %3792 = vmatpush1.msra.mxu0 %v3787
      %3793 = vmatprep.subr.mxu0 0.0
      %3794 = vmatpush1.msra.mxu0 0.0
      %3795 = vmatprep.subr.mxu0 0.0
      %3796 = vmatpush1.msra.mxu0 0.0
      %3797 = vmatprep.subr.mxu0 0.0
      %3798 = vmatpush1.msra.mxu0 0.0
      %3799 = vmatprep.subr.mxu0 0.0
      %3800 = vmatpush1.msra.mxu0 0.0
      %3801 = vmatprep.subr.mxu0 0.0
      %3802 = vmatpush1.msra.mxu0 0.0
      %3803 = vmatprep.subr.mxu0 0.0
      %3804 = vmatpush1.msra.mxu0 0.0
      %3805 = vmatprep.subr.mxu0 0.0
      %3806 = vmatpush1.msra.mxu0 0.0
      %3807 = vmatprep.subr.mxu0 0.0
      %3808 = vmatpush1.msra.mxu0 0.0
      %3809 = vmatprep.subr.mxu0 0.0
      %3810 = vmatpush1.msra.mxu0 0.0
      %3811 = vmatprep.subr.mxu0 0.0
      %3812 = vmatpush1.msra.mxu0 0.0
      %3813 = vmatprep.subr.mxu0 0.0
      %3814 = vmatpush1.msra.mxu0 0.0
      %3815 = vmatprep.subr.mxu0 0.0
      %3816 = vmatpush1.msra.mxu0 0.0
      %3817 = vmatprep.subr.mxu0 0.0
      %3818 = vmatpush1.msra.mxu0 0.0
      %3819 = vmatprep.subr.mxu0 0.0
      %3820 = vmatpush1.msra.mxu0 0.0
      %3821 = vmatprep.subr.mxu0 0.0
      %3822 = vmatpush1.msra.mxu0 0.0
      %3823 = vmatprep.subr.mxu0 0.0
      %3824 = vmatpush1.msra.mxu0 0.0
      %3825 = vmatprep.subr.mxu0 0.0
      %3826 = vmatpush1.msra.mxu0 0.0
      %3827 = vmatprep.subr.mxu0 0.0
      %3828 = vmatpush1.msra.mxu0 0.0
      %3829 = vmatprep.subr.mxu0 0.0
      %3830 = vmatpush1.msra.mxu0 0.0
      %3831 = vmatprep.subr.mxu0 0.0
      %3832 = vmatpush1.msra.mxu0 0.0
      %3833 = vmatprep.subr.mxu0 0.0
      %3834 = vmatpush1.msra.mxu0 0.0
      %3835 = vmatprep.subr.mxu0 0.0
      %3836 = vmatpush1.msra.mxu0 0.0
      %3837 = vmatprep.subr.mxu0 0.0
      %3838 = vmatpush1.msra.mxu0 0.0
      %3839 = vmatprep.subr.mxu0 0.0
      %3840 = vmatpush1.msra.mxu0 0.0
      %3841 = vmatprep.subr.mxu0 0.0
      %3842 = vmatpush1.msra.mxu0 0.0
      %3843 = vmatprep.subr.mxu0 0.0
      %3844 = vmatpush1.msra.mxu0 0.0
      %3845 = vmatprep.subr.mxu0 0.0
      %3846 = vmatpush1.msra.mxu0 0.0
      %3847 = vmatprep.subr.mxu0 0.0
      %3848 = vmatpush1.msra.mxu0 0.0
      %3849 = vmatprep.subr.mxu0 0.0
      %3850 = vmatpush1.msra.mxu0 0.0
      %3851 = vmatprep.subr.mxu0 0.0
      %3852 = vmatpush1.msra.mxu0 0.0
      %3853 = vmatprep.subr.mxu0 0.0
      %3854 = vmatpush1.msra.mxu0 0.0
      %3855 = vmatprep.mubr.f32.mxu0 0.0
      %3856 = vmatmul.mubr.f32.gmra.mrb[0].mxu0 %v3789
      %v3857 = vpop.f32.mrb[0].mxu0
      %v3858 = vadd.f32 0.0, %v3857
      %v3859 = vpop.f32.mrb[0].mxu0
      %3860 = vdwg.mxu0
      %v3861 = vsub.f32 %v1104, %v3858
      %3862 = vmatprep.subr.mxu0 0.0
      %3863 = vmatpush1.msra.mxu0 %v3861
      %3864 = vmatprep.subr.mxu0 0.0
      %3865 = vmatpush1.msra.mxu0 0.0
      %3866 = vmatprep.subr.mxu0 0.0
      %3867 = vmatpush1.msra.mxu0 0.0
      %3868 = vmatprep.subr.mxu0 0.0
      %3869 = vmatpush1.msra.mxu0 0.0
      %3870 = vmatprep.subr.mxu0 0.0
      %3871 = vmatpush1.msra.mxu0 0.0
      %3872 = vmatprep.subr.mxu0 0.0
      %3873 = vmatpush1.msra.mxu0 0.0
      %3874 = vmatprep.subr.mxu0 0.0
      %3875 = vmatpush1.msra.mxu0 0.0
      %3876 = vmatprep.subr.mxu0 0.0
      %3877 = vmatpush1.msra.mxu0 0.0
      %3878 = vmatprep.subr.mxu0 0.0
      %3879 = vmatpush1.msra.mxu0 0.0
      %3880 = vmatprep.subr.mxu0 0.0
      %3881 = vmatpush1.msra.mxu0 0.0
      %3882 = vmatprep.subr.mxu0 0.0
      %3883 = vmatpush1.msra.mxu0 0.0
      %3884 = vmatprep.subr.mxu0 0.0
      %3885 = vmatpush1.msra.mxu0 0.0
      %3886 = vmatprep.subr.mxu0 0.0
      %3887 = vmatpush1.msra.mxu0 0.0
      %3888 = vmatprep.subr.mxu0 0.0
      %3889 = vmatpush1.msra.mxu0 0.0
      %3890 = vmatprep.subr.mxu0 0.0
      %3891 = vmatpush1.msra.mxu0 0.0
      %3892 = vmatprep.subr.mxu0 0.0
      %3893 = vmatpush1.msra.mxu0 0.0
      %3894 = vmatprep.subr.mxu0 0.0
      %3895 = vmatpush1.msra.mxu0 0.0
      %3896 = vmatprep.subr.mxu0 0.0
      %3897 = vmatpush1.msra.mxu0 0.0
      %3898 = vmatprep.subr.mxu0 0.0
      %3899 = vmatpush1.msra.mxu0 0.0
      %3900 = vmatprep.subr.mxu0 0.0
      %3901 = vmatpush1.msra.mxu0 0.0
      %3902 = vmatprep.subr.mxu0 0.0
      %3903 = vmatpush1.msra.mxu0 0.0
      %3904 = vmatprep.subr.mxu0 0.0
      %3905 = vmatpush1.msra.mxu0 0.0
      %3906 = vmatprep.subr.mxu0 0.0
      %3907 = vmatpush1.msra.mxu0 0.0
      %3908 = vmatprep.subr.mxu0 0.0
      %3909 = vmatpush1.msra.mxu0 0.0
      %3910 = vmatprep.subr.mxu0 0.0
      %3911 = vmatpush1.msra.mxu0 0.0
      %3912 = vmatprep.subr.mxu0 0.0
      %3913 = vmatpush1.msra.mxu0 0.0
      %3914 = vmatprep.subr.mxu0 0.0
      %3915 = vmatpush1.msra.mxu0 0.0
      %3916 = vmatprep.subr.mxu0 0.0
      %3917 = vmatpush1.msra.mxu0 0.0
      %3918 = vmatprep.subr.mxu0 0.0
      %3919 = vmatpush1.msra.mxu0 0.0
      %3920 = vmatprep.subr.mxu0 0.0
      %3921 = vmatpush1.msra.mxu0 0.0
      %3922 = vmatprep.subr.mxu0 0.0
      %3923 = vmatpush1.msra.mxu0 0.0
      %3924 = vmatprep.subr.mxu0 0.0
      %3925 = vmatpush1.msra.mxu0 0.0
      %3926 = vmatprep.mubr.f32.mxu0 0.0
      %3927 = vmatmul.mubr.f32.gmra.mrb[0].mxu0 %v3789
      %v3928 = vpop.f32.mrb[0].mxu0
      %v3929 = vadd.f32 0.0, %v3928
      %v3930 = vpop.f32.mrb[0].mxu0
      %3931 = vdwg.mxu0
      %v3932 = vsub.f32 %v1179, %v3929
      %v3933 = vmul.f32 %v3713, 0.25
      %v3935 = vsel %vm654, %v3933, 0
      %3937 = vmatprep.subr.mxu0 0.0
      %3938 = vmatpush1.msra.mxu0 %v3932
      %3939 = vmatprep.subr.mxu0 0.0
      %3940 = vmatpush1.msra.mxu0 0.0
      %3941 = vmatprep.subr.mxu0 0.0
      %3942 = vmatpush1.msra.mxu0 0.0
      %3943 = vmatprep.subr.mxu0 0.0
      %3944 = vmatpush1.msra.mxu0 0.0
      %3945 = vmatprep.subr.mxu0 0.0
      %3946 = vmatpush1.msra.mxu0 0.0
      %3947 = vmatprep.subr.mxu0 0.0
      %3948 = vmatpush1.msra.mxu0 0.0
      %3949 = vmatprep.subr.mxu0 0.0
      %3950 = vmatpush1.msra.mxu0 0.0
      %3951 = vmatprep.subr.mxu0 0.0
      %3952 = vmatpush1.msra.mxu0 0.0
      %3953 = vmatprep.subr.mxu0 0.0
      %3954 = vmatpush1.msra.mxu0 0.0
      %3955 = vmatprep.subr.mxu0 0.0
      %3956 = vmatpush1.msra.mxu0 0.0
      %3957 = vmatprep.subr.mxu0 0.0
      %3958 = vmatpush1.msra.mxu0 0.0
      %3959 = vmatprep.subr.mxu0 0.0
      %3960 = vmatpush1.msra.mxu0 0.0
      %3961 = vmatprep.subr.mxu0 0.0
      %3962 = vmatpush1.msra.mxu0 0.0
      %3963 = vmatprep.subr.mxu0 0.0
      %3964 = vmatpush1.msra.mxu0 0.0
      %3965 = vmatprep.subr.mxu0 0.0
      %3966 = vmatpush1.msra.mxu0 0.0
      %3967 = vmatprep.subr.mxu0 0.0
      %3968 = vmatpush1.msra.mxu0 0.0
      %3969 = vmatprep.subr.mxu0 0.0
      %3970 = vmatpush1.msra.mxu0 0.0
      %3971 = vmatprep.subr.mxu0 0.0
      %3972 = vmatpush1.msra.mxu0 0.0
      %3973 = vmatprep.subr.mxu0 0.0
      %3974 = vmatpush1.msra.mxu0 0.0
      %3975 = vmatprep.subr.mxu0 0.0
      %3976 = vmatpush1.msra.mxu0 0.0
      %3977 = vmatprep.subr.mxu0 0.0
      %3978 = vmatpush1.msra.mxu0 0.0
      %3979 = vmatprep.subr.mxu0 0.0
      %3980 = vmatpush1.msra.mxu0 0.0
      %3981 = vmatprep.subr.mxu0 0.0
      %3982 = vmatpush1.msra.mxu0 0.0
      %3983 = vmatprep.subr.mxu0 0.0
      %3984 = vmatpush1.msra.mxu0 0.0
      %3985 = vmatprep.subr.mxu0 0.0
      %3986 = vmatpush1.msra.mxu0 0.0
      %3987 = vmatprep.subr.mxu0 0.0
      %3988 = vmatpush1.msra.mxu0 0.0
      %3989 = vmatprep.subr.mxu0 0.0
      %3990 = vmatpush1.msra.mxu0 0.0
      %3991 = vmatprep.subr.mxu0 0.0
      %3992 = vmatpush1.msra.mxu0 0.0
      %3993 = vmatprep.subr.mxu0 0.0
      %3994 = vmatpush1.msra.mxu0 0.0
      %3995 = vmatprep.subr.mxu0 0.0
      %3996 = vmatpush1.msra.mxu0 0.0
      %3997 = vmatprep.subr.mxu0 0.0
      %3998 = vmatpush1.msra.mxu0 0.0
      %3999 = vmatprep.subr.mxu0 0.0
      %4000 = vmatpush1.msra.mxu0 0.0
      %4001 = vmatprep.mubr.f32.mxu0 0.0
      %4002 = vmatmul.mubr.f32.gmra.mrb[0].mxu0 %v3935
      %v4003 = vpop.f32.mrb[0].mxu0
      %v4004 = vadd.f32 0.0, %v4003
      %v4005 = vpop.f32.mrb[0].mxu0
      %4006 = vdwg.mxu0
      %4007 = vmatprep.subr.mxu0 0.0
      %4008 = vmatpush1.msra.mxu0 %v4004
      %4009 = vmatprep.subr.mxu0 0.0
      %4010 = vmatpush1.msra.mxu0 0.0
      %4011 = vmatprep.subr.mxu0 0.0
      %4012 = vmatpush1.msra.mxu0 0.0
      %4013 = vmatprep.subr.mxu0 0.0
      %4014 = vmatpush1.msra.mxu0 0.0
      %4015 = vmatprep.subr.mxu0 0.0
      %4016 = vmatpush1.msra.mxu0 0.0
      %4017 = vmatprep.subr.mxu0 0.0
      %4018 = vmatpush1.msra.mxu0 0.0
      %4019 = vmatprep.subr.mxu0 0.0
      %4020 = vmatpush1.msra.mxu0 0.0
      %4021 = vmatprep.subr.mxu0 0.0
      %4022 = vmatpush1.msra.mxu0 0.0
      %4023 = vmatprep.subr.mxu0 0.0
      %4024 = vmatpush1.msra.mxu0 0.0
      %4025 = vmatprep.subr.mxu0 0.0
      %4026 = vmatpush1.msra.mxu0 0.0
      %4027 = vmatprep.subr.mxu0 0.0
      %4028 = vmatpush1.msra.mxu0 0.0
      %4029 = vmatprep.subr.mxu0 0.0
      %4030 = vmatpush1.msra.mxu0 0.0
      %4031 = vmatprep.subr.mxu0 0.0
      %4032 = vmatpush1.msra.mxu0 0.0
      %4033 = vmatprep.subr.mxu0 0.0
      %4034 = vmatpush1.msra.mxu0 0.0
      %4035 = vmatprep.subr.mxu0 0.0
      %4036 = vmatpush1.msra.mxu0 0.0
      %4037 = vmatprep.subr.mxu0 0.0
      %4038 = vmatpush1.msra.mxu0 0.0
      %4039 = vmatprep.subr.mxu0 0.0
      %4040 = vmatpush1.msra.mxu0 0.0
      %4041 = vmatprep.subr.mxu0 0.0
      %4042 = vmatpush1.msra.mxu0 0.0
      %4043 = vmatprep.subr.mxu0 0.0
      %4044 = vmatpush1.msra.mxu0 0.0
      %4045 = vmatprep.subr.mxu0 0.0
      %4046 = vmatpush1.msra.mxu0 0.0
      %4047 = vmatprep.subr.mxu0 0.0
      %4048 = vmatpush1.msra.mxu0 0.0
      %4049 = vmatprep.subr.mxu0 0.0
      %4050 = vmatpush1.msra.mxu0 0.0
      %4051 = vmatprep.subr.mxu0 0.0
      %4052 = vmatpush1.msra.mxu0 0.0
      %4053 = vmatprep.subr.mxu0 0.0
      %4054 = vmatpush1.msra.mxu0 0.0
      %4055 = vmatprep.subr.mxu0 0.0
      %4056 = vmatpush1.msra.mxu0 0.0
      %4057 = vmatprep.subr.mxu0 0.0
      %4058 = vmatpush1.msra.mxu0 0.0
      %4059 = vmatprep.subr.mxu0 0.0
      %4060 = vmatpush1.msra.mxu0 0.0
      %4061 = vmatprep.subr.mxu0 0.0
      %4062 = vmatpush1.msra.mxu0 0.0
      %4063 = vmatprep.subr.mxu0 0.0
      %4064 = vmatpush1.msra.mxu0 0.0
      %4065 = vmatprep.subr.mxu0 0.0
      %4066 = vmatpush1.msra.mxu0 0.0
      %4067 = vmatprep.subr.mxu0 0.0
      %4068 = vmatpush1.msra.mxu0 0.0
      %4069 = vmatprep.subr.mxu0 0.0
      %4070 = vmatpush1.msra.mxu0 0.0
      %4071 = vmatprep.mubr.f32.mxu0 0.0
      %4072 = vmatmul.mubr.f32.gmra.mrb[0].mxu0 %v3715
      %v4073 = vpop.f32.mrb[0].mxu0
      %v4074 = vadd.f32 0.0, %v4073
      %v4075 = vpop.f32.mrb[0].mxu0
      %4076 = vdwg.mxu0
      %v4077 = vsub.f32 %v1102, %v4074
      %v4079 = vsel %vm654, %v4074, 0
      %4081 = vmatprep.subr.mxu0 0.0
      %4082 = vmatpush1.msra.mxu0 %v4077
      %4083 = vmatprep.subr.mxu0 0.0
      %4084 = vmatpush1.msra.mxu0 0.0
      %4085 = vmatprep.subr.mxu0 0.0
      %4086 = vmatpush1.msra.mxu0 0.0
      %4087 = vmatprep.subr.mxu0 0.0
      %4088 = vmatpush1.msra.mxu0 0.0
      %4089 = vmatprep.subr.mxu0 0.0
      %4090 = vmatpush1.msra.mxu0 0.0
      %4091 = vmatprep.subr.mxu0 0.0
      %4092 = vmatpush1.msra.mxu0 0.0
      %4093 = vmatprep.subr.mxu0 0.0
      %4094 = vmatpush1.msra.mxu0 0.0
      %4095 = vmatprep.subr.mxu0 0.0
      %4096 = vmatpush1.msra.mxu0 0.0
      %4097 = vmatprep.subr.mxu0 0.0
      %4098 = vmatpush1.msra.mxu0 0.0
      %4099 = vmatprep.subr.mxu0 0.0
      %4100 = vmatpush1.msra.mxu0 0.0
      %4101 = vmatprep.subr.mxu0 0.0
      %4102 = vmatpush1.msra.mxu0 0.0
      %4103 = vmatprep.subr.mxu0 0.0
      %4104 = vmatpush1.msra.mxu0 0.0
      %4105 = vmatprep.subr.mxu0 0.0
      %4106 = vmatpush1.msra.mxu0 0.0
      %4107 = vmatprep.subr.mxu0 0.0
      %4108 = vmatpush1.msra.mxu0 0.0
      %4109 = vmatprep.subr.mxu0 0.0
      %4110 = vmatpush1.msra.mxu0 0.0
      %4111 = vmatprep.subr.mxu0 0.0
      %4112 = vmatpush1.msra.mxu0 0.0
      %4113 = vmatprep.subr.mxu0 0.0
      %4114 = vmatpush1.msra.mxu0 0.0
      %4115 = vmatprep.subr.mxu0 0.0
      %4116 = vmatpush1.msra.mxu0 0.0
      %4117 = vmatprep.subr.mxu0 0.0
      %4118 = vmatpush1.msra.mxu0 0.0
      %4119 = vmatprep.subr.mxu0 0.0
      %4120 = vmatpush1.msra.mxu0 0.0
      %4121 = vmatprep.subr.mxu0 0.0
      %4122 = vmatpush1.msra.mxu0 0.0
      %4123 = vmatprep.subr.mxu0 0.0
      %4124 = vmatpush1.msra.mxu0 0.0
      %4125 = vmatprep.subr.mxu0 0.0
      %4126 = vmatpush1.msra.mxu0 0.0
      %4127 = vmatprep.subr.mxu0 0.0
      %4128 = vmatpush1.msra.mxu0 0.0
      %4129 = vmatprep.subr.mxu0 0.0
      %4130 = vmatpush1.msra.mxu0 0.0
      %4131 = vmatprep.subr.mxu0 0.0
      %4132 = vmatpush1.msra.mxu0 0.0
      %4133 = vmatprep.subr.mxu0 0.0
      %4134 = vmatpush1.msra.mxu0 0.0
      %4135 = vmatprep.subr.mxu0 0.0
      %4136 = vmatpush1.msra.mxu0 0.0
      %4137 = vmatprep.subr.mxu0 0.0
      %4138 = vmatpush1.msra.mxu0 0.0
      %4139 = vmatprep.subr.mxu0 0.0
      %4140 = vmatpush1.msra.mxu0 0.0
      %4141 = vmatprep.subr.mxu0 0.0
      %4142 = vmatpush1.msra.mxu0 0.0
      %4143 = vmatprep.subr.mxu0 0.0
      %4144 = vmatpush1.msra.mxu0 0.0
      %4145 = vmatprep.mubr.f32.mxu0 0.0
      %4146 = vmatmul.mubr.f32.gmra.mrb[0].mxu0 %v4079
      %v4147 = vpop.f32.mrb[0].mxu0
      %v4148 = vadd.f32 0.0, %v4147
      %v4149 = vpop.f32.mrb[0].mxu0
      %4150 = vdwg.mxu0
      %v4151 = vsub.f32 %v1104, %v4148
      %4152 = vmatprep.subr.mxu0 0.0
      %4153 = vmatpush1.msra.mxu0 %v4151
      %4154 = vmatprep.subr.mxu0 0.0
      %4155 = vmatpush1.msra.mxu0 0.0
      %4156 = vmatprep.subr.mxu0 0.0
      %4157 = vmatpush1.msra.mxu0 0.0
      %4158 = vmatprep.subr.mxu0 0.0
      %4159 = vmatpush1.msra.mxu0 0.0
      %4160 = vmatprep.subr.mxu0 0.0
      %4161 = vmatpush1.msra.mxu0 0.0
      %4162 = vmatprep.subr.mxu0 0.0
      %4163 = vmatpush1.msra.mxu0 0.0
      %4164 = vmatprep.subr.mxu0 0.0
      %4165 = vmatpush1.msra.mxu0 0.0
      %4166 = vmatprep.subr.mxu0 0.0
      %4167 = vmatpush1.msra.mxu0 0.0
      %4168 = vmatprep.subr.mxu0 0.0
      %4169 = vmatpush1.msra.mxu0 0.0
      %4170 = vmatprep.subr.mxu0 0.0
      %4171 = vmatpush1.msra.mxu0 0.0
      %4172 = vmatprep.subr.mxu0 0.0
      %4173 = vmatpush1.msra.mxu0 0.0
      %4174 = vmatprep.subr.mxu0 0.0
      %4175 = vmatpush1.msra.mxu0 0.0
      %4176 = vmatprep.subr.mxu0 0.0
      %4177 = vmatpush1.msra.mxu0 0.0
      %4178 = vmatprep.subr.mxu0 0.0
      %4179 = vmatpush1.msra.mxu0 0.0
      %4180 = vmatprep.subr.mxu0 0.0
      %4181 = vmatpush1.msra.mxu0 0.0
      %4182 = vmatprep.subr.mxu0 0.0
      %4183 = vmatpush1.msra.mxu0 0.0
      %4184 = vmatprep.subr.mxu0 0.0
      %4185 = vmatpush1.msra.mxu0 0.0
      %4186 = vmatprep.subr.mxu0 0.0
      %4187 = vmatpush1.msra.mxu0 0.0
      %4188 = vmatprep.subr.mxu0 0.0
      %4189 = vmatpush1.msra.mxu0 0.0
      %4190 = vmatprep.subr.mxu0 0.0
      %4191 = vmatpush1.msra.mxu0 0.0
      %4192 = vmatprep.subr.mxu0 0.0
      %4193 = vmatpush1.msra.mxu0 0.0
      %4194 = vmatprep.subr.mxu0 0.0
      %4195 = vmatpush1.msra.mxu0 0.0
      %4196 = vmatprep.subr.mxu0 0.0
      %4197 = vmatpush1.msra.mxu0 0.0
      %4198 = vmatprep.subr.mxu0 0.0
      %4199 = vmatpush1.msra.mxu0 0.0
      %4200 = vmatprep.subr.mxu0 0.0
      %4201 = vmatpush1.msra.mxu0 0.0
      %4202 = vmatprep.subr.mxu0 0.0
      %4203 = vmatpush1.msra.mxu0 0.0
      %4204 = vmatprep.subr.mxu0 0.0
      %4205 = vmatpush1.msra.mxu0 0.0
      %4206 = vmatprep.subr.mxu0 0.0
      %4207 = vmatpush1.msra.mxu0 0.0
      %4208 = vmatprep.subr.mxu0 0.0
      %4209 = vmatpush1.msra.mxu0 0.0
      %4210 = vmatprep.subr.mxu0 0.0
      %4211 = vmatpush1.msra.mxu0 0.0
      %4212 = vmatprep.subr.mxu0 0.0
      %4213 = vmatpush1.msra.mxu0 0.0
      %4214 = vmatprep.subr.mxu0 0.0
      %4215 = vmatpush1.msra.mxu0 0.0
      %4216 = vmatprep.mubr.f32.mxu0 0.0
      %4217 = vmatmul.mubr.f32.gmra.mrb[0].mxu0 %v4079
      %v4218 = vpop.f32.mrb[0].mxu0
      %v4219 = vadd.f32 0.0, %v4218
      %v4220 = vpop.f32.mrb[0].mxu0
      %4221 = vdwg.mxu0
      %v4222 = vsub.f32 %v1179, %v4219
      %v4223 = vmul.f32 %v4004, 0.25
      %v4225 = vsel %vm654, %v4223, 0
      %4227 = vmatprep.subr.mxu0 0.0
      %4228 = vmatpush1.msra.mxu0 %v4222
      %4229 = vmatprep.subr.mxu0 0.0
      %4230 = vmatpush1.msra.mxu0 0.0
      %4231 = vmatprep.subr.mxu0 0.0
      %4232 = vmatpush1.msra.mxu0 0.0
      %4233 = vmatprep.subr.mxu0 0.0
      %4234 = vmatpush1.msra.mxu0 0.0
      %4235 = vmatprep.subr.mxu0 0.0
      %4236 = vmatpush1.msra.mxu0 0.0
      %4237 = vmatprep.subr.mxu0 0.0
      %4238 = vmatpush1.msra.mxu0 0.0
      %4239 = vmatprep.subr.mxu0 0.0
      %4240 = vmatpush1.msra.mxu0 0.0
      %4241 = vmatprep.subr.mxu0 0.0
      %4242 = vmatpush1.msra.mxu0 0.0
      %4243 = vmatprep.subr.mxu0 0.0
      %4244 = vmatpush1.msra.mxu0 0.0
      %4245 = vmatprep.subr.mxu0 0.0
      %4246 = vmatpush1.msra.mxu0 0.0
      %4247 = vmatprep.subr.mxu0 0.0
      %4248 = vmatpush1.msra.mxu0 0.0
      %4249 = vmatprep.subr.mxu0 0.0
      %4250 = vmatpush1.msra.mxu0 0.0
      %4251 = vmatprep.subr.mxu0 0.0
      %4252 = vmatpush1.msra.mxu0 0.0
      %4253 = vmatprep.subr.mxu0 0.0
      %4254 = vmatpush1.msra.mxu0 0.0
      %4255 = vmatprep.subr.mxu0 0.0
      %4256 = vmatpush1.msra.mxu0 0.0
      %4257 = vmatprep.subr.mxu0 0.0
      %4258 = vmatpush1.msra.mxu0 0.0
      %4259 = vmatprep.subr.mxu0 0.0
      %4260 = vmatpush1.msra.mxu0 0.0
      %4261 = vmatprep.subr.mxu0 0.0
      %4262 = vmatpush1.msra.mxu0 0.0
      %4263 = vmatprep.subr.mxu0 0.0
      %4264 = vmatpush1.msra.mxu0 0.0
      %4265 = vmatprep.subr.mxu0 0.0
      %4266 = vmatpush1.msra.mxu0 0.0
      %4267 = vmatprep.subr.mxu0 0.0
      %4268 = vmatpush1.msra.mxu0 0.0
      %4269 = vmatprep.subr.mxu0 0.0
      %4270 = vmatpush1.msra.mxu0 0.0
      %4271 = vmatprep.subr.mxu0 0.0
      %4272 = vmatpush1.msra.mxu0 0.0
      %4273 = vmatprep.subr.mxu0 0.0
      %4274 = vmatpush1.msra.mxu0 0.0
      %4275 = vmatprep.subr.mxu0 0.0
      %4276 = vmatpush1.msra.mxu0 0.0
      %4277 = vmatprep.subr.mxu0 0.0
      %4278 = vmatpush1.msra.mxu0 0.0
      %4279 = vmatprep.subr.mxu0 0.0
      %4280 = vmatpush1.msra.mxu0 0.0
      %4281 = vmatprep.subr.mxu0 0.0
      %4282 = vmatpush1.msra.mxu0 0.0
      %4283 = vmatprep.subr.mxu0 0.0
      %4284 = vmatpush1.msra.mxu0 0.0
      %4285 = vmatprep.subr.mxu0 0.0
      %4286 = vmatpush1.msra.mxu0 0.0
      %4287 = vmatprep.subr.mxu0 0.0
      %4288 = vmatpush1.msra.mxu0 0.0
      %4289 = vmatprep.subr.mxu0 0.0
      %4290 = vmatpush1.msra.mxu0 0.0
      %4291 = vmatprep.mubr.f32.mxu0 0.0
      %4292 = vmatmul.mubr.f32.gmra.mrb[0].mxu0 %v4225
      %v4293 = vpop.f32.mrb[0].mxu0
      %v4294 = vadd.f32 0.0, %v4293
      %v4295 = vpop.f32.mrb[0].mxu0
      %4296 = vdwg.mxu0
      %4297 = vmatprep.subr.mxu0 0.0
      %4298 = vmatpush1.msra.mxu0 %v4294
      %4299 = vmatprep.subr.mxu0 0.0
      %4300 = vmatpush1.msra.mxu0 0.0
      %4301 = vmatprep.subr.mxu0 0.0
      %4302 = vmatpush1.msra.mxu0 0.0
      %4303 = vmatprep.subr.mxu0 0.0
      %4304 = vmatpush1.msra.mxu0 0.0
      %4305 = vmatprep.subr.mxu0 0.0
      %4306 = vmatpush1.msra.mxu0 0.0
      %4307 = vmatprep.subr.mxu0 0.0
      %4308 = vmatpush1.msra.mxu0 0.0
      %4309 = vmatprep.subr.mxu0 0.0
      %4310 = vmatpush1.msra.mxu0 0.0
      %4311 = vmatprep.subr.mxu0 0.0
      %4312 = vmatpush1.msra.mxu0 0.0
      %4313 = vmatprep.subr.mxu0 0.0
      %4314 = vmatpush1.msra.mxu0 0.0
      %4315 = vmatprep.subr.mxu0 0.0
      %4316 = vmatpush1.msra.mxu0 0.0
      %4317 = vmatprep.subr.mxu0 0.0
      %4318 = vmatpush1.msra.mxu0 0.0
      %4319 = vmatprep.subr.mxu0 0.0
      %4320 = vmatpush1.msra.mxu0 0.0
      %4321 = vmatprep.subr.mxu0 0.0
      %4322 = vmatpush1.msra.mxu0 0.0
      %4323 = vmatprep.subr.mxu0 0.0
      %4324 = vmatpush1.msra.mxu0 0.0
      %4325 = vmatprep.subr.mxu0 0.0
      %4326 = vmatpush1.msra.mxu0 0.0
      %4327 = vmatprep.subr.mxu0 0.0
      %4328 = vmatpush1.msra.mxu0 0.0
      %4329 = vmatprep.subr.mxu0 0.0
      %4330 = vmatpush1.msra.mxu0 0.0
      %4331 = vmatprep.subr.mxu0 0.0
      %4332 = vmatpush1.msra.mxu0 0.0
      %4333 = vmatprep.subr.mxu0 0.0
      %4334 = vmatpush1.msra.mxu0 0.0
      %4335 = vmatprep.subr.mxu0 0.0
      %4336 = vmatpush1.msra.mxu0 0.0
      %4337 = vmatprep.subr.mxu0 0.0
      %4338 = vmatpush1.msra.mxu0 0.0
      %4339 = vmatprep.subr.mxu0 0.0
      %4340 = vmatpush1.msra.mxu0 0.0
      %4341 = vmatprep.subr.mxu0 0.0
      %4342 = vmatpush1.msra.mxu0 0.0
      %4343 = vmatprep.subr.mxu0 0.0
      %4344 = vmatpush1.msra.mxu0 0.0
      %4345 = vmatprep.subr.mxu0 0.0
      %4346 = vmatpush1.msra.mxu0 0.0
      %4347 = vmatprep.subr.mxu0 0.0
      %4348 = vmatpush1.msra.mxu0 0.0
      %4349 = vmatprep.subr.mxu0 0.0
      %4350 = vmatpush1.msra.mxu0 0.0
      %4351 = vmatprep.subr.mxu0 0.0
      %4352 = vmatpush1.msra.mxu0 0.0
      %4353 = vmatprep.subr.mxu0 0.0
      %4354 = vmatpush1.msra.mxu0 0.0
      %4355 = vmatprep.subr.mxu0 0.0
      %4356 = vmatpush1.msra.mxu0 0.0
      %4357 = vmatprep.subr.mxu0 0.0
      %4358 = vmatpush1.msra.mxu0 0.0
      %4359 = vmatprep.subr.mxu0 0.0
      %4360 = vmatpush1.msra.mxu0 0.0
      %4361 = vmatprep.mubr.f32.mxu0 0.0
      %4362 = vmatmul.mubr.f32.gmra.mrb[0].mxu0 %v3715
      %v4363 = vpop.f32.mrb[0].mxu0
      %v4364 = vadd.f32 0.0, %v4363
      %v4365 = vpop.f32.mrb[0].mxu0
      %4366 = vdwg.mxu0
      %v4367 = vsub.f32 %v1102, %v4364
      %v4369 = vsel %vm654, %v4364, 0
      %4371 = vmatprep.subr.mxu0 0.0
      %4372 = vmatpush1.msra.mxu0 %v4367
      %4373 = vmatprep.subr.mxu0 0.0
      %4374 = vmatpush1.msra.mxu0 0.0
      %4375 = vmatprep.subr.mxu0 0.0
      %4376 = vmatpush1.msra.mxu0 0.0
      %4377 = vmatprep.subr.mxu0 0.0
      %4378 = vmatpush1.msra.mxu0 0.0
      %4379 = vmatprep.subr.mxu0 0.0
      %4380 = vmatpush1.msra.mxu0 0.0
      %4381 = vmatprep.subr.mxu0 0.0
      %4382 = vmatpush1.msra.mxu0 0.0
      %4383 = vmatprep.subr.mxu0 0.0
      %4384 = vmatpush1.msra.mxu0 0.0
      %4385 = vmatprep.subr.mxu0 0.0
      %4386 = vmatpush1.msra.mxu0 0.0
      %4387 = vmatprep.subr.mxu0 0.0
      %4388 = vmatpush1.msra.mxu0 0.0
      %4389 = vmatprep.subr.mxu0 0.0
      %4390 = vmatpush1.msra.mxu0 0.0
      %4391 = vmatprep.subr.mxu0 0.0
      %4392 = vmatpush1.msra.mxu0 0.0
      %4393 = vmatprep.subr.mxu0 0.0
      %4394 = vmatpush1.msra.mxu0 0.0
      %4395 = vmatprep.subr.mxu0 0.0
      %4396 = vmatpush1.msra.mxu0 0.0
      %4397 = vmatprep.subr.mxu0 0.0
      %4398 = vmatpush1.msra.mxu0 0.0
      %4399 = vmatprep.subr.mxu0 0.0
      %4400 = vmatpush1.msra.mxu0 0.0
      %4401 = vmatprep.subr.mxu0 0.0
      %4402 = vmatpush1.msra.mxu0 0.0
      %4403 = vmatprep.subr.mxu0 0.0
      %4404 = vmatpush1.msra.mxu0 0.0
      %4405 = vmatprep.subr.mxu0 0.0
      %4406 = vmatpush1.msra.mxu0 0.0
      %4407 = vmatprep.subr.mxu0 0.0
      %4408 = vmatpush1.msra.mxu0 0.0
      %4409 = vmatprep.subr.mxu0 0.0
      %4410 = vmatpush1.msra.mxu0 0.0
      %4411 = vmatprep.subr.mxu0 0.0
      %4412 = vmatpush1.msra.mxu0 0.0
      %4413 = vmatprep.subr.mxu0 0.0
      %4414 = vmatpush1.msra.mxu0 0.0
      %4415 = vmatprep.subr.mxu0 0.0
      %4416 = vmatpush1.msra.mxu0 0.0
      %4417 = vmatprep.subr.mxu0 0.0
      %4418 = vmatpush1.msra.mxu0 0.0
      %4419 = vmatprep.subr.mxu0 0.0
      %4420 = vmatpush1.msra.mxu0 0.0
      %4421 = vmatprep.subr.mxu0 0.0
      %4422 = vmatpush1.msra.mxu0 0.0
      %4423 = vmatprep.subr.mxu0 0.0
      %4424 = vmatpush1.msra.mxu0 0.0
      %4425 = vmatprep.subr.mxu0 0.0
      %4426 = vmatpush1.msra.mxu0 0.0
      %4427 = vmatprep.subr.mxu0 0.0
      %4428 = vmatpush1.msra.mxu0 0.0
      %4429 = vmatprep.subr.mxu0 0.0
      %4430 = vmatpush1.msra.mxu0 0.0
      %4431 = vmatprep.subr.mxu0 0.0
      %4432 = vmatpush1.msra.mxu0 0.0
      %4433 = vmatprep.subr.mxu0 0.0
      %4434 = vmatpush1.msra.mxu0 0.0
      %4435 = vmatprep.mubr.f32.mxu0 0.0
      %4436 = vmatmul.mubr.f32.gmra.mrb[0].mxu0 %v4369
      %v4437 = vpop.f32.mrb[0].mxu0
      %v4438 = vadd.f32 0.0, %v4437
      %v4439 = vpop.f32.mrb[0].mxu0
      %4440 = vdwg.mxu0
      %v4441 = vsub.f32 %v1104, %v4438
      %4442 = vmatprep.subr.mxu0 0.0
      %4443 = vmatpush1.msra.mxu0 %v4441
      %4444 = vmatprep.subr.mxu0 0.0
      %4445 = vmatpush1.msra.mxu0 0.0
      %4446 = vmatprep.subr.mxu0 0.0
      %4447 = vmatpush1.msra.mxu0 0.0
      %4448 = vmatprep.subr.mxu0 0.0
      %4449 = vmatpush1.msra.mxu0 0.0
      %4450 = vmatprep.subr.mxu0 0.0
      %4451 = vmatpush1.msra.mxu0 0.0
      %4452 = vmatprep.subr.mxu0 0.0
      %4453 = vmatpush1.msra.mxu0 0.0
      %4454 = vmatprep.subr.mxu0 0.0
      %4455 = vmatpush1.msra.mxu0 0.0
      %4456 = vmatprep.subr.mxu0 0.0
      %4457 = vmatpush1.msra.mxu0 0.0
      %4458 = vmatprep.subr.mxu0 0.0
      %4459 = vmatpush1.msra.mxu0 0.0
      %4460 = vmatprep.subr.mxu0 0.0
      %4461 = vmatpush1.msra.mxu0 0.0
      %4462 = vmatprep.subr.mxu0 0.0
      %4463 = vmatpush1.msra.mxu0 0.0
      %4464 = vmatprep.subr.mxu0 0.0
      %4465 = vmatpush1.msra.mxu0 0.0
      %4466 = vmatprep.subr.mxu0 0.0
      %4467 = vmatpush1.msra.mxu0 0.0
      %4468 = vmatprep.subr.mxu0 0.0
      %4469 = vmatpush1.msra.mxu0 0.0
      %4470 = vmatprep.subr.mxu0 0.0
      %4471 = vmatpush1.msra.mxu0 0.0
      %4472 = vmatprep.subr.mxu0 0.0
      %4473 = vmatpush1.msra.mxu0 0.0
      %4474 = vmatprep.subr.mxu0 0.0
      %4475 = vmatpush1.msra.mxu0 0.0
      %4476 = vmatprep.subr.mxu0 0.0
      %4477 = vmatpush1.msra.mxu0 0.0
      %4478 = vmatprep.subr.mxu0 0.0
      %4479 = vmatpush1.msra.mxu0 0.0
      %4480 = vmatprep.subr.mxu0 0.0
      %4481 = vmatpush1.msra.mxu0 0.0
      %4482 = vmatprep.subr.mxu0 0.0
      %4483 = vmatpush1.msra.mxu0 0.0
      %4484 = vmatprep.subr.mxu0 0.0
      %4485 = vmatpush1.msra.mxu0 0.0
      %4486 = vmatprep.subr.mxu0 0.0
      %4487 = vmatpush1.msra.mxu0 0.0
      %4488 = vmatprep.subr.mxu0 0.0
      %4489 = vmatpush1.msra.mxu0 0.0
      %4490 = vmatprep.subr.mxu0 0.0
      %4491 = vmatpush1.msra.mxu0 0.0
      %4492 = vmatprep.subr.mxu0 0.0
      %4493 = vmatpush1.msra.mxu0 0.0
      %4494 = vmatprep.subr.mxu0 0.0
      %4495 = vmatpush1.msra.mxu0 0.0
      %4496 = vmatprep.subr.mxu0 0.0
      %4497 = vmatpush1.msra.mxu0 0.0
      %4498 = vmatprep.subr.mxu0 0.0
      %4499 = vmatpush1.msra.mxu0 0.0
      %4500 = vmatprep.subr.mxu0 0.0
      %4501 = vmatpush1.msra.mxu0 0.0
      %4502 = vmatprep.subr.mxu0 0.0
      %4503 = vmatpush1.msra.mxu0 0.0
      %4504 = vmatprep.subr.mxu0 0.0
      %4505 = vmatpush1.msra.mxu0 0.0
      %4506 = vmatprep.mubr.f32.mxu0 0.0
      %4507 = vmatmul.mubr.f32.gmra.mrb[0].mxu0 %v4369
      %v4508 = vpop.f32.mrb[0].mxu0
      %v4509 = vadd.f32 0.0, %v4508
      %v4510 = vpop.f32.mrb[0].mxu0
      %4511 = vdwg.mxu0
      %v4512 = vsub.f32 %v1179, %v4509
      %v4513 = vmul.f32 %v4294, 0.25
      %v4515 = vsel %vm654, %v4513, 0
      %4517 = vmatprep.subr.mxu0 0.0
      %4518 = vmatpush1.msra.mxu0 %v4512
      %4519 = vmatprep.subr.mxu0 0.0
      %4520 = vmatpush1.msra.mxu0 0.0
      %4521 = vmatprep.subr.mxu0 0.0
      %4522 = vmatpush1.msra.mxu0 0.0
      %4523 = vmatprep.subr.mxu0 0.0
      %4524 = vmatpush1.msra.mxu0 0.0
      %4525 = vmatprep.subr.mxu0 0.0
      %4526 = vmatpush1.msra.mxu0 0.0
      %4527 = vmatprep.subr.mxu0 0.0
      %4528 = vmatpush1.msra.mxu0 0.0
      %4529 = vmatprep.subr.mxu0 0.0
      %4530 = vmatpush1.msra.mxu0 0.0
      %4531 = vmatprep.subr.mxu0 0.0
      %4532 = vmatpush1.msra.mxu0 0.0
      %4533 = vmatprep.subr.mxu0 0.0
      %4534 = vmatpush1.msra.mxu0 0.0
      %4535 = vmatprep.subr.mxu0 0.0
      %4536 = vmatpush1.msra.mxu0 0.0
      %4537 = vmatprep.subr.mxu0 0.0
      %4538 = vmatpush1.msra.mxu0 0.0
      %4539 = vmatprep.subr.mxu0 0.0
      %4540 = vmatpush1.msra.mxu0 0.0
      %4541 = vmatprep.subr.mxu0 0.0
      %4542 = vmatpush1.msra.mxu0 0.0
      %4543 = vmatprep.subr.mxu0 0.0
      %4544 = vmatpush1.msra.mxu0 0.0
      %4545 = vmatprep.subr.mxu0 0.0
      %4546 = vmatpush1.msra.mxu0 0.0
      %4547 = vmatprep.subr.mxu0 0.0
      %4548 = vmatpush1.msra.mxu0 0.0
      %4549 = vmatprep.subr.mxu0 0.0
      %4550 = vmatpush1.msra.mxu0 0.0
      %4551 = vmatprep.subr.mxu0 0.0
      %4552 = vmatpush1.msra.mxu0 0.0
      %4553 = vmatprep.subr.mxu0 0.0
      %4554 = vmatpush1.msra.mxu0 0.0
      %4555 = vmatprep.subr.mxu0 0.0
      %4556 = vmatpush1.msra.mxu0 0.0
      %4557 = vmatprep.subr.mxu0 0.0
      %4558 = vmatpush1.msra.mxu0 0.0
      %4559 = vmatprep.subr.mxu0 0.0
      %4560 = vmatpush1.msra.mxu0 0.0
      %4561 = vmatprep.subr.mxu0 0.0
      %4562 = vmatpush1.msra.mxu0 0.0
      %4563 = vmatprep.subr.mxu0 0.0
      %4564 = vmatpush1.msra.mxu0 0.0
      %4565 = vmatprep.subr.mxu0 0.0
      %4566 = vmatpush1.msra.mxu0 0.0
      %4567 = vmatprep.subr.mxu0 0.0
      %4568 = vmatpush1.msra.mxu0 0.0
      %4569 = vmatprep.subr.mxu0 0.0
      %4570 = vmatpush1.msra.mxu0 0.0
      %4571 = vmatprep.subr.mxu0 0.0
      %4572 = vmatpush1.msra.mxu0 0.0
      %4573 = vmatprep.subr.mxu0 0.0
      %4574 = vmatpush1.msra.mxu0 0.0
      %4575 = vmatprep.subr.mxu0 0.0
      %4576 = vmatpush1.msra.mxu0 0.0
      %4577 = vmatprep.subr.mxu0 0.0
      %4578 = vmatpush1.msra.mxu0 0.0
      %4579 = vmatprep.subr.mxu0 0.0
      %4580 = vmatpush1.msra.mxu0 0.0
      %4581 = vmatprep.mubr.f32.mxu0 0.0
      %4582 = vmatmul.mubr.f32.gmra.mrb[0].mxu0 %v4515
      %v4583 = vpop.f32.mrb[0].mxu0
      %v4584 = vadd.f32 0.0, %v4583
      %v4585 = vpop.f32.mrb[0].mxu0
      %4586 = vdwg.mxu0
      %4587 = vmatprep.subr.mxu0 0.0
      %4588 = vmatpush1.msra.mxu0 %v4584
      %4589 = vmatprep.subr.mxu0 0.0
      %4590 = vmatpush1.msra.mxu0 0.0
      %4591 = vmatprep.subr.mxu0 0.0
      %4592 = vmatpush1.msra.mxu0 0.0
      %4593 = vmatprep.subr.mxu0 0.0
      %4594 = vmatpush1.msra.mxu0 0.0
      %4595 = vmatprep.subr.mxu0 0.0
      %4596 = vmatpush1.msra.mxu0 0.0
      %4597 = vmatprep.subr.mxu0 0.0
      %4598 = vmatpush1.msra.mxu0 0.0
      %4599 = vmatprep.subr.mxu0 0.0
      %4600 = vmatpush1.msra.mxu0 0.0
      %4601 = vmatprep.subr.mxu0 0.0
      %4602 = vmatpush1.msra.mxu0 0.0
      %4603 = vmatprep.subr.mxu0 0.0
      %4604 = vmatpush1.msra.mxu0 0.0
      %4605 = vmatprep.subr.mxu0 0.0
      %4606 = vmatpush1.msra.mxu0 0.0
      %4607 = vmatprep.subr.mxu0 0.0
      %4608 = vmatpush1.msra.mxu0 0.0
      %4609 = vmatprep.subr.mxu0 0.0
      %4610 = vmatpush1.msra.mxu0 0.0
      %4611 = vmatprep.subr.mxu0 0.0
      %4612 = vmatpush1.msra.mxu0 0.0
      %4613 = vmatprep.subr.mxu0 0.0
      %4614 = vmatpush1.msra.mxu0 0.0
      %4615 = vmatprep.subr.mxu0 0.0
      %4616 = vmatpush1.msra.mxu0 0.0
      %4617 = vmatprep.subr.mxu0 0.0
      %4618 = vmatpush1.msra.mxu0 0.0
      %4619 = vmatprep.subr.mxu0 0.0
      %4620 = vmatpush1.msra.mxu0 0.0
      %4621 = vmatprep.subr.mxu0 0.0
      %4622 = vmatpush1.msra.mxu0 0.0
      %4623 = vmatprep.subr.mxu0 0.0
      %4624 = vmatpush1.msra.mxu0 0.0
      %4625 = vmatprep.subr.mxu0 0.0
      %4626 = vmatpush1.msra.mxu0 0.0
      %4627 = vmatprep.subr.mxu0 0.0
      %4628 = vmatpush1.msra.mxu0 0.0
      %4629 = vmatprep.subr.mxu0 0.0
      %4630 = vmatpush1.msra.mxu0 0.0
      %4631 = vmatprep.subr.mxu0 0.0
      %4632 = vmatpush1.msra.mxu0 0.0
      %4633 = vmatprep.subr.mxu0 0.0
      %4634 = vmatpush1.msra.mxu0 0.0
      %4635 = vmatprep.subr.mxu0 0.0
      %4636 = vmatpush1.msra.mxu0 0.0
      %4637 = vmatprep.subr.mxu0 0.0
      %4638 = vmatpush1.msra.mxu0 0.0
      %4639 = vmatprep.subr.mxu0 0.0
      %4640 = vmatpush1.msra.mxu0 0.0
      %4641 = vmatprep.subr.mxu0 0.0
      %4642 = vmatpush1.msra.mxu0 0.0
      %4643 = vmatprep.subr.mxu0 0.0
      %4644 = vmatpush1.msra.mxu0 0.0
      %4645 = vmatprep.subr.mxu0 0.0
      %4646 = vmatpush1.msra.mxu0 0.0
      %4647 = vmatprep.subr.mxu0 0.0
      %4648 = vmatpush1.msra.mxu0 0.0
      %4649 = vmatprep.subr.mxu0 0.0
      %4650 = vmatpush1.msra.mxu0 0.0
      %4651 = vmatprep.mubr.f32.mxu0 0.0
      %4652 = vmatmul.mubr.f32.gmra.mrb[0].mxu0 %v3715
      %v4653 = vpop.f32.mrb[0].mxu0
      %v4654 = vadd.f32 0.0, %v4653
      %v4655 = vpop.f32.mrb[0].mxu0
      %4656 = vdwg.mxu0
      %v4657 = vsub.f32 %v1102, %v4654
      %v4659 = vsel %vm654, %v4654, 0
      %4661 = vmatprep.subr.mxu0 0.0
      %4662 = vmatpush1.msra.mxu0 %v4657
      %4663 = vmatprep.subr.mxu0 0.0
      %4664 = vmatpush1.msra.mxu0 0.0
      %4665 = vmatprep.subr.mxu0 0.0
      %4666 = vmatpush1.msra.mxu0 0.0
      %4667 = vmatprep.subr.mxu0 0.0
      %4668 = vmatpush1.msra.mxu0 0.0
      %4669 = vmatprep.subr.mxu0 0.0
      %4670 = vmatpush1.msra.mxu0 0.0
      %4671 = vmatprep.subr.mxu0 0.0
      %4672 = vmatpush1.msra.mxu0 0.0
      %4673 = vmatprep.subr.mxu0 0.0
      %4674 = vmatpush1.msra.mxu0 0.0
      %4675 = vmatprep.subr.mxu0 0.0
      %4676 = vmatpush1.msra.mxu0 0.0
      %4677 = vmatprep.subr.mxu0 0.0
      %4678 = vmatpush1.msra.mxu0 0.0
      %4679 = vmatprep.subr.mxu0 0.0
      %4680 = vmatpush1.msra.mxu0 0.0
      %4681 = vmatprep.subr.mxu0 0.0
      %4682 = vmatpush1.msra.mxu0 0.0
      %4683 = vmatprep.subr.mxu0 0.0
      %4684 = vmatpush1.msra.mxu0 0.0
      %4685 = vmatprep.subr.mxu0 0.0
      %4686 = vmatpush1.msra.mxu0 0.0
      %4687 = vmatprep.subr.mxu0 0.0
      %4688 = vmatpush1.msra.mxu0 0.0
      %4689 = vmatprep.subr.mxu0 0.0
      %4690 = vmatpush1.msra.mxu0 0.0
      %4691 = vmatprep.subr.mxu0 0.0
      %4692 = vmatpush1.msra.mxu0 0.0
      %4693 = vmatprep.subr.mxu0 0.0
      %4694 = vmatpush1.msra.mxu0 0.0
      %4695 = vmatprep.subr.mxu0 0.0
      %4696 = vmatpush1.msra.mxu0 0.0
      %4697 = vmatprep.subr.mxu0 0.0
      %4698 = vmatpush1.msra.mxu0 0.0
      %4699 = vmatprep.subr.mxu0 0.0
      %4700 = vmatpush1.msra.mxu0 0.0
      %4701 = vmatprep.subr.mxu0 0.0
      %4702 = vmatpush1.msra.mxu0 0.0
      %4703 = vmatprep.subr.mxu0 0.0
      %4704 = vmatpush1.msra.mxu0 0.0
      %4705 = vmatprep.subr.mxu0 0.0
      %4706 = vmatpush1.msra.mxu0 0.0
      %4707 = vmatprep.subr.mxu0 0.0
      %4708 = vmatpush1.msra.mxu0 0.0
      %4709 = vmatprep.subr.mxu0 0.0
      %4710 = vmatpush1.msra.mxu0 0.0
      %4711 = vmatprep.subr.mxu0 0.0
      %4712 = vmatpush1.msra.mxu0 0.0
      %4713 = vmatprep.subr.mxu0 0.0
      %4714 = vmatpush1.msra.mxu0 0.0
      %4715 = vmatprep.subr.mxu0 0.0
      %4716 = vmatpush1.msra.mxu0 0.0
      %4717 = vmatprep.subr.mxu0 0.0
      %4718 = vmatpush1.msra.mxu0 0.0
      %4719 = vmatprep.subr.mxu0 0.0
      %4720 = vmatpush1.msra.mxu0 0.0
      %4721 = vmatprep.subr.mxu0 0.0
      %4722 = vmatpush1.msra.mxu0 0.0
      %4723 = vmatprep.subr.mxu0 0.0
      %4724 = vmatpush1.msra.mxu0 0.0
      %4725 = vmatprep.mubr.f32.mxu0 0.0
      %4726 = vmatmul.mubr.f32.gmra.mrb[0].mxu0 %v4659
      %v4727 = vpop.f32.mrb[0].mxu0
      %v4728 = vadd.f32 0.0, %v4727
      %v4729 = vpop.f32.mrb[0].mxu0
      %4730 = vdwg.mxu0
      %v4731 = vsub.f32 %v1104, %v4728
      %4732 = vmatprep.subr.mxu0 0.0
      %4733 = vmatpush1.msra.mxu0 %v4731
      %4734 = vmatprep.subr.mxu0 0.0
      %4735 = vmatpush1.msra.mxu0 0.0
      %4736 = vmatprep.subr.mxu0 0.0
      %4737 = vmatpush1.msra.mxu0 0.0
      %4738 = vmatprep.subr.mxu0 0.0
      %4739 = vmatpush1.msra.mxu0 0.0
      %4740 = vmatprep.subr.mxu0 0.0
      %4741 = vmatpush1.msra.mxu0 0.0
      %4742 = vmatprep.subr.mxu0 0.0
      %4743 = vmatpush1.msra.mxu0 0.0
      %4744 = vmatprep.subr.mxu0 0.0
      %4745 = vmatpush1.msra.mxu0 0.0
      %4746 = vmatprep.subr.mxu0 0.0
      %4747 = vmatpush1.msra.mxu0 0.0
      %4748 = vmatprep.subr.mxu0 0.0
      %4749 = vmatpush1.msra.mxu0 0.0
      %4750 = vmatprep.subr.mxu0 0.0
      %4751 = vmatpush1.msra.mxu0 0.0
      %4752 = vmatprep.subr.mxu0 0.0
      %4753 = vmatpush1.msra.mxu0 0.0
      %4754 = vmatprep.subr.mxu0 0.0
      %4755 = vmatpush1.msra.mxu0 0.0
      %4756 = vmatprep.subr.mxu0 0.0
      %4757 = vmatpush1.msra.mxu0 0.0
      %4758 = vmatprep.subr.mxu0 0.0
      %4759 = vmatpush1.msra.mxu0 0.0
      %4760 = vmatprep.subr.mxu0 0.0
      %4761 = vmatpush1.msra.mxu0 0.0
      %4762 = vmatprep.subr.mxu0 0.0
      %4763 = vmatpush1.msra.mxu0 0.0
      %4764 = vmatprep.subr.mxu0 0.0
      %4765 = vmatpush1.msra.mxu0 0.0
      %4766 = vmatprep.subr.mxu0 0.0
      %4767 = vmatpush1.msra.mxu0 0.0
      %4768 = vmatprep.subr.mxu0 0.0
      %4769 = vmatpush1.msra.mxu0 0.0
      %4770 = vmatprep.subr.mxu0 0.0
      %4771 = vmatpush1.msra.mxu0 0.0
      %4772 = vmatprep.subr.mxu0 0.0
      %4773 = vmatpush1.msra.mxu0 0.0
      %4774 = vmatprep.subr.mxu0 0.0
      %4775 = vmatpush1.msra.mxu0 0.0
      %4776 = vmatprep.subr.mxu0 0.0
      %4777 = vmatpush1.msra.mxu0 0.0
      %4778 = vmatprep.subr.mxu0 0.0
      %4779 = vmatpush1.msra.mxu0 0.0
      %4780 = vmatprep.subr.mxu0 0.0
      %4781 = vmatpush1.msra.mxu0 0.0
      %4782 = vmatprep.subr.mxu0 0.0
      %4783 = vmatpush1.msra.mxu0 0.0
      %4784 = vmatprep.subr.mxu0 0.0
      %4785 = vmatpush1.msra.mxu0 0.0
      %4786 = vmatprep.subr.mxu0 0.0
      %4787 = vmatpush1.msra.mxu0 0.0
      %4788 = vmatprep.subr.mxu0 0.0
      %4789 = vmatpush1.msra.mxu0 0.0
      %4790 = vmatprep.subr.mxu0 0.0
      %4791 = vmatpush1.msra.mxu0 0.0
      %4792 = vmatprep.subr.mxu0 0.0
      %4793 = vmatpush1.msra.mxu0 0.0
      %4794 = vmatprep.subr.mxu0 0.0
      %4795 = vmatpush1.msra.mxu0 0.0
      %4796 = vmatprep.mubr.f32.mxu0 0.0
      %4797 = vmatmul.mubr.f32.gmra.mrb[0].mxu0 %v4659
      %v4798 = vpop.f32.mrb[0].mxu0
      %v4799 = vadd.f32 0.0, %v4798
      %v4800 = vpop.f32.mrb[0].mxu0
      %4801 = vdwg.mxu0
      %v4802 = vsub.f32 %v1179, %v4799
      %v4803 = vmul.f32 %v4584, 0.25
      %v4805 = vsel %vm654, %v4803, 0
      %4807 = vmatprep.subr.mxu0 0.0
      %4808 = vmatpush1.msra.mxu0 %v4802
      %4809 = vmatprep.subr.mxu0 0.0
      %4810 = vmatpush1.msra.mxu0 0.0
      %4811 = vmatprep.subr.mxu0 0.0
      %4812 = vmatpush1.msra.mxu0 0.0
      %4813 = vmatprep.subr.mxu0 0.0
      %4814 = vmatpush1.msra.mxu0 0.0
      %4815 = vmatprep.subr.mxu0 0.0
      %4816 = vmatpush1.msra.mxu0 0.0
      %4817 = vmatprep.subr.mxu0 0.0
      %4818 = vmatpush1.msra.mxu0 0.0
      %4819 = vmatprep.subr.mxu0 0.0
      %4820 = vmatpush1.msra.mxu0 0.0
      %4821 = vmatprep.subr.mxu0 0.0
      %4822 = vmatpush1.msra.mxu0 0.0
      %4823 = vmatprep.subr.mxu0 0.0
      %4824 = vmatpush1.msra.mxu0 0.0
      %4825 = vmatprep.subr.mxu0 0.0
      %4826 = vmatpush1.msra.mxu0 0.0
      %4827 = vmatprep.subr.mxu0 0.0
      %4828 = vmatpush1.msra.mxu0 0.0
      %4829 = vmatprep.subr.mxu0 0.0
      %4830 = vmatpush1.msra.mxu0 0.0
      %4831 = vmatprep.subr.mxu0 0.0
      %4832 = vmatpush1.msra.mxu0 0.0
      %4833 = vmatprep.subr.mxu0 0.0
      %4834 = vmatpush1.msra.mxu0 0.0
      %4835 = vmatprep.subr.mxu0 0.0
      %4836 = vmatpush1.msra.mxu0 0.0
      %4837 = vmatprep.subr.mxu0 0.0
      %4838 = vmatpush1.msra.mxu0 0.0
      %4839 = vmatprep.subr.mxu0 0.0
      %4840 = vmatpush1.msra.mxu0 0.0
      %4841 = vmatprep.subr.mxu0 0.0
      %4842 = vmatpush1.msra.mxu0 0.0
      %4843 = vmatprep.subr.mxu0 0.0
      %4844 = vmatpush1.msra.mxu0 0.0
      %4845 = vmatprep.subr.mxu0 0.0
      %4846 = vmatpush1.msra.mxu0 0.0
      %4847 = vmatprep.subr.mxu0 0.0
      %4848 = vmatpush1.msra.mxu0 0.0
      %4849 = vmatprep.subr.mxu0 0.0
      %4850 = vmatpush1.msra.mxu0 0.0
      %4851 = vmatprep.subr.mxu0 0.0
      %4852 = vmatpush1.msra.mxu0 0.0
      %4853 = vmatprep.subr.mxu0 0.0
      %4854 = vmatpush1.msra.mxu0 0.0
      %4855 = vmatprep.subr.mxu0 0.0
      %4856 = vmatpush1.msra.mxu0 0.0
      %4857 = vmatprep.subr.mxu0 0.0
      %4858 = vmatpush1.msra.mxu0 0.0
      %4859 = vmatprep.subr.mxu0 0.0
      %4860 = vmatpush1.msra.mxu0 0.0
      %4861 = vmatprep.subr.mxu0 0.0
      %4862 = vmatpush1.msra.mxu0 0.0
      %4863 = vmatprep.subr.mxu0 0.0
      %4864 = vmatpush1.msra.mxu0 0.0
      %4865 = vmatprep.subr.mxu0 0.0
      %4866 = vmatpush1.msra.mxu0 0.0
      %4867 = vmatprep.subr.mxu0 0.0
      %4868 = vmatpush1.msra.mxu0 0.0
      %4869 = vmatprep.subr.mxu0 0.0
      %4870 = vmatpush1.msra.mxu0 0.0
      %4871 = vmatprep.mubr.f32.mxu0 0.0
      %4872 = vmatmul.mubr.f32.gmra.mrb[0].mxu0 %v4805
      %v4873 = vpop.f32.mrb[0].mxu0
      %v4874 = vadd.f32 0.0, %v4873
      %v4875 = vpop.f32.mrb[0].mxu0
      %4876 = vdwg.mxu0
      %4877 = vmatprep.subr.mxu0 0.0
      %4878 = vmatpush1.msra.mxu0 %v4874
      %4879 = vmatprep.subr.mxu0 0.0
      %4880 = vmatpush1.msra.mxu0 0.0
      %4881 = vmatprep.subr.mxu0 0.0
      %4882 = vmatpush1.msra.mxu0 0.0
      %4883 = vmatprep.subr.mxu0 0.0
      %4884 = vmatpush1.msra.mxu0 0.0
      %4885 = vmatprep.subr.mxu0 0.0
      %4886 = vmatpush1.msra.mxu0 0.0
      %4887 = vmatprep.subr.mxu0 0.0
      %4888 = vmatpush1.msra.mxu0 0.0
      %4889 = vmatprep.subr.mxu0 0.0
      %4890 = vmatpush1.msra.mxu0 0.0
      %4891 = vmatprep.subr.mxu0 0.0
      %4892 = vmatpush1.msra.mxu0 0.0
      %4893 = vmatprep.subr.mxu0 0.0
      %4894 = vmatpush1.msra.mxu0 0.0
      %4895 = vmatprep.subr.mxu0 0.0
      %4896 = vmatpush1.msra.mxu0 0.0
      %4897 = vmatprep.subr.mxu0 0.0
      %4898 = vmatpush1.msra.mxu0 0.0
      %4899 = vmatprep.subr.mxu0 0.0
      %4900 = vmatpush1.msra.mxu0 0.0
      %4901 = vmatprep.subr.mxu0 0.0
      %4902 = vmatpush1.msra.mxu0 0.0
      %4903 = vmatprep.subr.mxu0 0.0
      %4904 = vmatpush1.msra.mxu0 0.0
      %4905 = vmatprep.subr.mxu0 0.0
      %4906 = vmatpush1.msra.mxu0 0.0
      %4907 = vmatprep.subr.mxu0 0.0
      %4908 = vmatpush1.msra.mxu0 0.0
      %4909 = vmatprep.subr.mxu0 0.0
      %4910 = vmatpush1.msra.mxu0 0.0
      %4911 = vmatprep.subr.mxu0 0.0
      %4912 = vmatpush1.msra.mxu0 0.0
      %4913 = vmatprep.subr.mxu0 0.0
      %4914 = vmatpush1.msra.mxu0 0.0
      %4915 = vmatprep.subr.mxu0 0.0
      %4916 = vmatpush1.msra.mxu0 0.0
      %4917 = vmatprep.subr.mxu0 0.0
      %4918 = vmatpush1.msra.mxu0 0.0
      %4919 = vmatprep.subr.mxu0 0.0
      %4920 = vmatpush1.msra.mxu0 0.0
      %4921 = vmatprep.subr.mxu0 0.0
      %4922 = vmatpush1.msra.mxu0 0.0
      %4923 = vmatprep.subr.mxu0 0.0
      %4924 = vmatpush1.msra.mxu0 0.0
      %4925 = vmatprep.subr.mxu0 0.0
      %4926 = vmatpush1.msra.mxu0 0.0
      %4927 = vmatprep.subr.mxu0 0.0
      %4928 = vmatpush1.msra.mxu0 0.0
      %4929 = vmatprep.subr.mxu0 0.0
      %4930 = vmatpush1.msra.mxu0 0.0
      %4931 = vmatprep.subr.mxu0 0.0
      %4932 = vmatpush1.msra.mxu0 0.0
      %4933 = vmatprep.subr.mxu0 0.0
      %4934 = vmatpush1.msra.mxu0 0.0
      %4935 = vmatprep.subr.mxu0 0.0
      %4936 = vmatpush1.msra.mxu0 0.0
      %4937 = vmatprep.subr.mxu0 0.0
      %4938 = vmatpush1.msra.mxu0 0.0
      %4939 = vmatprep.subr.mxu0 0.0
      %4940 = vmatpush1.msra.mxu0 0.0
      %4941 = vmatprep.mubr.f32.mxu0 0.0
      %4942 = vmatmul.mubr.f32.gmra.mrb[0].mxu0 %v3715
      %v4943 = vpop.f32.mrb[0].mxu0
      %v4944 = vadd.f32 0.0, %v4943
      %v4945 = vpop.f32.mrb[0].mxu0
      %4946 = vdwg.mxu0
      %v4947 = vsub.f32 %v1102, %v4944
      %v4949 = vsel %vm654, %v4944, 0
      %4951 = vmatprep.subr.mxu0 0.0
      %4952 = vmatpush1.msra.mxu0 %v4947
      %4953 = vmatprep.subr.mxu0 0.0
      %4954 = vmatpush1.msra.mxu0 0.0
      %4955 = vmatprep.subr.mxu0 0.0
      %4956 = vmatpush1.msra.mxu0 0.0
      %4957 = vmatprep.subr.mxu0 0.0
      %4958 = vmatpush1.msra.mxu0 0.0
      %4959 = vmatprep.subr.mxu0 0.0
      %4960 = vmatpush1.msra.mxu0 0.0
      %4961 = vmatprep.subr.mxu0 0.0
      %4962 = vmatpush1.msra.mxu0 0.0
      %4963 = vmatprep.subr.mxu0 0.0
      %4964 = vmatpush1.msra.mxu0 0.0
      %4965 = vmatprep.subr.mxu0 0.0
      %4966 = vmatpush1.msra.mxu0 0.0
      %4967 = vmatprep.subr.mxu0 0.0
      %4968 = vmatpush1.msra.mxu0 0.0
      %4969 = vmatprep.subr.mxu0 0.0
      %4970 = vmatpush1.msra.mxu0 0.0
      %4971 = vmatprep.subr.mxu0 0.0
      %4972 = vmatpush1.msra.mxu0 0.0
      %4973 = vmatprep.subr.mxu0 0.0
      %4974 = vmatpush1.msra.mxu0 0.0
      %4975 = vmatprep.subr.mxu0 0.0
      %4976 = vmatpush1.msra.mxu0 0.0
      %4977 = vmatprep.subr.mxu0 0.0
      %4978 = vmatpush1.msra.mxu0 0.0
      %4979 = vmatprep.subr.mxu0 0.0
      %4980 = vmatpush1.msra.mxu0 0.0
      %4981 = vmatprep.subr.mxu0 0.0
      %4982 = vmatpush1.msra.mxu0 0.0
      %4983 = vmatprep.subr.mxu0 0.0
      %4984 = vmatpush1.msra.mxu0 0.0
      %4985 = vmatprep.subr.mxu0 0.0
      %4986 = vmatpush1.msra.mxu0 0.0
      %4987 = vmatprep.subr.mxu0 0.0
      %4988 = vmatpush1.msra.mxu0 0.0
      %4989 = vmatprep.subr.mxu0 0.0
      %4990 = vmatpush1.msra.mxu0 0.0
      %4991 = vmatprep.subr.mxu0 0.0
      %4992 = vmatpush1.msra.mxu0 0.0
      %4993 = vmatprep.subr.mxu0 0.0
      %4994 = vmatpush1.msra.mxu0 0.0
      %4995 = vmatprep.subr.mxu0 0.0
      %4996 = vmatpush1.msra.mxu0 0.0
      %4997 = vmatprep.subr.mxu0 0.0
      %4998 = vmatpush1.msra.mxu0 0.0
      %4999 = vmatprep.subr.mxu0 0.0
      %5000 = vmatpush1.msra.mxu0 0.0
      %5001 = vmatprep.subr.mxu0 0.0
      %5002 = vmatpush1.msra.mxu0 0.0
      %5003 = vmatprep.subr.mxu0 0.0
      %5004 = vmatpush1.msra.mxu0 0.0
      %5005 = vmatprep.subr.mxu0 0.0
      %5006 = vmatpush1.msra.mxu0 0.0
      %5007 = vmatprep.subr.mxu0 0.0
      %5008 = vmatpush1.msra.mxu0 0.0
      %5009 = vmatprep.subr.mxu0 0.0
      %5010 = vmatpush1.msra.mxu0 0.0
      %5011 = vmatprep.subr.mxu0 0.0
      %5012 = vmatpush1.msra.mxu0 0.0
      %5013 = vmatprep.subr.mxu0 0.0
      %5014 = vmatpush1.msra.mxu0 0.0
      %5015 = vmatprep.mubr.f32.mxu0 0.0
      %5016 = vmatmul.mubr.f32.gmra.mrb[0].mxu0 %v4949
      %v5017 = vpop.f32.mrb[0].mxu0
      %v5018 = vadd.f32 0.0, %v5017
      %v5019 = vpop.f32.mrb[0].mxu0
      %5020 = vdwg.mxu0
      %v5021 = vsub.f32 %v1104, %v5018
      %5022 = vmatprep.subr.mxu0 0.0
      %5023 = vmatpush1.msra.mxu0 %v5021
      %5024 = vmatprep.subr.mxu0 0.0
      %5025 = vmatpush1.msra.mxu0 0.0
      %5026 = vmatprep.subr.mxu0 0.0
      %5027 = vmatpush1.msra.mxu0 0.0
      %5028 = vmatprep.subr.mxu0 0.0
      %5029 = vmatpush1.msra.mxu0 0.0
      %5030 = vmatprep.subr.mxu0 0.0
      %5031 = vmatpush1.msra.mxu0 0.0
      %5032 = vmatprep.subr.mxu0 0.0
      %5033 = vmatpush1.msra.mxu0 0.0
      %5034 = vmatprep.subr.mxu0 0.0
      %5035 = vmatpush1.msra.mxu0 0.0
      %5036 = vmatprep.subr.mxu0 0.0
      %5037 = vmatpush1.msra.mxu0 0.0
      %5038 = vmatprep.subr.mxu0 0.0
      %5039 = vmatpush1.msra.mxu0 0.0
      %5040 = vmatprep.subr.mxu0 0.0
      %5041 = vmatpush1.msra.mxu0 0.0
      %5042 = vmatprep.subr.mxu0 0.0
      %5043 = vmatpush1.msra.mxu0 0.0
      %5044 = vmatprep.subr.mxu0 0.0
      %5045 = vmatpush1.msra.mxu0 0.0
      %5046 = vmatprep.subr.mxu0 0.0
      %5047 = vmatpush1.msra.mxu0 0.0
      %5048 = vmatprep.subr.mxu0 0.0
      %5049 = vmatpush1.msra.mxu0 0.0
      %5050 = vmatprep.subr.mxu0 0.0
      %5051 = vmatpush1.msra.mxu0 0.0
      %5052 = vmatprep.subr.mxu0 0.0
      %5053 = vmatpush1.msra.mxu0 0.0
      %5054 = vmatprep.subr.mxu0 0.0
      %5055 = vmatpush1.msra.mxu0 0.0
      %5056 = vmatprep.subr.mxu0 0.0
      %5057 = vmatpush1.msra.mxu0 0.0
      %5058 = vmatprep.subr.mxu0 0.0
      %5059 = vmatpush1.msra.mxu0 0.0
      %5060 = vmatprep.subr.mxu0 0.0
      %5061 = vmatpush1.msra.mxu0 0.0
      %5062 = vmatprep.subr.mxu0 0.0
      %5063 = vmatpush1.msra.mxu0 0.0
      %5064 = vmatprep.subr.mxu0 0.0
      %5065 = vmatpush1.msra.mxu0 0.0
      %5066 = vmatprep.subr.mxu0 0.0
      %5067 = vmatpush1.msra.mxu0 0.0
      %5068 = vmatprep.subr.mxu0 0.0
      %5069 = vmatpush1.msra.mxu0 0.0
      %5070 = vmatprep.subr.mxu0 0.0
      %5071 = vmatpush1.msra.mxu0 0.0
      %5072 = vmatprep.subr.mxu0 0.0
      %5073 = vmatpush1.msra.mxu0 0.0
      %5074 = vmatprep.subr.mxu0 0.0
      %5075 = vmatpush1.msra.mxu0 0.0
      %5076 = vmatprep.subr.mxu0 0.0
      %5077 = vmatpush1.msra.mxu0 0.0
      %5078 = vmatprep.subr.mxu0 0.0
      %5079 = vmatpush1.msra.mxu0 0.0
      %5080 = vmatprep.subr.mxu0 0.0
      %5081 = vmatpush1.msra.mxu0 0.0
      %5082 = vmatprep.subr.mxu0 0.0
      %5083 = vmatpush1.msra.mxu0 0.0
      %5084 = vmatprep.subr.mxu0 0.0
      %5085 = vmatpush1.msra.mxu0 0.0
      %5086 = vmatprep.mubr.f32.mxu0 0.0
      %5087 = vmatmul.mubr.f32.gmra.mrb[0].mxu0 %v4949
      %v5088 = vpop.f32.mrb[0].mxu0
      %v5089 = vadd.f32 0.0, %v5088
      %v5090 = vpop.f32.mrb[0].mxu0
      %5091 = vdwg.mxu0
      %v5092 = vsub.f32 %v1179, %v5089
      %v5093 = vmul.f32 %v4874, 0.25
      %v5095 = vsel %vm654, %v5093, 0
      %5097 = vmatprep.subr.mxu0 0.0
      %5098 = vmatpush1.msra.mxu0 %v5092
      %5099 = vmatprep.subr.mxu0 0.0
      %5100 = vmatpush1.msra.mxu0 0.0
      %5101 = vmatprep.subr.mxu0 0.0
      %5102 = vmatpush1.msra.mxu0 0.0
      %5103 = vmatprep.subr.mxu0 0.0
      %5104 = vmatpush1.msra.mxu0 0.0
      %5105 = vmatprep.subr.mxu0 0.0
      %5106 = vmatpush1.msra.mxu0 0.0
      %5107 = vmatprep.subr.mxu0 0.0
      %5108 = vmatpush1.msra.mxu0 0.0
      %5109 = vmatprep.subr.mxu0 0.0
      %5110 = vmatpush1.msra.mxu0 0.0
      %5111 = vmatprep.subr.mxu0 0.0
      %5112 = vmatpush1.msra.mxu0 0.0
      %5113 = vmatprep.subr.mxu0 0.0
      %5114 = vmatpush1.msra.mxu0 0.0
      %5115 = vmatprep.subr.mxu0 0.0
      %5116 = vmatpush1.msra.mxu0 0.0
      %5117 = vmatprep.subr.mxu0 0.0
      %5118 = vmatpush1.msra.mxu0 0.0
      %5119 = vmatprep.subr.mxu0 0.0
      %5120 = vmatpush1.msra.mxu0 0.0
      %5121 = vmatprep.subr.mxu0 0.0
      %5122 = vmatpush1.msra.mxu0 0.0
      %5123 = vmatprep.subr.mxu0 0.0
      %5124 = vmatpush1.msra.mxu0 0.0
      %5125 = vmatprep.subr.mxu0 0.0
      %5126 = vmatpush1.msra.mxu0 0.0
      %5127 = vmatprep.subr.mxu0 0.0
      %5128 = vmatpush1.msra.mxu0 0.0
      %5129 = vmatprep.subr.mxu0 0.0
      %5130 = vmatpush1.msra.mxu0 0.0
      %5131 = vmatprep.subr.mxu0 0.0
      %5132 = vmatpush1.msra.mxu0 0.0
      %5133 = vmatprep.subr.mxu0 0.0
      %5134 = vmatpush1.msra.mxu0 0.0
      %5135 = vmatprep.subr.mxu0 0.0
      %5136 = vmatpush1.msra.mxu0 0.0
      %5137 = vmatprep.subr.mxu0 0.0
      %5138 = vmatpush1.msra.mxu0 0.0
      %5139 = vmatprep.subr.mxu0 0.0
      %5140 = vmatpush1.msra.mxu0 0.0
      %5141 = vmatprep.subr.mxu0 0.0
      %5142 = vmatpush1.msra.mxu0 0.0
      %5143 = vmatprep.subr.mxu0 0.0
      %5144 = vmatpush1.msra.mxu0 0.0
      %5145 = vmatprep.subr.mxu0 0.0
      %5146 = vmatpush1.msra.mxu0 0.0
      %5147 = vmatprep.subr.mxu0 0.0
      %5148 = vmatpush1.msra.mxu0 0.0
      %5149 = vmatprep.subr.mxu0 0.0
      %5150 = vmatpush1.msra.mxu0 0.0
      %5151 = vmatprep.subr.mxu0 0.0
      %5152 = vmatpush1.msra.mxu0 0.0
      %5153 = vmatprep.subr.mxu0 0.0
      %5154 = vmatpush1.msra.mxu0 0.0
      %5155 = vmatprep.subr.mxu0 0.0
      %5156 = vmatpush1.msra.mxu0 0.0
      %5157 = vmatprep.subr.mxu0 0.0
      %5158 = vmatpush1.msra.mxu0 0.0
      %5159 = vmatprep.subr.mxu0 0.0
      %5160 = vmatpush1.msra.mxu0 0.0
      %5161 = vmatprep.mubr.f32.mxu0 0.0
      %5162 = vmatmul.mubr.f32.gmra.mrb[0].mxu0 %v5095
      %v5163 = vpop.f32.mrb[0].mxu0
      %v5164 = vadd.f32 0.0, %v5163
      %v5165 = vpop.f32.mrb[0].mxu0
      %5166 = vdwg.mxu0
      %5167 = vmatprep.subr.mxu0 0.0
      %5168 = vmatpush1.msra.mxu0 %v5164
      %5169 = vmatprep.subr.mxu0 0.0
      %5170 = vmatpush1.msra.mxu0 0.0
      %5171 = vmatprep.subr.mxu0 0.0
      %5172 = vmatpush1.msra.mxu0 0.0
      %5173 = vmatprep.subr.mxu0 0.0
      %5174 = vmatpush1.msra.mxu0 0.0
      %5175 = vmatprep.subr.mxu0 0.0
      %5176 = vmatpush1.msra.mxu0 0.0
      %5177 = vmatprep.subr.mxu0 0.0
      %5178 = vmatpush1.msra.mxu0 0.0
      %5179 = vmatprep.subr.mxu0 0.0
      %5180 = vmatpush1.msra.mxu0 0.0
      %5181 = vmatprep.subr.mxu0 0.0
      %5182 = vmatpush1.msra.mxu0 0.0
      %5183 = vmatprep.subr.mxu0 0.0
      %5184 = vmatpush1.msra.mxu0 0.0
      %5185 = vmatprep.subr.mxu0 0.0
      %5186 = vmatpush1.msra.mxu0 0.0
      %5187 = vmatprep.subr.mxu0 0.0
      %5188 = vmatpush1.msra.mxu0 0.0
      %5189 = vmatprep.subr.mxu0 0.0
      %5190 = vmatpush1.msra.mxu0 0.0
      %5191 = vmatprep.subr.mxu0 0.0
      %5192 = vmatpush1.msra.mxu0 0.0
      %5193 = vmatprep.subr.mxu0 0.0
      %5194 = vmatpush1.msra.mxu0 0.0
      %5195 = vmatprep.subr.mxu0 0.0
      %5196 = vmatpush1.msra.mxu0 0.0
      %5197 = vmatprep.subr.mxu0 0.0
      %5198 = vmatpush1.msra.mxu0 0.0
      %5199 = vmatprep.subr.mxu0 0.0
      %5200 = vmatpush1.msra.mxu0 0.0
      %5201 = vmatprep.subr.mxu0 0.0
      %5202 = vmatpush1.msra.mxu0 0.0
      %5203 = vmatprep.subr.mxu0 0.0
      %5204 = vmatpush1.msra.mxu0 0.0
      %5205 = vmatprep.subr.mxu0 0.0
      %5206 = vmatpush1.msra.mxu0 0.0
      %5207 = vmatprep.subr.mxu0 0.0
      %5208 = vmatpush1.msra.mxu0 0.0
      %5209 = vmatprep.subr.mxu0 0.0
      %5210 = vmatpush1.msra.mxu0 0.0
      %5211 = vmatprep.subr.mxu0 0.0
      %5212 = vmatpush1.msra.mxu0 0.0
      %5213 = vmatprep.subr.mxu0 0.0
      %5214 = vmatpush1.msra.mxu0 0.0
      %5215 = vmatprep.subr.mxu0 0.0
      %5216 = vmatpush1.msra.mxu0 0.0
      %5217 = vmatprep.subr.mxu0 0.0
      %5218 = vmatpush1.msra.mxu0 0.0
      %5219 = vmatprep.subr.mxu0 0.0
      %5220 = vmatpush1.msra.mxu0 0.0
      %5221 = vmatprep.subr.mxu0 0.0
      %5222 = vmatpush1.msra.mxu0 0.0
      %5223 = vmatprep.subr.mxu0 0.0
      %5224 = vmatpush1.msra.mxu0 0.0
      %5225 = vmatprep.subr.mxu0 0.0
      %5226 = vmatpush1.msra.mxu0 0.0
      %5227 = vmatprep.subr.mxu0 0.0
      %5228 = vmatpush1.msra.mxu0 0.0
      %5229 = vmatprep.subr.mxu0 0.0
      %5230 = vmatpush1.msra.mxu0 0.0
      %5231 = vmatprep.mubr.f32.mxu0 0.0
      %5232 = vmatmul.mubr.f32.gmra.mrb[0].mxu0 %v3715
      %v5233 = vpop.f32.mrb[0].mxu0
      %v5234 = vadd.f32 0.0, %v5233
      %v5235 = vpop.f32.mrb[0].mxu0
      %5236 = vdwg.mxu0
      %v5237 = vsub.f32 %v1102, %v5234
      %v5239 = vsel %vm654, %v5234, 0
      %5241 = vmatprep.subr.mxu0 0.0
      %5242 = vmatpush1.msra.mxu0 %v5237
      %5243 = vmatprep.subr.mxu0 0.0
      %5244 = vmatpush1.msra.mxu0 0.0
      %5245 = vmatprep.subr.mxu0 0.0
      %5246 = vmatpush1.msra.mxu0 0.0
      %5247 = vmatprep.subr.mxu0 0.0
      %5248 = vmatpush1.msra.mxu0 0.0
      %5249 = vmatprep.subr.mxu0 0.0
      %5250 = vmatpush1.msra.mxu0 0.0
      %5251 = vmatprep.subr.mxu0 0.0
      %5252 = vmatpush1.msra.mxu0 0.0
      %5253 = vmatprep.subr.mxu0 0.0
      %5254 = vmatpush1.msra.mxu0 0.0
      %5255 = vmatprep.subr.mxu0 0.0
      %5256 = vmatpush1.msra.mxu0 0.0
      %5257 = vmatprep.subr.mxu0 0.0
      %5258 = vmatpush1.msra.mxu0 0.0
      %5259 = vmatprep.subr.mxu0 0.0
      %5260 = vmatpush1.msra.mxu0 0.0
      %5261 = vmatprep.subr.mxu0 0.0
      %5262 = vmatpush1.msra.mxu0 0.0
      %5263 = vmatprep.subr.mxu0 0.0
      %5264 = vmatpush1.msra.mxu0 0.0
      %5265 = vmatprep.subr.mxu0 0.0
      %5266 = vmatpush1.msra.mxu0 0.0
      %5267 = vmatprep.subr.mxu0 0.0
      %5268 = vmatpush1.msra.mxu0 0.0
      %5269 = vmatprep.subr.mxu0 0.0
      %5270 = vmatpush1.msra.mxu0 0.0
      %5271 = vmatprep.subr.mxu0 0.0
      %5272 = vmatpush1.msra.mxu0 0.0
      %5273 = vmatprep.subr.mxu0 0.0
      %5274 = vmatpush1.msra.mxu0 0.0
      %5275 = vmatprep.subr.mxu0 0.0
      %5276 = vmatpush1.msra.mxu0 0.0
      %5277 = vmatprep.subr.mxu0 0.0
      %5278 = vmatpush1.msra.mxu0 0.0
      %5279 = vmatprep.subr.mxu0 0.0
      %5280 = vmatpush1.msra.mxu0 0.0
      %5281 = vmatprep.subr.mxu0 0.0
      %5282 = vmatpush1.msra.mxu0 0.0
      %5283 = vmatprep.subr.mxu0 0.0
      %5284 = vmatpush1.msra.mxu0 0.0
      %5285 = vmatprep.subr.mxu0 0.0
      %5286 = vmatpush1.msra.mxu0 0.0
      %5287 = vmatprep.subr.mxu0 0.0
      %5288 = vmatpush1.msra.mxu0 0.0
      %5289 = vmatprep.subr.mxu0 0.0
      %5290 = vmatpush1.msra.mxu0 0.0
      %5291 = vmatprep.subr.mxu0 0.0
      %5292 = vmatpush1.msra.mxu0 0.0
      %5293 = vmatprep.subr.mxu0 0.0
      %5294 = vmatpush1.msra.mxu0 0.0
      %5295 = vmatprep.subr.mxu0 0.0
      %5296 = vmatpush1.msra.mxu0 0.0
      %5297 = vmatprep.subr.mxu0 0.0
      %5298 = vmatpush1.msra.mxu0 0.0
      %5299 = vmatprep.subr.mxu0 0.0
      %5300 = vmatpush1.msra.mxu0 0.0
      %5301 = vmatprep.subr.mxu0 0.0
      %5302 = vmatpush1.msra.mxu0 0.0
      %5303 = vmatprep.subr.mxu0 0.0
      %5304 = vmatpush1.msra.mxu0 0.0
      %5305 = vmatprep.mubr.f32.mxu0 0.0
      %5306 = vmatmul.mubr.f32.gmra.mrb[0].mxu0 %v5239
      %v5307 = vpop.f32.mrb[0].mxu0
      %v5308 = vadd.f32 0.0, %v5307
      %v5309 = vpop.f32.mrb[0].mxu0
      %5310 = vdwg.mxu0
      %v5311 = vsub.f32 %v1104, %v5308
      %5312 = vmatprep.subr.mxu0 0.0
      %5313 = vmatpush1.msra.mxu0 %v5311
      %5314 = vmatprep.subr.mxu0 0.0
      %5315 = vmatpush1.msra.mxu0 0.0
      %5316 = vmatprep.subr.mxu0 0.0
      %5317 = vmatpush1.msra.mxu0 0.0
      %5318 = vmatprep.subr.mxu0 0.0
      %5319 = vmatpush1.msra.mxu0 0.0
      %5320 = vmatprep.subr.mxu0 0.0
      %5321 = vmatpush1.msra.mxu0 0.0
      %5322 = vmatprep.subr.mxu0 0.0
      %5323 = vmatpush1.msra.mxu0 0.0
      %5324 = vmatprep.subr.mxu0 0.0
      %5325 = vmatpush1.msra.mxu0 0.0
      %5326 = vmatprep.subr.mxu0 0.0
      %5327 = vmatpush1.msra.mxu0 0.0
      %5328 = vmatprep.subr.mxu0 0.0
      %5329 = vmatpush1.msra.mxu0 0.0
      %5330 = vmatprep.subr.mxu0 0.0
      %5331 = vmatpush1.msra.mxu0 0.0
      %5332 = vmatprep.subr.mxu0 0.0
      %5333 = vmatpush1.msra.mxu0 0.0
      %5334 = vmatprep.subr.mxu0 0.0
      %5335 = vmatpush1.msra.mxu0 0.0
      %5336 = vmatprep.subr.mxu0 0.0
      %5337 = vmatpush1.msra.mxu0 0.0
      %5338 = vmatprep.subr.mxu0 0.0
      %5339 = vmatpush1.msra.mxu0 0.0
      %5340 = vmatprep.subr.mxu0 0.0
      %5341 = vmatpush1.msra.mxu0 0.0
      %5342 = vmatprep.subr.mxu0 0.0
      %5343 = vmatpush1.msra.mxu0 0.0
      %5344 = vmatprep.subr.mxu0 0.0
      %5345 = vmatpush1.msra.mxu0 0.0
      %5346 = vmatprep.subr.mxu0 0.0
      %5347 = vmatpush1.msra.mxu0 0.0
      %5348 = vmatprep.subr.mxu0 0.0
      %5349 = vmatpush1.msra.mxu0 0.0
      %5350 = vmatprep.subr.mxu0 0.0
      %5351 = vmatpush1.msra.mxu0 0.0
      %5352 = vmatprep.subr.mxu0 0.0
      %5353 = vmatpush1.msra.mxu0 0.0
      %5354 = vmatprep.subr.mxu0 0.0
      %5355 = vmatpush1.msra.mxu0 0.0
      %5356 = vmatprep.subr.mxu0 0.0
      %5357 = vmatpush1.msra.mxu0 0.0
      %5358 = vmatprep.subr.mxu0 0.0
      %5359 = vmatpush1.msra.mxu0 0.0
      %5360 = vmatprep.subr.mxu0 0.0
      %5361 = vmatpush1.msra.mxu0 0.0
      %5362 = vmatprep.subr.mxu0 0.0
      %5363 = vmatpush1.msra.mxu0 0.0
      %5364 = vmatprep.subr.mxu0 0.0
      %5365 = vmatpush1.msra.mxu0 0.0
      %5366 = vmatprep.subr.mxu0 0.0
      %5367 = vmatpush1.msra.mxu0 0.0
      %5368 = vmatprep.subr.mxu0 0.0
      %5369 = vmatpush1.msra.mxu0 0.0
      %5370 = vmatprep.subr.mxu0 0.0
      %5371 = vmatpush1.msra.mxu0 0.0
      %5372 = vmatprep.subr.mxu0 0.0
      %5373 = vmatpush1.msra.mxu0 0.0
      %5374 = vmatprep.subr.mxu0 0.0
      %5375 = vmatpush1.msra.mxu0 0.0
      %5376 = vmatprep.mubr.f32.mxu0 0.0
      %5377 = vmatmul.mubr.f32.gmra.mrb[0].mxu0 %v5239
      %v5378 = vpop.f32.mrb[0].mxu0
      %v5379 = vadd.f32 0.0, %v5378
      %v5380 = vpop.f32.mrb[0].mxu0
      %5381 = vdwg.mxu0
      %v5382 = vsub.f32 %v1179, %v5379
      %v5383 = vmul.f32 %v5164, 0.25
      %v5385 = vsel %vm654, %v5383, 0
      %5387 = vmatprep.subr.mxu0 0.0
      %5388 = vmatpush1.msra.mxu0 %v5382
      %5389 = vmatprep.subr.mxu0 0.0
      %5390 = vmatpush1.msra.mxu0 0.0
      %5391 = vmatprep.subr.mxu0 0.0
      %5392 = vmatpush1.msra.mxu0 0.0
      %5393 = vmatprep.subr.mxu0 0.0
      %5394 = vmatpush1.msra.mxu0 0.0
      %5395 = vmatprep.subr.mxu0 0.0
      %5396 = vmatpush1.msra.mxu0 0.0
      %5397 = vmatprep.subr.mxu0 0.0
      %5398 = vmatpush1.msra.mxu0 0.0
      %5399 = vmatprep.subr.mxu0 0.0
      %5400 = vmatpush1.msra.mxu0 0.0
      %5401 = vmatprep.subr.mxu0 0.0
      %5402 = vmatpush1.msra.mxu0 0.0
      %5403 = vmatprep.subr.mxu0 0.0
      %5404 = vmatpush1.msra.mxu0 0.0
      %5405 = vmatprep.subr.mxu0 0.0
      %5406 = vmatpush1.msra.mxu0 0.0
      %5407 = vmatprep.subr.mxu0 0.0
      %5408 = vmatpush1.msra.mxu0 0.0
      %5409 = vmatprep.subr.mxu0 0.0
      %5410 = vmatpush1.msra.mxu0 0.0
      %5411 = vmatprep.subr.mxu0 0.0
      %5412 = vmatpush1.msra.mxu0 0.0
      %5413 = vmatprep.subr.mxu0 0.0
      %5414 = vmatpush1.msra.mxu0 0.0
      %5415 = vmatprep.subr.mxu0 0.0
      %5416 = vmatpush1.msra.mxu0 0.0
      %5417 = vmatprep.subr.mxu0 0.0
      %5418 = vmatpush1.msra.mxu0 0.0
      %5419 = vmatprep.subr.mxu0 0.0
      %5420 = vmatpush1.msra.mxu0 0.0
      %5421 = vmatprep.subr.mxu0 0.0
      %5422 = vmatpush1.msra.mxu0 0.0
      %5423 = vmatprep.subr.mxu0 0.0
      %5424 = vmatpush1.msra.mxu0 0.0
      %5425 = vmatprep.subr.mxu0 0.0
      %5426 = vmatpush1.msra.mxu0 0.0
      %5427 = vmatprep.subr.mxu0 0.0
      %5428 = vmatpush1.msra.mxu0 0.0
      %5429 = vmatprep.subr.mxu0 0.0
      %5430 = vmatpush1.msra.mxu0 0.0
      %5431 = vmatprep.subr.mxu0 0.0
      %5432 = vmatpush1.msra.mxu0 0.0
      %5433 = vmatprep.subr.mxu0 0.0
      %5434 = vmatpush1.msra.mxu0 0.0
      %5435 = vmatprep.subr.mxu0 0.0
      %5436 = vmatpush1.msra.mxu0 0.0
      %5437 = vmatprep.subr.mxu0 0.0
      %5438 = vmatpush1.msra.mxu0 0.0
      %5439 = vmatprep.subr.mxu0 0.0
      %5440 = vmatpush1.msra.mxu0 0.0
      %5441 = vmatprep.subr.mxu0 0.0
      %5442 = vmatpush1.msra.mxu0 0.0
      %5443 = vmatprep.subr.mxu0 0.0
      %5444 = vmatpush1.msra.mxu0 0.0
      %5445 = vmatprep.subr.mxu0 0.0
      %5446 = vmatpush1.msra.mxu0 0.0
      %5447 = vmatprep.subr.mxu0 0.0
      %5448 = vmatpush1.msra.mxu0 0.0
      %5449 = vmatprep.subr.mxu0 0.0
      %5450 = vmatpush1.msra.mxu0 0.0
      %5451 = vmatprep.mubr.f32.mxu0 0.0
      %5452 = vmatmul.mubr.f32.gmra.mrb[0].mxu0 %v5385
      %v5453 = vpop.f32.mrb[0].mxu0
      %v5454 = vadd.f32 0.0, %v5453
      %v5455 = vpop.f32.mrb[0].mxu0
      %5456 = vdwg.mxu0
      %v5457 = vpack.c.bf16 %v3667, %v3667
      %v5466 = vunpack.c.l.b16 %v3062
      %v5467 = vunpack.c.l.b16 %v3063
      %v5468 = vunpack.c.l.b16 %v3064
      %v5469 = vunpack.c.l.b16 %v3065
      %v5470 = vunpack.c.l.b16 %v3066
      %v5471 = vunpack.c.l.b16 %v3067
      %v5472 = vunpack.c.l.b16 %v3068
      %v5473 = vunpack.c.l.b16 %v3069
      %v5474 = vpack.c.b16 %v5467, %v5466
      %v5475 = vpack.c.b16 %v5469, %v5468
      %v5476 = vpack.c.b16 %v5471, %v5470
      %v5477 = vpack.c.b16 %v5473, %v5472
      %v5483 = vsel %vm964, %v5457, 0
      %5485 = vmatprep.subr.bf16.mxu0 0
      %5486 = vmatpush1.bf16.msra.mxu0 %v5474
      %5487 = vmatprep.subr.bf16.mxu0 0
      %5488 = vmatpush1.bf16.msra.mxu0 %v5475
      %5489 = vmatprep.subr.bf16.mxu0 0
      %5490 = vmatpush1.bf16.msra.mxu0 %v5476
      %5491 = vmatprep.subr.bf16.mxu0 0
      %5492 = vmatpush1.bf16.msra.mxu0 %v5477
      %5493 = vmatprep.subr.bf16.mxu0 0
      %5494 = vmatpush1.bf16.msra.mxu0 0
      %5495 = vmatprep.subr.bf16.mxu0 0
      %5496 = vmatpush1.bf16.msra.mxu0 0
      %5497 = vmatprep.subr.bf16.mxu0 0
      %5498 = vmatpush1.bf16.msra.mxu0 0
      %5499 = vmatprep.subr.bf16.mxu0 0
      %5500 = vmatpush1.bf16.msra.mxu0 0
      %5501 = vmatprep.subr.bf16.mxu0 0
      %5502 = vmatpush1.bf16.msra.mxu0 0
      %5503 = vmatprep.subr.bf16.mxu0 0
      %5504 = vmatpush1.bf16.msra.mxu0 0
      %5505 = vmatprep.subr.bf16.mxu0 0
      %5506 = vmatpush1.bf16.msra.mxu0 0
      %5507 = vmatprep.subr.bf16.mxu0 0
      %5508 = vmatpush1.bf16.msra.mxu0 0
      %5509 = vmatprep.subr.bf16.mxu0 0
      %5510 = vmatpush1.bf16.msra.mxu0 0
      %5511 = vmatprep.subr.bf16.mxu0 0
      %5512 = vmatpush1.bf16.msra.mxu0 0
      %5513 = vmatprep.subr.bf16.mxu0 0
      %5514 = vmatpush1.bf16.msra.mxu0 0
      %5515 = vmatprep.subr.bf16.mxu0 0
      %5516 = vmatpush1.bf16.msra.mxu0 0
      %5517 = vmatprep.mubr.bf16.mxu0 0
      %5518 = vmatmul.mubr.bf16.gmra.mrb[0].mxu0 %v5483
      %v5519 = vpop.f32.mrb[0].mxu0
      %v5520 = vadd.f32 0.0, %v5519
      %v5521 = vpop.f32.mrb[0].mxu0
      %v5522 = vpop.f32.mrb[0].mxu0
      %v5523 = vpop.f32.mrb[0].mxu0
      %5524 = vdwg.mxu0
      %v5526 = vsel %vm654, %v5454, 0
      %5528 = vmatprep.subr.mxu0 0.0
      %5529 = vmatpush1.msra.mxu0 %v5520
      %5530 = vmatprep.subr.mxu0 0.0
      %5531 = vmatpush1.msra.mxu0 0.0
      %5532 = vmatprep.subr.mxu0 0.0
      %5533 = vmatpush1.msra.mxu0 0.0
      %5534 = vmatprep.subr.mxu0 0.0
      %5535 = vmatpush1.msra.mxu0 0.0
      %5536 = vmatprep.subr.mxu0 0.0
      %5537 = vmatpush1.msra.mxu0 0.0
      %5538 = vmatprep.subr.mxu0 0.0
      %5539 = vmatpush1.msra.mxu0 0.0
      %5540 = vmatprep.subr.mxu0 0.0
      %5541 = vmatpush1.msra.mxu0 0.0
      %5542 = vmatprep.subr.mxu0 0.0
      %5543 = vmatpush1.msra.mxu0 0.0
      %5544 = vmatprep.subr.mxu0 0.0
      %5545 = vmatpush1.msra.mxu0 0.0
      %5546 = vmatprep.subr.mxu0 0.0
      %5547 = vmatpush1.msra.mxu0 0.0
      %5548 = vmatprep.subr.mxu0 0.0
      %5549 = vmatpush1.msra.mxu0 0.0
      %5550 = vmatprep.subr.mxu0 0.0
      %5551 = vmatpush1.msra.mxu0 0.0
      %5552 = vmatprep.subr.mxu0 0.0
      %5553 = vmatpush1.msra.mxu0 0.0
      %5554 = vmatprep.subr.mxu0 0.0
      %5555 = vmatpush1.msra.mxu0 0.0
      %5556 = vmatprep.subr.mxu0 0.0
      %5557 = vmatpush1.msra.mxu0 0.0
      %5558 = vmatprep.subr.mxu0 0.0
      %5559 = vmatpush1.msra.mxu0 0.0
      %5560 = vmatprep.subr.mxu0 0.0
      %5561 = vmatpush1.msra.mxu0 0.0
      %5562 = vmatprep.subr.mxu0 0.0
      %5563 = vmatpush1.msra.mxu0 0.0
      %5564 = vmatprep.subr.mxu0 0.0
      %5565 = vmatpush1.msra.mxu0 0.0
      %5566 = vmatprep.subr.mxu0 0.0
      %5567 = vmatpush1.msra.mxu0 0.0
      %5568 = vmatprep.subr.mxu0 0.0
      %5569 = vmatpush1.msra.mxu0 0.0
      %5570 = vmatprep.subr.mxu0 0.0
      %5571 = vmatpush1.msra.mxu0 0.0
      %5572 = vmatprep.subr.mxu0 0.0
      %5573 = vmatpush1.msra.mxu0 0.0
      %5574 = vmatprep.subr.mxu0 0.0
      %5575 = vmatpush1.msra.mxu0 0.0
      %5576 = vmatprep.subr.mxu0 0.0
      %5577 = vmatpush1.msra.mxu0 0.0
      %5578 = vmatprep.subr.mxu0 0.0
      %5579 = vmatpush1.msra.mxu0 0.0
      %5580 = vmatprep.subr.mxu0 0.0
      %5581 = vmatpush1.msra.mxu0 0.0
      %5582 = vmatprep.subr.mxu0 0.0
      %5583 = vmatpush1.msra.mxu0 0.0
      %5584 = vmatprep.subr.mxu0 0.0
      %5585 = vmatpush1.msra.mxu0 0.0
      %5586 = vmatprep.subr.mxu0 0.0
      %5587 = vmatpush1.msra.mxu0 0.0
      %5588 = vmatprep.subr.mxu0 0.0
      %5589 = vmatpush1.msra.mxu0 0.0
      %5590 = vmatprep.subr.mxu0 0.0
      %5591 = vmatpush1.msra.mxu0 0.0
      %5592 = vmatprep.mubr.f32.mxu0 0.0
      %5593 = vmatmul.mubr.f32.gmra.mrb[0].mxu0 %v5526
      %v5594 = vpop.f32.mrb[0].mxu0
      %v5595 = vadd.f32 0.0, %v5594
      %v5596 = vpop.f32.mrb[0].mxu0
      %5597 = vdwg.mxu0
      %v5598 = vpack.c.bf16 %v3435, %v3434
      %v5599 = vpack.c.bf16 %v3437, %v3436
      %v5600 = vpack.c.bf16 %v3439, %v3438
      %v5601 = vpack.c.bf16 %v3441, %v3440
      %v5602 = vpack.c.bf16 %v5595, %v5595
      %v5604 = vsel %vm654, %v5598, 0
      %v5607 = vsel %vm654, %v5599, 0
      %v5610 = vsel %vm654, %v5600, 0
      %v5613 = vsel %vm654, %v5601, 0
      %v5616 = vsel %vm2933, %v5602, 0
      %5618 = vmatprep.subr.bf16.mxu0 0
      %5619 = vmatpush1.bf16.msra.mxu0 %v5616
      %5620 = vmatprep.subr.bf16.mxu0 0
      %5621 = vmatpush1.bf16.msra.mxu0 0
      %5622 = vmatprep.subr.bf16.mxu0 0
      %5623 = vmatpush1.bf16.msra.mxu0 0
      %5624 = vmatprep.subr.bf16.mxu0 0
      %5625 = vmatpush1.bf16.msra.mxu0 0
      %5626 = vmatprep.subr.bf16.mxu0 0
      %5627 = vmatpush1.bf16.msra.mxu0 0
      %5628 = vmatprep.subr.bf16.mxu0 0
      %5629 = vmatpush1.bf16.msra.mxu0 0
      %5630 = vmatprep.subr.bf16.mxu0 0
      %5631 = vmatpush1.bf16.msra.mxu0 0
      %5632 = vmatprep.subr.bf16.mxu0 0
      %5633 = vmatpush1.bf16.msra.mxu0 0
      %5634 = vmatprep.subr.bf16.mxu0 0
      %5635 = vmatpush1.bf16.msra.mxu0 0
      %5636 = vmatprep.subr.bf16.mxu0 0
      %5637 = vmatpush1.bf16.msra.mxu0 0
      %5638 = vmatprep.subr.bf16.mxu0 0
      %5639 = vmatpush1.bf16.msra.mxu0 0
      %5640 = vmatprep.subr.bf16.mxu0 0
      %5641 = vmatpush1.bf16.msra.mxu0 0
      %5642 = vmatprep.subr.bf16.mxu0 0
      %5643 = vmatpush1.bf16.msra.mxu0 0
      %5644 = vmatprep.subr.bf16.mxu0 0
      %5645 = vmatpush1.bf16.msra.mxu0 0
      %5646 = vmatprep.subr.bf16.mxu0 0
      %5647 = vmatpush1.bf16.msra.mxu0 0
      %5648 = vmatprep.subr.bf16.mxu0 0
      %5649 = vmatpush1.bf16.msra.mxu0 0
      %5650 = vmatprep.mubr.bf16.mxu0 0
      %5651 = vmatmul.mubr.bf16.gmra.mrb[0].mxu0 %v5604
      %v5652 = vpop.f32.mrb[0].mxu0
      %v5653 = vadd.f32 0.0, %v5652
      %v5654 = vpop.f32.mrb[0].mxu0
      %v5655 = vpop.f32.mrb[0].mxu0
      %v5656 = vadd.f32 0.0, %v5655
      %v5657 = vpop.f32.mrb[0].mxu0
      %5658 = vmatprep.mubr.bf16.mxu0 0
      %5659 = vmatmul.mubr.bf16.gmra.mrb[0].mxu0 %v5607
      %v5660 = vpop.f32.mrb[0].mxu0
      %v5661 = vadd.f32 0.0, %v5660
      %v5662 = vpop.f32.mrb[0].mxu0
      %v5663 = vpop.f32.mrb[0].mxu0
      %v5664 = vadd.f32 0.0, %v5663
      %v5665 = vpop.f32.mrb[0].mxu0
      %5666 = vmatprep.mubr.bf16.mxu0 0
      %5667 = vmatmul.mubr.bf16.gmra.mrb[0].mxu0 %v5610
      %v5668 = vpop.f32.mrb[0].mxu0
      %v5669 = vadd.f32 0.0, %v5668
      %v5670 = vpop.f32.mrb[0].mxu0
      %v5671 = vpop.f32.mrb[0].mxu0
      %v5672 = vadd.f32 0.0, %v5671
      %v5673 = vpop.f32.mrb[0].mxu0
      %5674 = vmatprep.mubr.bf16.mxu0 0
      %5675 = vmatmul.mubr.bf16.gmra.mrb[0].mxu0 %v5613
      %v5676 = vpop.f32.mrb[0].mxu0
      %v5677 = vadd.f32 0.0, %v5676
      %v5678 = vpop.f32.mrb[0].mxu0
      %v5679 = vpop.f32.mrb[0].mxu0
      %v5680 = vadd.f32 0.0, %v5679
      %v5681 = vpop.f32.mrb[0].mxu0
      %5682 = vdwg.mxu0
      %v5683 = vpack.c.bf16 %v5656, %v5653
      %v5684 = vpack.c.bf16 %v5664, %v5661
      %v5685 = vpack.c.bf16 %v5672, %v5669
      %v5686 = vpack.c.bf16 %v5680, %v5677
      %v5691 = vunpack.c.l.b16 %v5683
      %v5692 = vunpack.c.h.b16 %v5683
      %v5693 = vunpack.c.l.b16 %v5684
      %v5694 = vunpack.c.h.b16 %v5684
      %v5695 = vunpack.c.l.b16 %v5685
      %v5696 = vunpack.c.h.b16 %v5685
      %v5697 = vunpack.c.l.b16 %v5686
      %v5698 = vunpack.c.h.b16 %v5686
      %v5699 = vpack.c.b16 %v5691, %v5691
      %v5700 = vpack.c.b16 %v5692, %v5692
      %v5701 = vpack.c.b16 %v5693, %v5693
      %v5702 = vpack.c.b16 %v5694, %v5694
      %v5703 = vpack.c.b16 %v5695, %v5695
      %v5704 = vpack.c.b16 %v5696, %v5696
      %v5705 = vpack.c.b16 %v5697, %v5697
      %v5706 = vpack.c.b16 %v5698, %v5698
      %s5715 = scalar_lea.vmem %s332, 32
      %5716 = vst.msk [vmem:[%s5715] sm:$0xf] %vm3034, %v5699
      %5717 = vst.msk [vmem:[%s5715 + $0x4] sm:$0xf] %vm3034, %v5700
      %5718 = vst.msk [vmem:[%s5715 + $0x8] sm:$0xf] %vm3034, %v5701
      %5719 = vst.msk [vmem:[%s5715 + $0xc] sm:$0xf] %vm3034, %v5702
      %5720 = vst.msk [vmem:[%s5715 + $0x10] sm:$0xf] %vm3034, %v5703
      %5721 = vst.msk [vmem:[%s5715 + $0x14] sm:$0xf] %vm3034, %v5704
      %5722 = vst.msk [vmem:[%s5715 + $0x18] sm:$0xf] %vm3034, %v5705
      %5723 = vst.msk [vmem:[%s5715 + $0x1c] sm:$0xf] %vm3034, %v5706
      %s5724 = smul.u32 2, %s20
      %p5725 = scmp.lt.s32.totalorder %s19, 1
      %s5726 = scalar_select %p5725, %s19, 1
      %p5727 = scmp.lt.s32.totalorder %s5724, 1
      %s5728 = scalar_select %p5727, %s5724, 1
      %s5729 = smul.addr %s5728, 8
      %s5730 = smul.addr %s5726, 16
      %s5731 = sadd.s32 %s5729, %s5730
      %s5732 = smul.addr %s5731, 4
      %s5733 = scalar_lea.vmem %s4, %s5732
      // Predicated region
      $region37: #{tpu_custom_call.1} parent=35 // pred_check
        %p5734 = pneg %p157
      $region38: #{tpu_custom_call.1} parent=35 // pred_check_branch
        %5736 = sbr.rel (%p5734) target = $region40
      $region39: #{tpu_custom_call.1} parent=35 // pred_region
        %s5737 = smul.u32 2, %s20
      $region40: #{tpu_custom_call.1} parent=35 // pred_fallthru
        _
    $region36: #{tpu_custom_call.1} parent=5 // pred_fallthru
      _
    %p5738 = scmp.le.s32.totalorder 2, %s10
    // Predicated region
    $region41: #{tpu_custom_call.1} parent=5 // pred_check
      %p5739 = pneg %p5738
    $region42: #{tpu_custom_call.1} parent=5 // pred_check_branch
      %5741 = sbr.rel (%p5739) target = $region44
    $region43: #{tpu_custom_call.1} parent=5 // pred_region
      %s5742 = ssub.s32 %s10, 2
      // Predicated region
      $region45: #{tpu_custom_call.1} parent=43 // pred_check
        %p5743 = pneg %p163
      $region46: #{tpu_custom_call.1} parent=43 // pred_check_branch
        %5745 = sbr.rel (%p5743) target = $region48
      $region47: #{tpu_custom_call.1} parent=43 // pred_region
        %s5746 = smul.u32 2, %s22
        %p5747 = scmp.lt.s32.totalorder %s21, 1
        %s5748 = scalar_select %p5747, %s21, 1
        %p5749 = scmp.lt.s32.totalorder %s5746, 1
        %s5750 = scalar_select %p5749, %s5746, 1
        %s5751 = smul.addr %s5750, 8
        %s5752 = smul.addr %s5748, 16
        %s5753 = sadd.s32 %s5751, %s5752
        %s5754 = smul.addr %s5753, 4
        %s5755 = scalar_lea.vmem %s4, %s5754
      $region48: #{tpu_custom_call.1} parent=43 // pred_fallthru
        _
    $region44: #{tpu_custom_call.1} parent=5 // pred_fallthru
      _
  $region6: #{tpu_custom_call.1} parent=0 // loop_footer
    %s14 = sadd.s32 1, %s10
  $region7: #{tpu_custom_call.1} parent=0 // loop_footer_branch
    %9 = sbr.rel target = $region3
  $region8: #{tpu_custom_call.1} parent=0 // loop_exit
    _

</llo_original>
